<compile_context>
chip_gen: v6e
topology: v6e:2x2x1
jax: 0.10.0
libtpu: 0.0.40
codegen_flags: <defaults>
</compile_context>

<pallas_src>
import functools

import jax
import jax.numpy as jnp
from jax.experimental import pallas as pl
from jax.experimental.pallas import tpu as pltpu

LN_EPS = 1e-5        # nn.LayerNorm default eps
NORM_EPS = 1e-12     # F.normalize default eps
STAT_LANES = 128     # lane-dense stats slab width


# ----------------------------- in-kernel helpers -----------------------------

def _layernorm(x, w, b):
    mu = jnp.mean(x, axis=-1, keepdims=True)
    xc = x - mu
    var = jnp.mean(xc * xc, axis=-1, keepdims=True)
    return xc * jax.lax.rsqrt(var + LN_EPS) * w + b


def _l2_normalize(x):
    ss = jnp.sum(x * x, axis=-1, keepdims=True)
    return x * jax.lax.rsqrt(jnp.maximum(ss, NORM_EPS * NORM_EPS))


# --------------------------------- fused kernel -----------------------------------

def fused_rerank_kernel(
        x_ref, a_ref,
        lnw_ref, lnb_ref, ln1w_ref, ln1b_ref,
        wpi_ref, wpa_ref, wpc_ref, bp_ref,
        n1w_ref, n1b_ref, wq_ref, wk_ref, wv_ref, wo_ref, bo_ref,
        n2w_ref, n2b_ref, w1_ref, b1_ref, w2_ref, b2_ref,
        faw_ref, fab_ref,
        normx_ref, stats_ref,
        x_scr,
        *, num_heads, cir_dim, inv_t, bt, n_tok):
    f32 = jnp.float32
    bf16 = jnp.bfloat16

    l = pl.program_id(1)
    last = pl.num_programs(1) - 1

    dk = x_ref.shape[-1]
    half = lnw_ref.shape[-1]
    d = bp_ref.shape[-1]
    dh = d // num_heads
    m_rows = bt * n_tok

    # ---- embedding phase (only at the first layer step of each batch block) ----
    @pl.when(l == 0)
    def _embed():
        # chunked LayerNorms + row-decomposed topk_proj (no lane concat of chunks)
        x2 = x_ref[...].reshape(m_rows, dk)
        y_inter = _layernorm(x2[:, :half], lnw_ref[...], lnb_ref[...])
        y_intra = _layernorm(x2[:, half:2 * half], ln1w_ref[...], ln1b_ref[...])
        x_cir = x2[:, dk - cir_dim:]
        x0 = (jnp.dot(y_inter.astype(bf16), wpi_ref[...], preferred_element_type=f32)
              + jnp.dot(y_intra.astype(bf16), wpa_ref[...], preferred_element_type=f32)
              + jnp.dot(x_cir.astype(bf16), wpc_ref[...], preferred_element_type=f32)
              + bp_ref[...])                          # (Bt*N, D) f32
        x_scr[...] = x0

    # ---- one pre-norm transformer block per grid step (layer-l weights streamed) ----
    x = x_scr[...]                                    # (Bt*N, D) f32 resident activation
    A = a_ref[...]                                    # (Bt, N, N) f32 additive attn bias

    h = _layernorm(x, n1w_ref[0], n1b_ref[0])
    hb = h.astype(bf16)
    # M = Bt*N rows for all three projections; 1/sqrt(dh) is folded into Wq at init.
    q = jnp.dot(hb, wq_ref[0], preferred_element_type=f32).reshape(bt, n_tok, d)
    k = jnp.dot(hb, wk_ref[0], preferred_element_type=f32).reshape(bt, n_tok, d)
    v = jnp.dot(hb, wv_ref[0], preferred_element_type=f32).reshape(bt, n_tok, d)

    head_outs = []
    for hd in range(num_heads):
        lo = hd * dh
        qh = q[:, :, lo:lo + dh].astype(bf16)         # (Bt, N, dh)
        kh = k[:, :, lo:lo + dh].astype(bf16)
        vh = v[:, :, lo:lo + dh].astype(bf16)
        # scores batched over the Bt batch elements (leading-batch einsum).
        s = jnp.einsum('bqd,bkd->bqk', qh, kh, preferred_element_type=f32) + A
        s = s - jnp.max(s, axis=-1, keepdims=True)
        e = jnp.exp(s)
        p = e * pl.reciprocal(jnp.sum(e, axis=-1, keepdims=True), approx=True)
        oh = jnp.einsum('bqk,bkd->bqd', p.astype(bf16), vh,
                        preferred_element_type=f32)   # (Bt, N, dh)
        head_outs.append(oh.reshape(m_rows, dh))
    # single full-width output projection with M = Bt*N rows
    attn = jnp.concatenate(head_outs, axis=-1)        # (Bt*N, D)
    x = x + jnp.dot(attn.astype(bf16), wo_ref[0], preferred_element_type=f32) + bo_ref[0]

    h2 = _layernorm(x, n2w_ref[0], n2b_ref[0])
    m = jnp.dot(h2.astype(bf16), w1_ref[0], preferred_element_type=f32) + b1_ref[0]
    m = jax.nn.gelu(m, approximate=True)
    m = jnp.dot(m.astype(bf16), w2_ref[0], preferred_element_type=f32) + b2_ref[0]
    x = x + m
    x_scr[...] = x

    # ---- head phase (only at the last layer step) ----
    @pl.when(l == last)
    def _head():
        nx = _l2_normalize(x)                         # (Bt*N, D)
        nx3 = nx.reshape(bt, n_tok, d)
        normx_ref[...] = nx3

        sim = jnp.sum(nx3[:, 0:1, :] * nx3, axis=-1, keepdims=True)     # (Bt, N, 1)
        exp_sim = jnp.exp(sim * inv_t)

        xr3 = x_ref[...]                              # raw residual (Bt, N, topk_dim)
        min_sim = jnp.min(xr3[:, :, 0:1], axis=1, keepdims=True)        # (Bt, 1, 1)
        hinge = jnp.maximum(min_sim - sim, 0.0)

        x_fa = (jnp.dot(x.astype(bf16), faw_ref[...], preferred_element_type=f32)
                + fab_ref[...])                       # (Bt*N, topk_dim)
        diff = _l2_normalize(xr3.reshape(m_rows, dk)) - _l2_normalize(x_fa)
        # clamp-before-sqrt matches the reference (.clamp(1e-4, 1e4).sqrt())
        mse = jnp.sqrt(jnp.clip(jnp.sum(diff * diff, axis=-1, keepdims=True), 1e-4, 1e4))
        mse3 = mse.reshape(bt, n_tok, 1)

        # lane-dense stats slab: iota + selects (pure VPU) then one unmasked store.
        lane = jax.lax.broadcasted_iota(jnp.int32, (bt, n_tok, STAT_LANES), 2)
        stats_ref[...] = (jnp.where(lane == 0, sim, 0.0)
                          + jnp.where(lane == 1, exp_sim, 0.0)
                          + jnp.where(lane == 2, hinge, 0.0)
                          + jnp.where(lane == 3, mse3, 0.0))


# ------------------------------- model wrapper --------------------------------

def init_params(key, topk_dim, embed_dim, depth, mlp_ratio, cir_dim, num_heads):
    half = (topk_dim - cir_dim) // 2
    assert 2 * half + cir_dim == topk_dim, "topk_dim - cir_dim must be even"
    hidden = int(embed_dim * mlp_ratio)
    dh = embed_dim // num_heads
    keys = iter(jax.random.split(key, 2 + 6 * depth))

    def w_bf16(k, fan_in, fan_out, scale=1.0):
        # trunc_normal_(std=0.02) approximated with a plain normal (synthetic weights);
        # matmul weights stored bf16 (autocast-equivalent, halves weight DMA bytes).
        w = 0.02 * jax.random.normal(k, (fan_in, fan_out), jnp.float32)
        return (w * scale).astype(jnp.bfloat16)

    wp = 0.02 * jax.random.normal(next(keys), (topk_dim, embed_dim), jnp.float32)
    fa_w = w_bf16(next(keys), embed_dim, topk_dim)

    # Q/K/V stored separately (avoids lane-slicing a fused qkv matmul output);
    # the 1/sqrt(dh) attention scale is folded directly into Wq.
    wq = jnp.stack([w_bf16(next(keys), embed_dim, embed_dim, scale=dh ** -0.5)
                    for _ in range(depth)])
    wk = jnp.stack([w_bf16(next(keys), embed_dim, embed_dim) for _ in range(depth)])
    wv = jnp.stack([w_bf16(next(keys), embed_dim, embed_dim) for _ in range(depth)])
    wo = jnp.stack([w_bf16(next(keys), embed_dim, embed_dim) for _ in range(depth)])
    w1 = jnp.stack([w_bf16(next(keys), embed_dim, hidden) for _ in range(depth)])
    w2 = jnp.stack([w_bf16(next(keys), hidden, embed_dim) for _ in range(depth)])

    return {
        "ln_w": jnp.ones((1, half), jnp.float32),
        "ln_b": jnp.zeros((1, half), jnp.float32),
        "ln1_w": jnp.ones((1, half), jnp.float32),
        "ln1_b": jnp.zeros((1, half), jnp.float32),
        # topk_proj split by input rows -> decomposed matmul, no in-kernel concat
        "wp_inter": wp[:half].astype(jnp.bfloat16),
        "wp_intra": wp[half:2 * half].astype(jnp.bfloat16),
        "wp_cir": wp[topk_dim - cir_dim:].astype(jnp.bfloat16),
        "bp": jnp.zeros((1, embed_dim), jnp.float32),
        # depth-stacked block params (qkv_bias=False); streamed one layer per grid step
        "n1_w": jnp.ones((depth, 1, embed_dim), jnp.float32),
        "n1_b": jnp.zeros((depth, 1, embed_dim), jnp.float32),
        "wq": wq, "wk": wk, "wv": wv, "wo": wo,
        "bo": jnp.zeros((depth, 1, embed_dim), jnp.float32),
        "n2_w": jnp.ones((depth, 1, embed_dim), jnp.float32),
        "n2_b": jnp.zeros((depth, 1, embed_dim), jnp.float32),
        "w1": w1,
        "b1": jnp.zeros((depth, 1, hidden), jnp.float32),
        "w2": w2,
        "b2": jnp.zeros((depth, 1, embed_dim), jnp.float32),
        # feature_align
        "fa_w": fa_w,
        "fa_b": jnp.zeros((1, topk_dim), jnp.float32),
    }


def rerank_transformer_forward(x_topk, A_mat, topk_indices, params, *,
                               topk, temperature, num_heads, cir_dim,
                               batch_block=None):
    del topk_indices  # unused in the reference forward path
    B, N, topk_dim = x_topk.shape
    D = params["bp"].shape[-1]
    depth = params["wq"].shape[0]

    # Batch elements fused into the MXU M dimension; in production pick Bt so that
    # Bt * N >= 128 (v5e) / 256 (v6e, v7x).
    Bt = B if batch_block is None else batch_block
    assert B % Bt == 0, "batch_block must divide batch size"

    args = (x_topk, A_mat,
            params["ln_w"], params["ln_b"], params["ln1_w"], params["ln1_b"],
            params["wp_inter"], params["wp_intra"], params["wp_cir"], params["bp"],
            params["n1_w"], params["n1_b"], params["wq"], params["wk"], params["wv"],
            params["wo"], params["bo"],
            params["n2_w"], params["n2_b"], params["w1"], params["b1"],
            params["w2"], params["b2"],
            params["fa_w"], params["fa_b"])

    def batch_spec(shape):
        nd = len(shape)
        return pl.BlockSpec((Bt,) + tuple(shape[1:]),
                            lambda b, l, _nd=nd: (b,) + (0,) * (_nd - 1))

    def shared_spec(arr):
        nd = arr.ndim
        return pl.BlockSpec(tuple(arr.shape), lambda b, l, _nd=nd: (0,) * _nd)

    def layer_spec(arr):
        nd = arr.ndim
        return pl.BlockSpec((1,) + tuple(arr.shape[1:]),
                            lambda b, l, _nd=nd: (l,) + (0,) * (_nd - 1))

    in_specs = [
        batch_spec(x_topk.shape),
        batch_spec(A_mat.shape),
        shared_spec(params["ln_w"]), shared_spec(params["ln_b"]),
        shared_spec(params["ln1_w"]), shared_spec(params["ln1_b"]),
        shared_spec(params["wp_inter"]), shared_spec(params["wp_intra"]),
        shared_spec(params["wp_cir"]), shared_spec(params["bp"]),
        layer_spec(params["n1_w"]), layer_spec(params["n1_b"]),
        layer_spec(params["wq"]), layer_spec(params["wk"]), layer_spec(params["wv"]),
        layer_spec(params["wo"]), layer_spec(params["bo"]),
        layer_spec(params["n2_w"]), layer_spec(params["n2_b"]),
        layer_spec(params["w1"]), layer_spec(params["b1"]),
        layer_spec(params["w2"]), layer_spec(params["b2"]),
        shared_spec(params["fa_w"]), shared_spec(params["fa_b"]),
    ]

    out_shapes = (
        jax.ShapeDtypeStruct((B, N, D), jnp.float32),            # norm_x
        jax.ShapeDtypeStruct((B, N, STAT_LANES), jnp.float32),   # packed per-token stats
    )
    out_specs = (batch_spec((B, N, D)), batch_spec((B, N, STAT_LANES)))

    norm_x, stats = pl.pallas_call(
        functools.partial(fused_rerank_kernel, num_heads=num_heads, cir_dim=cir_dim,
                          inv_t=1.0 / temperature, bt=Bt, n_tok=N),
        grid=(B // Bt, depth),
        in_specs=in_specs,
        out_specs=out_specs,
        out_shape=out_shapes,
        scratch_shapes=[pltpu.VMEM((Bt * N, D), jnp.float32)],   # resident activation
        compiler_params=pltpu.CompilerParams(
            # batch blocks across TCs; depth is a sequential (carried) axis.
            dimension_semantics=("parallel", "arbitrary"),
            # leave headroom below v7x's 64 MiB physical VMEM for pipeline buffers.
            vmem_limit_bytes=48 * 1024 * 1024),
    )(*args)

    sim = stats[:, :, 0]                                  # (B, topk)
    exp_sim = stats[:, :, 1]                              # (B, topk)
    hinge_loss = jnp.mean(jnp.sum(stats[:, :, 2], axis=-1))
    mse_loss = jnp.mean(stats[:, :, 3])
    return exp_sim, mse_loss, hinge_loss, sim, norm_x


# ----------------------------------- main --------------------------------------

if __name__ == "__main__":
    # Small synthetic configuration (scaled-down module defaults; the default
    # topk_dim=512 with CIR_Dim=512 would make the chunk LayerNorms zero-width,
    # so a usable topk_dim > CIR_dim is chosen here).
    B, topk = 4, 8
    topk_dim, cir_dim = 32, 16
    embed_dim, depth, num_heads, mlp_ratio = 64, 2, 4, 4.0
    temperature = 2.0
    batch_block = 2     # 2 batch elements fused per grid step -> grid (2, depth)

    key = jax.random.PRNGKey(0)
    kx, ka, kp = jax.random.split(key, 3)
    x_topk = jax.random.normal(kx, (B, topk, topk_dim), jnp.float32)
    A_mat = 0.1 * jax.random.normal(ka, (B, topk, topk), jnp.float32)
    topk_indices = jnp.tile(jnp.arange(topk, dtype=jnp.int32)[None, :], (B, 1))

    params = init_params(kp, topk_dim, embed_dim, depth, mlp_ratio, cir_dim, num_heads)

    out = rerank_transformer_forward(
        x_topk, A_mat, topk_indices, params,
        topk=topk, temperature=temperature, num_heads=num_heads, cir_dim=cir_dim,
        batch_block=batch_block)
    out = jax.block_until_ready(out)
    print("KERNEL_OK")
</pallas_src>

<mosaic_0001>
module attributes {stable_mosaic.version = 11 : i64} {
  func.func @fused_rerank_kernel(%arg0: i32, %arg1: i32, %arg2: memref<2x8x32xf32, #tpu.memory_space<vmem>>, %arg3: memref<2x8x8xf32, #tpu.memory_space<vmem>>, %arg4: memref<1x8xf32, #tpu.memory_space<vmem>>, %arg5: memref<1x8xf32, #tpu.memory_space<vmem>>, %arg6: memref<1x8xf32, #tpu.memory_space<vmem>>, %arg7: memref<1x8xf32, #tpu.memory_space<vmem>>, %arg8: memref<8x64xbf16, #tpu.memory_space<vmem>>, %arg9: memref<8x64xbf16, #tpu.memory_space<vmem>>, %arg10: memref<16x64xbf16, #tpu.memory_space<vmem>>, %arg11: memref<1x64xf32, #tpu.memory_space<vmem>>, %arg12: memref<1x1x64xf32, #tpu.memory_space<vmem>>, %arg13: memref<1x1x64xf32, #tpu.memory_space<vmem>>, %arg14: memref<1x64x64xbf16, #tpu.memory_space<vmem>>, %arg15: memref<1x64x64xbf16, #tpu.memory_space<vmem>>, %arg16: memref<1x64x64xbf16, #tpu.memory_space<vmem>>, %arg17: memref<1x64x64xbf16, #tpu.memory_space<vmem>>, %arg18: memref<1x1x64xf32, #tpu.memory_space<vmem>>, %arg19: memref<1x1x64xf32, #tpu.memory_space<vmem>>, %arg20: memref<1x1x64xf32, #tpu.memory_space<vmem>>, %arg21: memref<1x64x256xbf16, #tpu.memory_space<vmem>>, %arg22: memref<1x1x256xf32, #tpu.memory_space<vmem>>, %arg23: memref<1x256x64xbf16, #tpu.memory_space<vmem>>, %arg24: memref<1x1x64xf32, #tpu.memory_space<vmem>>, %arg25: memref<64x32xbf16, #tpu.memory_space<vmem>>, %arg26: memref<1x32xf32, #tpu.memory_space<vmem>>, %arg27: memref<2x8x64xf32, #tpu.memory_space<vmem>>, %arg28: memref<2x8x128xf32, #tpu.memory_space<vmem>>, %arg29: memref<16x64xf32, #tpu.memory_space<vmem>>) attributes {dimension_semantics = [#tpu.dimension_semantics<parallel>, #tpu.dimension_semantics<arbitrary>], iteration_bounds = array<i64: 2, 2>, scalar_prefetch = 0 : i64, scratch_operands = 1 : i64, tpu.core_type = #tpu.core_type<tc>, window_params = [{transform_indices = @transform_0, window_bounds = array<i64: 2, 8, 32>}, {transform_indices = @transform_1, window_bounds = array<i64: 2, 8, 8>}, {pipeline_mode = #tpu.pipeline_mode<synchronous>, transform_indices = @transform_2, window_bounds = array<i64: 1, 8>}, {pipeline_mode = #tpu.pipeline_mode<synchronous>, transform_indices = @transform_3, window_bounds = array<i64: 1, 8>}, {pipeline_mode = #tpu.pipeline_mode<synchronous>, transform_indices = @transform_4, window_bounds = array<i64: 1, 8>}, {pipeline_mode = #tpu.pipeline_mode<synchronous>, transform_indices = @transform_5, window_bounds = array<i64: 1, 8>}, {pipeline_mode = #tpu.pipeline_mode<synchronous>, transform_indices = @transform_6, window_bounds = array<i64: 8, 64>}, {pipeline_mode = #tpu.pipeline_mode<synchronous>, transform_indices = @transform_7, window_bounds = array<i64: 8, 64>}, {pipeline_mode = #tpu.pipeline_mode<synchronous>, transform_indices = @transform_8, window_bounds = array<i64: 16, 64>}, {pipeline_mode = #tpu.pipeline_mode<synchronous>, transform_indices = @transform_9, window_bounds = array<i64: 1, 64>}, {transform_indices = @transform_10, window_bounds = array<i64: 1, 1, 64>}, {transform_indices = @transform_11, window_bounds = array<i64: 1, 1, 64>}, {transform_indices = @transform_12, window_bounds = array<i64: 1, 64, 64>}, {transform_indices = @transform_13, window_bounds = array<i64: 1, 64, 64>}, {transform_indices = @transform_14, window_bounds = array<i64: 1, 64, 64>}, {transform_indices = @transform_15, window_bounds = array<i64: 1, 64, 64>}, {transform_indices = @transform_16, window_bounds = array<i64: 1, 1, 64>}, {transform_indices = @transform_17, window_bounds = array<i64: 1, 1, 64>}, {transform_indices = @transform_18, window_bounds = array<i64: 1, 1, 64>}, {transform_indices = @transform_19, window_bounds = array<i64: 1, 64, 256>}, {transform_indices = @transform_20, window_bounds = array<i64: 1, 1, 256>}, {transform_indices = @transform_21, window_bounds = array<i64: 1, 256, 64>}, {transform_indices = @transform_22, window_bounds = array<i64: 1, 1, 64>}, {pipeline_mode = #tpu.pipeline_mode<synchronous>, transform_indices = @transform_23, window_bounds = array<i64: 64, 32>}, {pipeline_mode = #tpu.pipeline_mode<synchronous>, transform_indices = @transform_24, window_bounds = array<i64: 1, 32>}, {transform_indices = @transform_25, window_bounds = array<i64: 2, 8, 64>}, {transform_indices = @transform_26, window_bounds = array<i64: 2, 8, 128>}]} {
    %c0_i32 = arith.constant 0 : i32
    %0 = arith.cmpi eq, %arg1, %c0_i32 : i32
    %1 = arith.extui %0 : i1 to i32
    %c0_i32_0 = arith.constant 0 : i32
    %2 = arith.cmpi ne, %1, %c0_i32_0 : i32
    scf.if %2 {
      %c0_82 = arith.constant 0 : index
      %c0_83 = arith.constant 0 : index
      %c0_84 = arith.constant 0 : index
      %194 = vector.load %arg2[%c0_82, %c0_83, %c0_84] : memref<2x8x32xf32, #tpu.memory_space<vmem>>, vector<2x8x32xf32>
      %195 = vector.shape_cast %194 : vector<2x8x32xf32> to vector<16x32xf32>
      %196 = vector.extract_strided_slice %195 {offsets = [0, 0], sizes = [16, 8], strides = [1, 1]} : vector<16x32xf32> to vector<16x8xf32>
      %c0_85 = arith.constant 0 : index
      %c0_86 = arith.constant 0 : index
      %197 = vector.load %arg4[%c0_85, %c0_86] : memref<1x8xf32, #tpu.memory_space<vmem>>, vector<1x8xf32>
      %c0_87 = arith.constant 0 : index
      %c0_88 = arith.constant 0 : index
      %198 = vector.load %arg5[%c0_87, %c0_88] : memref<1x8xf32, #tpu.memory_space<vmem>>, vector<1x8xf32>
      %cst_89 = arith.constant dense<0.000000e+00> : vector<16xf32>
      %199 = vector.multi_reduction <add>, %196, %cst_89 [1] : vector<16x8xf32> to vector<16xf32>
      %200 = vector.shape_cast %199 : vector<16xf32> to vector<16x1xf32>
      %cst_90 = arith.constant 8.000000e+00 : f32
      %201 = vector.broadcast %cst_90 : f32 to vector<16x1xf32>
      %202 = arith.divf %200, %201 : vector<16x1xf32>
      %203 = vector.broadcast %202 : vector<16x1xf32> to vector<16x8xf32>
      %204 = arith.subf %196, %203 : vector<16x8xf32>
      %205 = arith.mulf %204, %204 : vector<16x8xf32>
      %cst_91 = arith.constant dense<0.000000e+00> : vector<16xf32>
      %206 = vector.multi_reduction <add>, %205, %cst_91 [1] : vector<16x8xf32> to vector<16xf32>
      %207 = vector.shape_cast %206 : vector<16xf32> to vector<16x1xf32>
      %cst_92 = arith.constant 8.000000e+00 : f32
      %208 = vector.broadcast %cst_92 : f32 to vector<16x1xf32>
      %209 = arith.divf %207, %208 : vector<16x1xf32>
      %cst_93 = arith.constant 9.99999974E-6 : f32
      %210 = vector.broadcast %cst_93 : f32 to vector<16x1xf32>
      %211 = arith.addf %209, %210 : vector<16x1xf32>
      %212 = math.rsqrt %211 : vector<16x1xf32>
      %213 = vector.broadcast %212 : vector<16x1xf32> to vector<16x8xf32>
      %214 = arith.mulf %204, %213 : vector<16x8xf32>
      %215 = vector.broadcast %197 : vector<1x8xf32> to vector<16x8xf32>
      %216 = arith.mulf %214, %215 : vector<16x8xf32>
      %217 = vector.broadcast %198 : vector<1x8xf32> to vector<16x8xf32>
      %218 = arith.addf %216, %217 : vector<16x8xf32>
      %219 = vector.extract_strided_slice %195 {offsets = [0, 8], sizes = [16, 8], strides = [1, 1]} : vector<16x32xf32> to vector<16x8xf32>
      %c0_94 = arith.constant 0 : index
      %c0_95 = arith.constant 0 : index
      %220 = vector.load %arg6[%c0_94, %c0_95] : memref<1x8xf32, #tpu.memory_space<vmem>>, vector<1x8xf32>
      %c0_96 = arith.constant 0 : index
      %c0_97 = arith.constant 0 : index
      %221 = vector.load %arg7[%c0_96, %c0_97] : memref<1x8xf32, #tpu.memory_space<vmem>>, vector<1x8xf32>
      %cst_98 = arith.constant dense<0.000000e+00> : vector<16xf32>
      %222 = vector.multi_reduction <add>, %219, %cst_98 [1] : vector<16x8xf32> to vector<16xf32>
      %223 = vector.shape_cast %222 : vector<16xf32> to vector<16x1xf32>
      %cst_99 = arith.constant 8.000000e+00 : f32
      %224 = vector.broadcast %cst_99 : f32 to vector<16x1xf32>
      %225 = arith.divf %223, %224 : vector<16x1xf32>
      %226 = vector.broadcast %225 : vector<16x1xf32> to vector<16x8xf32>
      %227 = arith.subf %219, %226 : vector<16x8xf32>
      %228 = arith.mulf %227, %227 : vector<16x8xf32>
      %cst_100 = arith.constant dense<0.000000e+00> : vector<16xf32>
      %229 = vector.multi_reduction <add>, %228, %cst_100 [1] : vector<16x8xf32> to vector<16xf32>
      %230 = vector.shape_cast %229 : vector<16xf32> to vector<16x1xf32>
      %cst_101 = arith.constant 8.000000e+00 : f32
      %231 = vector.broadcast %cst_101 : f32 to vector<16x1xf32>
      %232 = arith.divf %230, %231 : vector<16x1xf32>
      %cst_102 = arith.constant 9.99999974E-6 : f32
      %233 = vector.broadcast %cst_102 : f32 to vector<16x1xf32>
      %234 = arith.addf %232, %233 : vector<16x1xf32>
      %235 = math.rsqrt %234 : vector<16x1xf32>
      %236 = vector.broadcast %235 : vector<16x1xf32> to vector<16x8xf32>
      %237 = arith.mulf %227, %236 : vector<16x8xf32>
      %238 = vector.broadcast %220 : vector<1x8xf32> to vector<16x8xf32>
      %239 = arith.mulf %237, %238 : vector<16x8xf32>
      %240 = vector.broadcast %221 : vector<1x8xf32> to vector<16x8xf32>
      %241 = arith.addf %239, %240 : vector<16x8xf32>
      %242 = vector.extract_strided_slice %195 {offsets = [0, 16], sizes = [16, 16], strides = [1, 1]} : vector<16x32xf32> to vector<16x16xf32>
      %243 = arith.truncf %218 : vector<16x8xf32> to vector<16x8xbf16>
      %c0_103 = arith.constant 0 : index
      %c0_104 = arith.constant 0 : index
      %244 = vector.load %arg8[%c0_103, %c0_104] : memref<8x64xbf16, #tpu.memory_space<vmem>>, vector<8x64xbf16>
      %cst_105 = arith.constant dense<0.000000e+00> : vector<16x64xf32>
      %245 = tpu.matmul %243, %244, %cst_105 {dimension_numbers = #tpu.dot_dimension_numbers<[1], [0], [0], [1], [0, 0, 1, 1], [], []>} : vector<16x8xbf16>, vector<8x64xbf16>, vector<16x64xf32> -> vector<16x64xf32>
      %246 = arith.truncf %241 : vector<16x8xf32> to vector<16x8xbf16>
      %c0_106 = arith.constant 0 : index
      %c0_107 = arith.constant 0 : index
      %247 = vector.load %arg9[%c0_106, %c0_107] : memref<8x64xbf16, #tpu.memory_space<vmem>>, vector<8x64xbf16>
      %cst_108 = arith.constant dense<0.000000e+00> : vector<16x64xf32>
      %248 = tpu.matmul %246, %247, %cst_108 {dimension_numbers = #tpu.dot_dimension_numbers<[1], [0], [0], [1], [0, 0, 1, 1], [], []>} : vector<16x8xbf16>, vector<8x64xbf16>, vector<16x64xf32> -> vector<16x64xf32>
      %249 = arith.addf %245, %248 : vector<16x64xf32>
      %250 = arith.truncf %242 : vector<16x16xf32> to vector<16x16xbf16>
      %c0_109 = arith.constant 0 : index
      %c0_110 = arith.constant 0 : index
      %251 = vector.load %arg10[%c0_109, %c0_110] : memref<16x64xbf16, #tpu.memory_space<vmem>>, vector<16x64xbf16>
      %cst_111 = arith.constant dense<0.000000e+00> : vector<16x64xf32>
      %252 = tpu.matmul %250, %251, %cst_111 {dimension_numbers = #tpu.dot_dimension_numbers<[1], [0], [0], [1], [0, 0, 1, 1], [], []>} : vector<16x16xbf16>, vector<16x64xbf16>, vector<16x64xf32> -> vector<16x64xf32>
      %253 = arith.addf %249, %252 : vector<16x64xf32>
      %c0_112 = arith.constant 0 : index
      %c0_113 = arith.constant 0 : index
      %254 = vector.load %arg11[%c0_112, %c0_113] : memref<1x64xf32, #tpu.memory_space<vmem>>, vector<1x64xf32>
      %255 = vector.broadcast %254 : vector<1x64xf32> to vector<16x64xf32>
      %256 = arith.addf %253, %255 : vector<16x64xf32>
      %c0_114 = arith.constant 0 : index
      %c0_115 = arith.constant 0 : index
      %257 = vector.load %arg29[%c0_114, %c0_115] : memref<16x64xf32, #tpu.memory_space<vmem>>, vector<16x64xf32>
      tpu.vector_store %arg29[%c0_114, %c0_115], %256 {strides = array<i32>} : memref<16x64xf32, #tpu.memory_space<vmem>>, vector<16x64xf32>,
    } else {
    }
    %c0 = arith.constant 0 : index
    %c0_1 = arith.constant 0 : index
    %3 = vector.load %arg29[%c0, %c0_1] : memref<16x64xf32, #tpu.memory_space<vmem>>, vector<16x64xf32>
    %c0_2 = arith.constant 0 : index
    %c0_3 = arith.constant 0 : index
    %c0_4 = arith.constant 0 : index
    %4 = vector.load %arg3[%c0_2, %c0_3, %c0_4] : memref<2x8x8xf32, #tpu.memory_space<vmem>>, vector<2x8x8xf32>
    %c0_5 = arith.constant 0 : index
    %c0_6 = arith.constant 0 : index
    %c0_7 = arith.constant 0 : index
    %5 = vector.load %arg12[%c0_5, %c0_6, %c0_7] : memref<1x1x64xf32, #tpu.memory_space<vmem>>, vector<1x1x64xf32>
    %6 = vector.shape_cast %5 : vector<1x1x64xf32> to vector<1x64xf32>
    %c0_8 = arith.constant 0 : index
    %c0_9 = arith.constant 0 : index
    %c0_10 = arith.constant 0 : index
    %7 = vector.load %arg13[%c0_8, %c0_9, %c0_10] : memref<1x1x64xf32, #tpu.memory_space<vmem>>, vector<1x1x64xf32>
    %8 = vector.shape_cast %7 : vector<1x1x64xf32> to vector<1x64xf32>
    %cst = arith.constant dense<0.000000e+00> : vector<16xf32>
    %9 = vector.multi_reduction <add>, %3, %cst [1] : vector<16x64xf32> to vector<16xf32>
    %10 = vector.shape_cast %9 : vector<16xf32> to vector<16x1xf32>
    %cst_11 = arith.constant 6.400000e+01 : f32
    %11 = vector.broadcast %cst_11 : f32 to vector<16x1xf32>
    %12 = arith.divf %10, %11 : vector<16x1xf32>
    %13 = vector.broadcast %12 : vector<16x1xf32> to vector<16x64xf32>
    %14 = arith.subf %3, %13 : vector<16x64xf32>
    %15 = arith.mulf %14, %14 : vector<16x64xf32>
    %cst_12 = arith.constant dense<0.000000e+00> : vector<16xf32>
    %16 = vector.multi_reduction <add>, %15, %cst_12 [1] : vector<16x64xf32> to vector<16xf32>
    %17 = vector.shape_cast %16 : vector<16xf32> to vector<16x1xf32>
    %cst_13 = arith.constant 6.400000e+01 : f32
    %18 = vector.broadcast %cst_13 : f32 to vector<16x1xf32>
    %19 = arith.divf %17, %18 : vector<16x1xf32>
    %cst_14 = arith.constant 9.99999974E-6 : f32
    %20 = vector.broadcast %cst_14 : f32 to vector<16x1xf32>
    %21 = arith.addf %19, %20 : vector<16x1xf32>
    %22 = math.rsqrt %21 : vector<16x1xf32>
    %23 = vector.broadcast %22 : vector<16x1xf32> to vector<16x64xf32>
    %24 = arith.mulf %14, %23 : vector<16x64xf32>
    %25 = vector.broadcast %6 : vector<1x64xf32> to vector<16x64xf32>
    %26 = arith.mulf %24, %25 : vector<16x64xf32>
    %27 = vector.broadcast %8 : vector<1x64xf32> to vector<16x64xf32>
    %28 = arith.addf %26, %27 : vector<16x64xf32>
    %29 = arith.truncf %28 : vector<16x64xf32> to vector<16x64xbf16>
    %c0_15 = arith.constant 0 : index
    %c0_16 = arith.constant 0 : index
    %c0_17 = arith.constant 0 : index
    %30 = vector.load %arg14[%c0_15, %c0_16, %c0_17] : memref<1x64x64xbf16, #tpu.memory_space<vmem>>, vector<1x64x64xbf16>
    %31 = vector.shape_cast %30 : vector<1x64x64xbf16> to vector<64x64xbf16>
    %cst_18 = arith.constant dense<0.000000e+00> : vector<16x64xf32>
    %32 = tpu.matmul %29, %31, %cst_18 {dimension_numbers = #tpu.dot_dimension_numbers<[1], [0], [0], [1], [0, 0, 1, 1], [], []>} : vector<16x64xbf16>, vector<64x64xbf16>, vector<16x64xf32> -> vector<16x64xf32>
    %33 = vector.shape_cast %32 : vector<16x64xf32> to vector<2x8x64xf32>
    %c0_19 = arith.constant 0 : index
    %c0_20 = arith.constant 0 : index
    %c0_21 = arith.constant 0 : index
    %34 = vector.load %arg15[%c0_19, %c0_20, %c0_21] : memref<1x64x64xbf16, #tpu.memory_space<vmem>>, vector<1x64x64xbf16>
    %35 = vector.shape_cast %34 : vector<1x64x64xbf16> to vector<64x64xbf16>
    %cst_22 = arith.constant dense<0.000000e+00> : vector<16x64xf32>
    %36 = tpu.matmul %29, %35, %cst_22 {dimension_numbers = #tpu.dot_dimension_numbers<[1], [0], [0], [1], [0, 0, 1, 1], [], []>} : vector<16x64xbf16>, vector<64x64xbf16>, vector<16x64xf32> -> vector<16x64xf32>
    %37 = vector.shape_cast %36 : vector<16x64xf32> to vector<2x8x64xf32>
    %c0_23 = arith.constant 0 : index
    %c0_24 = arith.constant 0 : index
    %c0_25 = arith.constant 0 : index
    %38 = vector.load %arg16[%c0_23, %c0_24, %c0_25] : memref<1x64x64xbf16, #tpu.memory_space<vmem>>, vector<1x64x64xbf16>
    %39 = vector.shape_cast %38 : vector<1x64x64xbf16> to vector<64x64xbf16>
    %cst_26 = arith.constant dense<0.000000e+00> : vector<16x64xf32>
    %40 = tpu.matmul %29, %39, %cst_26 {dimension_numbers = #tpu.dot_dimension_numbers<[1], [0], [0], [1], [0, 0, 1, 1], [], []>} : vector<16x64xbf16>, vector<64x64xbf16>, vector<16x64xf32> -> vector<16x64xf32>
    %41 = vector.shape_cast %40 : vector<16x64xf32> to vector<2x8x64xf32>
    %42 = vector.extract_strided_slice %33 {offsets = [0, 0, 0], sizes = [2, 8, 16], strides = [1, 1, 1]} : vector<2x8x64xf32> to vector<2x8x16xf32>
    %43 = arith.truncf %42 : vector<2x8x16xf32> to vector<2x8x16xbf16>
    %44 = vector.extract_strided_slice %37 {offsets = [0, 0, 0], sizes = [2, 8, 16], strides = [1, 1, 1]} : vector<2x8x64xf32> to vector<2x8x16xf32>
    %45 = arith.truncf %44 : vector<2x8x16xf32> to vector<2x8x16xbf16>
    %46 = vector.extract_strided_slice %41 {offsets = [0, 0, 0], sizes = [2, 8, 16], strides = [1, 1, 1]} : vector<2x8x64xf32> to vector<2x8x16xf32>
    %47 = arith.truncf %46 : vector<2x8x16xf32> to vector<2x8x16xbf16>
    "tpu.trace_start"() <{level = 10 : i32, message = "bqd,bkd->bqk"}> : () -> ()
    %cst_27 = arith.constant dense<0.000000e+00> : vector<2x8x8xf32>
    %48 = tpu.matmul %43, %45, %cst_27 {dimension_numbers = #tpu.dot_dimension_numbers<[2], [2], [1], [1], [0, 0, 0, 1, 1, 1], [0], [0]>} : vector<2x8x16xbf16>, vector<2x8x16xbf16>, vector<2x8x8xf32> -> vector<2x8x8xf32>
    "tpu.trace_stop"() : () -> ()
    %49 = arith.addf %48, %4 : vector<2x8x8xf32>
    %cst_28 = arith.constant dense<0xFF800000> : vector<2x8xf32>
    %50 = vector.multi_reduction <maximumf>, %49, %cst_28 [2] : vector<2x8x8xf32> to vector<2x8xf32>
    %51 = vector.shape_cast %50 : vector<2x8xf32> to vector<2x8x1xf32>
    %52 = vector.broadcast %51 : vector<2x8x1xf32> to vector<2x8x8xf32>
    %53 = arith.subf %49, %52 : vector<2x8x8xf32>
    %54 = math.exp %53 : vector<2x8x8xf32>
    %cst_29 = arith.constant dense<0.000000e+00> : vector<2x8xf32>
    %55 = vector.multi_reduction <add>, %54, %cst_29 [2] : vector<2x8x8xf32> to vector<2x8xf32>
    %56 = vector.shape_cast %55 : vector<2x8xf32> to vector<2x8x1xf32>
    %57 = tpu.reciprocal %56 {approx = true} : vector<2x8x1xf32> -> vector<2x8x1xf32>
    %58 = vector.broadcast %57 : vector<2x8x1xf32> to vector<2x8x8xf32>
    %59 = arith.mulf %54, %58 : vector<2x8x8xf32>
    %60 = arith.truncf %59 : vector<2x8x8xf32> to vector<2x8x8xbf16>
    "tpu.trace_start"() <{level = 10 : i32, message = "bqk,bkd->bqd"}> : () -> ()
    %cst_30 = arith.constant dense<0.000000e+00> : vector<2x8x16xf32>
    %61 = tpu.matmul %60, %47, %cst_30 {dimension_numbers = #tpu.dot_dimension_numbers<[2], [1], [1], [2], [0, 0, 0, 1, 1, 2], [0], [0]>} : vector<2x8x8xbf16>, vector<2x8x16xbf16>, vector<2x8x16xf32> -> vector<2x8x16xf32>
    "tpu.trace_stop"() : () -> ()
    %62 = vector.shape_cast %61 : vector<2x8x16xf32> to vector<16x16xf32>
    %63 = vector.extract_strided_slice %33 {offsets = [0, 0, 16], sizes = [2, 8, 16], strides = [1, 1, 1]} : vector<2x8x64xf32> to vector<2x8x16xf32>
    %64 = arith.truncf %63 : vector<2x8x16xf32> to vector<2x8x16xbf16>
    %65 = vector.extract_strided_slice %37 {offsets = [0, 0, 16], sizes = [2, 8, 16], strides = [1, 1, 1]} : vector<2x8x64xf32> to vector<2x8x16xf32>
    %66 = arith.truncf %65 : vector<2x8x16xf32> to vector<2x8x16xbf16>
    %67 = vector.extract_strided_slice %41 {offsets = [0, 0, 16], sizes = [2, 8, 16], strides = [1, 1, 1]} : vector<2x8x64xf32> to vector<2x8x16xf32>
    %68 = arith.truncf %67 : vector<2x8x16xf32> to vector<2x8x16xbf16>
    "tpu.trace_start"() <{level = 10 : i32, message = "bqd,bkd->bqk"}> : () -> ()
    %cst_31 = arith.constant dense<0.000000e+00> : vector<2x8x8xf32>
    %69 = tpu.matmul %64, %66, %cst_31 {dimension_numbers = #tpu.dot_dimension_numbers<[2], [2], [1], [1], [0, 0, 0, 1, 1, 1], [0], [0]>} : vector<2x8x16xbf16>, vector<2x8x16xbf16>, vector<2x8x8xf32> -> vector<2x8x8xf32>
    "tpu.trace_stop"() : () -> ()
    %70 = arith.addf %69, %4 : vector<2x8x8xf32>
    %cst_32 = arith.constant dense<0xFF800000> : vector<2x8xf32>
    %71 = vector.multi_reduction <maximumf>, %70, %cst_32 [2] : vector<2x8x8xf32> to vector<2x8xf32>
    %72 = vector.shape_cast %71 : vector<2x8xf32> to vector<2x8x1xf32>
    %73 = vector.broadcast %72 : vector<2x8x1xf32> to vector<2x8x8xf32>
    %74 = arith.subf %70, %73 : vector<2x8x8xf32>
    %75 = math.exp %74 : vector<2x8x8xf32>
    %cst_33 = arith.constant dense<0.000000e+00> : vector<2x8xf32>
    %76 = vector.multi_reduction <add>, %75, %cst_33 [2] : vector<2x8x8xf32> to vector<2x8xf32>
    %77 = vector.shape_cast %76 : vector<2x8xf32> to vector<2x8x1xf32>
    %78 = tpu.reciprocal %77 {approx = true} : vector<2x8x1xf32> -> vector<2x8x1xf32>
    %79 = vector.broadcast %78 : vector<2x8x1xf32> to vector<2x8x8xf32>
    %80 = arith.mulf %75, %79 : vector<2x8x8xf32>
    %81 = arith.truncf %80 : vector<2x8x8xf32> to vector<2x8x8xbf16>
    "tpu.trace_start"() <{level = 10 : i32, message = "bqk,bkd->bqd"}> : () -> ()
    %cst_34 = arith.constant dense<0.000000e+00> : vector<2x8x16xf32>
    %82 = tpu.matmul %81, %68, %cst_34 {dimension_numbers = #tpu.dot_dimension_numbers<[2], [1], [1], [2], [0, 0, 0, 1, 1, 2], [0], [0]>} : vector<2x8x8xbf16>, vector<2x8x16xbf16>, vector<2x8x16xf32> -> vector<2x8x16xf32>
    "tpu.trace_stop"() : () -> ()
    %83 = vector.shape_cast %82 : vector<2x8x16xf32> to vector<16x16xf32>
    %84 = vector.extract_strided_slice %33 {offsets = [0, 0, 32], sizes = [2, 8, 16], strides = [1, 1, 1]} : vector<2x8x64xf32> to vector<2x8x16xf32>
    %85 = arith.truncf %84 : vector<2x8x16xf32> to vector<2x8x16xbf16>
    %86 = vector.extract_strided_slice %37 {offsets = [0, 0, 32], sizes = [2, 8, 16], strides = [1, 1, 1]} : vector<2x8x64xf32> to vector<2x8x16xf32>
    %87 = arith.truncf %86 : vector<2x8x16xf32> to vector<2x8x16xbf16>
    %88 = vector.extract_strided_slice %41 {offsets = [0, 0, 32], sizes = [2, 8, 16], strides = [1, 1, 1]} : vector<2x8x64xf32> to vector<2x8x16xf32>
    %89 = arith.truncf %88 : vector<2x8x16xf32> to vector<2x8x16xbf16>
    "tpu.trace_start"() <{level = 10 : i32, message = "bqd,bkd->bqk"}> : () -> ()
    %cst_35 = arith.constant dense<0.000000e+00> : vector<2x8x8xf32>
    %90 = tpu.matmul %85, %87, %cst_35 {dimension_numbers = #tpu.dot_dimension_numbers<[2], [2], [1], [1], [0, 0, 0, 1, 1, 1], [0], [0]>} : vector<2x8x16xbf16>, vector<2x8x16xbf16>, vector<2x8x8xf32> -> vector<2x8x8xf32>
    "tpu.trace_stop"() : () -> ()
    %91 = arith.addf %90, %4 : vector<2x8x8xf32>
    %cst_36 = arith.constant dense<0xFF800000> : vector<2x8xf32>
    %92 = vector.multi_reduction <maximumf>, %91, %cst_36 [2] : vector<2x8x8xf32> to vector<2x8xf32>
    %93 = vector.shape_cast %92 : vector<2x8xf32> to vector<2x8x1xf32>
    %94 = vector.broadcast %93 : vector<2x8x1xf32> to vector<2x8x8xf32>
    %95 = arith.subf %91, %94 : vector<2x8x8xf32>
    %96 = math.exp %95 : vector<2x8x8xf32>
    %cst_37 = arith.constant dense<0.000000e+00> : vector<2x8xf32>
    %97 = vector.multi_reduction <add>, %96, %cst_37 [2] : vector<2x8x8xf32> to vector<2x8xf32>
    %98 = vector.shape_cast %97 : vector<2x8xf32> to vector<2x8x1xf32>
    %99 = tpu.reciprocal %98 {approx = true} : vector<2x8x1xf32> -> vector<2x8x1xf32>
    %100 = vector.broadcast %99 : vector<2x8x1xf32> to vector<2x8x8xf32>
    %101 = arith.mulf %96, %100 : vector<2x8x8xf32>
    %102 = arith.truncf %101 : vector<2x8x8xf32> to vector<2x8x8xbf16>
    "tpu.trace_start"() <{level = 10 : i32, message = "bqk,bkd->bqd"}> : () -> ()
    %cst_38 = arith.constant dense<0.000000e+00> : vector<2x8x16xf32>
    %103 = tpu.matmul %102, %89, %cst_38 {dimension_numbers = #tpu.dot_dimension_numbers<[2], [1], [1], [2], [0, 0, 0, 1, 1, 2], [0], [0]>} : vector<2x8x8xbf16>, vector<2x8x16xbf16>, vector<2x8x16xf32> -> vector<2x8x16xf32>
    "tpu.trace_stop"() : () -> ()
    %104 = vector.shape_cast %103 : vector<2x8x16xf32> to vector<16x16xf32>
    %105 = vector.extract_strided_slice %33 {offsets = [0, 0, 48], sizes = [2, 8, 16], strides = [1, 1, 1]} : vector<2x8x64xf32> to vector<2x8x16xf32>
    %106 = arith.truncf %105 : vector<2x8x16xf32> to vector<2x8x16xbf16>
    %107 = vector.extract_strided_slice %37 {offsets = [0, 0, 48], sizes = [2, 8, 16], strides = [1, 1, 1]} : vector<2x8x64xf32> to vector<2x8x16xf32>
    %108 = arith.truncf %107 : vector<2x8x16xf32> to vector<2x8x16xbf16>
    %109 = vector.extract_strided_slice %41 {offsets = [0, 0, 48], sizes = [2, 8, 16], strides = [1, 1, 1]} : vector<2x8x64xf32> to vector<2x8x16xf32>
    %110 = arith.truncf %109 : vector<2x8x16xf32> to vector<2x8x16xbf16>
    "tpu.trace_start"() <{level = 10 : i32, message = "bqd,bkd->bqk"}> : () -> ()
    %cst_39 = arith.constant dense<0.000000e+00> : vector<2x8x8xf32>
    %111 = tpu.matmul %106, %108, %cst_39 {dimension_numbers = #tpu.dot_dimension_numbers<[2], [2], [1], [1], [0, 0, 0, 1, 1, 1], [0], [0]>} : vector<2x8x16xbf16>, vector<2x8x16xbf16>, vector<2x8x8xf32> -> vector<2x8x8xf32>
    "tpu.trace_stop"() : () -> ()
    %112 = arith.addf %111, %4 : vector<2x8x8xf32>
    %cst_40 = arith.constant dense<0xFF800000> : vector<2x8xf32>
    %113 = vector.multi_reduction <maximumf>, %112, %cst_40 [2] : vector<2x8x8xf32> to vector<2x8xf32>
    %114 = vector.shape_cast %113 : vector<2x8xf32> to vector<2x8x1xf32>
    %115 = vector.broadcast %114 : vector<2x8x1xf32> to vector<2x8x8xf32>
    %116 = arith.subf %112, %115 : vector<2x8x8xf32>
    %117 = math.exp %116 : vector<2x8x8xf32>
    %cst_41 = arith.constant dense<0.000000e+00> : vector<2x8xf32>
    %118 = vector.multi_reduction <add>, %117, %cst_41 [2] : vector<2x8x8xf32> to vector<2x8xf32>
    %119 = vector.shape_cast %118 : vector<2x8xf32> to vector<2x8x1xf32>
    %120 = tpu.reciprocal %119 {approx = true} : vector<2x8x1xf32> -> vector<2x8x1xf32>
    %121 = vector.broadcast %120 : vector<2x8x1xf32> to vector<2x8x8xf32>
    %122 = arith.mulf %117, %121 : vector<2x8x8xf32>
    %123 = arith.truncf %122 : vector<2x8x8xf32> to vector<2x8x8xbf16>
    "tpu.trace_start"() <{level = 10 : i32, message = "bqk,bkd->bqd"}> : () -> ()
    %cst_42 = arith.constant dense<0.000000e+00> : vector<2x8x16xf32>
    %124 = tpu.matmul %123, %110, %cst_42 {dimension_numbers = #tpu.dot_dimension_numbers<[2], [1], [1], [2], [0, 0, 0, 1, 1, 2], [0], [0]>} : vector<2x8x8xbf16>, vector<2x8x16xbf16>, vector<2x8x16xf32> -> vector<2x8x16xf32>
    "tpu.trace_stop"() : () -> ()
    %125 = vector.shape_cast %124 : vector<2x8x16xf32> to vector<16x16xf32>
    %126 = tpu.concatenate %62, %83, %104, %125 in 1 : vector<16x16xf32>, vector<16x16xf32>, vector<16x16xf32>, vector<16x16xf32> -> vector<16x64xf32>
    %127 = arith.truncf %126 : vector<16x64xf32> to vector<16x64xbf16>
    %c0_43 = arith.constant 0 : index
    %c0_44 = arith.constant 0 : index
    %c0_45 = arith.constant 0 : index
    %128 = vector.load %arg17[%c0_43, %c0_44, %c0_45] : memref<1x64x64xbf16, #tpu.memory_space<vmem>>, vector<1x64x64xbf16>
    %129 = vector.shape_cast %128 : vector<1x64x64xbf16> to vector<64x64xbf16>
    %cst_46 = arith.constant dense<0.000000e+00> : vector<16x64xf32>
    %130 = tpu.matmul %127, %129, %cst_46 {dimension_numbers = #tpu.dot_dimension_numbers<[1], [0], [0], [1], [0, 0, 1, 1], [], []>} : vector<16x64xbf16>, vector<64x64xbf16>, vector<16x64xf32> -> vector<16x64xf32>
    %131 = arith.addf %3, %130 : vector<16x64xf32>
    %c0_47 = arith.constant 0 : index
    %c0_48 = arith.constant 0 : index
    %c0_49 = arith.constant 0 : index
    %132 = vector.load %arg18[%c0_47, %c0_48, %c0_49] : memref<1x1x64xf32, #tpu.memory_space<vmem>>, vector<1x1x64xf32>
    %133 = vector.shape_cast %132 : vector<1x1x64xf32> to vector<1x64xf32>
    %134 = vector.broadcast %133 : vector<1x64xf32> to vector<16x64xf32>
    %135 = arith.addf %131, %134 : vector<16x64xf32>
    %c0_50 = arith.constant 0 : index
    %c0_51 = arith.constant 0 : index
    %c0_52 = arith.constant 0 : index
    %136 = vector.load %arg19[%c0_50, %c0_51, %c0_52] : memref<1x1x64xf32, #tpu.memory_space<vmem>>, vector<1x1x64xf32>
    %137 = vector.shape_cast %136 : vector<1x1x64xf32> to vector<1x64xf32>
    %c0_53 = arith.constant 0 : index
    %c0_54 = arith.constant 0 : index
    %c0_55 = arith.constant 0 : index
    %138 = vector.load %arg20[%c0_53, %c0_54, %c0_55] : memref<1x1x64xf32, #tpu.memory_space<vmem>>, vector<1x1x64xf32>
    %139 = vector.shape_cast %138 : vector<1x1x64xf32> to vector<1x64xf32>
    %cst_56 = arith.constant dense<0.000000e+00> : vector<16xf32>
    %140 = vector.multi_reduction <add>, %135, %cst_56 [1] : vector<16x64xf32> to vector<16xf32>
    %141 = vector.shape_cast %140 : vector<16xf32> to vector<16x1xf32>
    %cst_57 = arith.constant 6.400000e+01 : f32
    %142 = vector.broadcast %cst_57 : f32 to vector<16x1xf32>
    %143 = arith.divf %141, %142 : vector<16x1xf32>
    %144 = vector.broadcast %143 : vector<16x1xf32> to vector<16x64xf32>
    %145 = arith.subf %135, %144 : vector<16x64xf32>
    %146 = arith.mulf %145, %145 : vector<16x64xf32>
    %cst_58 = arith.constant dense<0.000000e+00> : vector<16xf32>
    %147 = vector.multi_reduction <add>, %146, %cst_58 [1] : vector<16x64xf32> to vector<16xf32>
    %148 = vector.shape_cast %147 : vector<16xf32> to vector<16x1xf32>
    %cst_59 = arith.constant 6.400000e+01 : f32
    %149 = vector.broadcast %cst_59 : f32 to vector<16x1xf32>
    %150 = arith.divf %148, %149 : vector<16x1xf32>
    %cst_60 = arith.constant 9.99999974E-6 : f32
    %151 = vector.broadcast %cst_60 : f32 to vector<16x1xf32>
    %152 = arith.addf %150, %151 : vector<16x1xf32>
    %153 = math.rsqrt %152 : vector<16x1xf32>
    %154 = vector.broadcast %153 : vector<16x1xf32> to vector<16x64xf32>
    %155 = arith.mulf %145, %154 : vector<16x64xf32>
    %156 = vector.broadcast %137 : vector<1x64xf32> to vector<16x64xf32>
    %157 = arith.mulf %155, %156 : vector<16x64xf32>
    %158 = vector.broadcast %139 : vector<1x64xf32> to vector<16x64xf32>
    %159 = arith.addf %157, %158 : vector<16x64xf32>
    %160 = arith.truncf %159 : vector<16x64xf32> to vector<16x64xbf16>
    %c0_61 = arith.constant 0 : index
    %c0_62 = arith.constant 0 : index
    %c0_63 = arith.constant 0 : index
    %161 = vector.load %arg21[%c0_61, %c0_62, %c0_63] : memref<1x64x256xbf16, #tpu.memory_space<vmem>>, vector<1x64x256xbf16>
    %162 = vector.shape_cast %161 : vector<1x64x256xbf16> to vector<64x256xbf16>
    %cst_64 = arith.constant dense<0.000000e+00> : vector<16x256xf32>
    %163 = tpu.matmul %160, %162, %cst_64 {dimension_numbers = #tpu.dot_dimension_numbers<[1], [0], [0], [1], [0, 0, 1, 1], [], []>} : vector<16x64xbf16>, vector<64x256xbf16>, vector<16x256xf32> -> vector<16x256xf32>
    %c0_65 = arith.constant 0 : index
    %c0_66 = arith.constant 0 : index
    %c0_67 = arith.constant 0 : index
    %164 = vector.load %arg22[%c0_65, %c0_66, %c0_67] : memref<1x1x256xf32, #tpu.memory_space<vmem>>, vector<1x1x256xf32>
    %165 = vector.shape_cast %164 : vector<1x1x256xf32> to vector<1x256xf32>
    %166 = vector.broadcast %165 : vector<1x256xf32> to vector<16x256xf32>
    %167 = arith.addf %163, %166 : vector<16x256xf32>
    %168 = arith.mulf %167, %167 : vector<16x256xf32>
    %169 = arith.mulf %167, %168 : vector<16x256xf32>
    %cst_68 = arith.constant 4.471500e-02 : f32
    %170 = vector.broadcast %cst_68 : f32 to vector<16x256xf32>
    %171 = arith.mulf %170, %169 : vector<16x256xf32>
    %172 = arith.addf %167, %171 : vector<16x256xf32>
    %cst_69 = arith.constant 0.797884583 : f32
    %173 = vector.broadcast %cst_69 : f32 to vector<16x256xf32>
    %174 = arith.mulf %173, %172 : vector<16x256xf32>
    %175 = math.tanh %174 : vector<16x256xf32>
    %cst_70 = arith.constant 1.000000e+00 : f32
    %176 = vector.broadcast %cst_70 : f32 to vector<16x256xf32>
    %177 = arith.addf %176, %175 : vector<16x256xf32>
    %cst_71 = arith.constant 5.000000e-01 : f32
    %178 = vector.broadcast %cst_71 : f32 to vector<16x256xf32>
    %179 = arith.mulf %178, %177 : vector<16x256xf32>
    %180 = arith.mulf %167, %179 : vector<16x256xf32>
    %181 = arith.truncf %180 : vector<16x256xf32> to vector<16x256xbf16>
    %c0_72 = arith.constant 0 : index
    %c0_73 = arith.constant 0 : index
    %c0_74 = arith.constant 0 : index
    %182 = vector.load %arg23[%c0_72, %c0_73, %c0_74] : memref<1x256x64xbf16, #tpu.memory_space<vmem>>, vector<1x256x64xbf16>
    %183 = vector.shape_cast %182 : vector<1x256x64xbf16> to vector<256x64xbf16>
    %cst_75 = arith.constant dense<0.000000e+00> : vector<16x64xf32>
    %184 = tpu.matmul %181, %183, %cst_75 {dimension_numbers = #tpu.dot_dimension_numbers<[1], [0], [0], [1], [0, 0, 1, 1], [], []>} : vector<16x256xbf16>, vector<256x64xbf16>, vector<16x64xf32> -> vector<16x64xf32>
    %c0_76 = arith.constant 0 : index
    %c0_77 = arith.constant 0 : index
    %c0_78 = arith.constant 0 : index
    %185 = vector.load %arg24[%c0_76, %c0_77, %c0_78] : memref<1x1x64xf32, #tpu.memory_space<vmem>>, vector<1x1x64xf32>
    %186 = vector.shape_cast %185 : vector<1x1x64xf32> to vector<1x64xf32>
    %187 = vector.broadcast %186 : vector<1x64xf32> to vector<16x64xf32>
    %188 = arith.addf %184, %187 : vector<16x64xf32>
    %189 = arith.addf %135, %188 : vector<16x64xf32>
    %c0_79 = arith.constant 0 : index
    %c0_80 = arith.constant 0 : index
    %190 = vector.load %arg29[%c0_79, %c0_80] : memref<16x64xf32, #tpu.memory_space<vmem>>, vector<16x64xf32>
    tpu.vector_store %arg29[%c0_79, %c0_80], %189 {strides = array<i32>} : memref<16x64xf32, #tpu.memory_space<vmem>>, vector<16x64xf32>,
    %c1_i32 = arith.constant 1 : i32
    %191 = arith.cmpi eq, %arg1, %c1_i32 : i32
    %192 = arith.extui %191 : i1 to i32
    %c0_i32_81 = arith.constant 0 : i32
    %193 = arith.cmpi ne, %192, %c0_i32_81 : i32
    scf.if %193 {
      %194 = arith.mulf %189, %189 : vector<16x64xf32>
      %cst_82 = arith.constant dense<0.000000e+00> : vector<16xf32>
      %195 = vector.multi_reduction <add>, %194, %cst_82 [1] : vector<16x64xf32> to vector<16xf32>
      %196 = vector.shape_cast %195 : vector<16xf32> to vector<16x1xf32>
      %cst_83 = arith.constant 1.000000e-24 : f32
      %197 = vector.broadcast %cst_83 : f32 to vector<16x1xf32>
      %198 = arith.maximumf %196, %197 : vector<16x1xf32>
      %199 = math.rsqrt %198 : vector<16x1xf32>
      %200 = vector.broadcast %199 : vector<16x1xf32> to vector<16x64xf32>
      %201 = arith.mulf %189, %200 : vector<16x64xf32>
      %202 = vector.shape_cast %201 : vector<16x64xf32> to vector<2x8x64xf32>
      %c0_84 = arith.constant 0 : index
      %c0_85 = arith.constant 0 : index
      %c0_86 = arith.constant 0 : index
      %203 = vector.load %arg27[%c0_84, %c0_85, %c0_86] : memref<2x8x64xf32, #tpu.memory_space<vmem>>, vector<2x8x64xf32>
      tpu.vector_store %arg27[%c0_84, %c0_85, %c0_86], %202 {strides = array<i32>} : memref<2x8x64xf32, #tpu.memory_space<vmem>>, vector<2x8x64xf32>,
      %204 = vector.extract_strided_slice %202 {offsets = [0, 0, 0], sizes = [2, 1, 64], strides = [1, 1, 1]} : vector<2x8x64xf32> to vector<2x1x64xf32>
      %205 = vector.broadcast %204 : vector<2x1x64xf32> to vector<2x8x64xf32>
      %206 = arith.mulf %205, %202 : vector<2x8x64xf32>
      %cst_87 = arith.constant dense<0.000000e+00> : vector<2x8xf32>
      %207 = vector.multi_reduction <add>, %206, %cst_87 [2] : vector<2x8x64xf32> to vector<2x8xf32>
      %208 = vector.shape_cast %207 : vector<2x8xf32> to vector<2x8x1xf32>
      %cst_88 = arith.constant 5.000000e-01 : f32
      %209 = vector.broadcast %cst_88 : f32 to vector<2x8x1xf32>
      %210 = arith.mulf %208, %209 : vector<2x8x1xf32>
      %211 = math.exp %210 : vector<2x8x1xf32>
      %c0_89 = arith.constant 0 : index
      %c0_90 = arith.constant 0 : index
      %c0_91 = arith.constant 0 : index
      %212 = vector.load %arg2[%c0_89, %c0_90, %c0_91] : memref<2x8x32xf32, #tpu.memory_space<vmem>>, vector<2x8x32xf32>
      %213 = vector.extract_strided_slice %212 {offsets = [0, 0, 0], sizes = [2, 8, 1], strides = [1, 1, 1]} : vector<2x8x32xf32> to vector<2x8x1xf32>
      %cst_92 = arith.constant dense<0x7F800000> : vector<2x1xf32>
      %214 = vector.multi_reduction <minimumf>, %213, %cst_92 [1] : vector<2x8x1xf32> to vector<2x1xf32>
      %215 = vector.shape_cast %214 : vector<2x1xf32> to vector<2x1x1xf32>
      %216 = vector.broadcast %215 : vector<2x1x1xf32> to vector<2x8x1xf32>
      %217 = arith.subf %216, %208 : vector<2x8x1xf32>
      %cst_93 = arith.constant 0.000000e+00 : f32
      %218 = vector.broadcast %cst_93 : f32 to vector<2x8x1xf32>
      %219 = arith.maximumf %217, %218 : vector<2x8x1xf32>
      %220 = arith.truncf %189 : vector<16x64xf32> to vector<16x64xbf16>
      %c0_94 = arith.constant 0 : index
      %c0_95 = arith.constant 0 : index
      %221 = vector.load %arg25[%c0_94, %c0_95] : memref<64x32xbf16, #tpu.memory_space<vmem>>, vector<64x32xbf16>
      %cst_96 = arith.constant dense<0.000000e+00> : vector<16x32xf32>
      %222 = tpu.matmul %220, %221, %cst_96 {dimension_numbers = #tpu.dot_dimension_numbers<[1], [0], [0], [1], [0, 0, 1, 1], [], []>} : vector<16x64xbf16>, vector<64x32xbf16>, vector<16x32xf32> -> vector<16x32xf32>
      %c0_97 = arith.constant 0 : index
      %c0_98 = arith.constant 0 : index
      %223 = vector.load %arg26[%c0_97, %c0_98] : memref<1x32xf32, #tpu.memory_space<vmem>>, vector<1x32xf32>
      %224 = vector.broadcast %223 : vector<1x32xf32> to vector<16x32xf32>
      %225 = arith.addf %222, %224 : vector<16x32xf32>
      %226 = vector.shape_cast %212 : vector<2x8x32xf32> to vector<16x32xf32>
      %227 = arith.mulf %226, %226 : vector<16x32xf32>
      %cst_99 = arith.constant dense<0.000000e+00> : vector<16xf32>
      %228 = vector.multi_reduction <add>, %227, %cst_99 [1] : vector<16x32xf32> to vector<16xf32>
      %229 = vector.shape_cast %228 : vector<16xf32> to vector<16x1xf32>
      %cst_100 = arith.constant 1.000000e-24 : f32
      %230 = vector.broadcast %cst_100 : f32 to vector<16x1xf32>
      %231 = arith.maximumf %229, %230 : vector<16x1xf32>
      %232 = math.rsqrt %231 : vector<16x1xf32>
      %233 = vector.broadcast %232 : vector<16x1xf32> to vector<16x32xf32>
      %234 = arith.mulf %226, %233 : vector<16x32xf32>
      %235 = arith.mulf %225, %225 : vector<16x32xf32>
      %cst_101 = arith.constant dense<0.000000e+00> : vector<16xf32>
      %236 = vector.multi_reduction <add>, %235, %cst_101 [1] : vector<16x32xf32> to vector<16xf32>
      %237 = vector.shape_cast %236 : vector<16xf32> to vector<16x1xf32>
      %cst_102 = arith.constant 1.000000e-24 : f32
      %238 = vector.broadcast %cst_102 : f32 to vector<16x1xf32>
      %239 = arith.maximumf %237, %238 : vector<16x1xf32>
      %240 = math.rsqrt %239 : vector<16x1xf32>
      %241 = vector.broadcast %240 : vector<16x1xf32> to vector<16x32xf32>
      %242 = arith.mulf %225, %241 : vector<16x32xf32>
      %243 = arith.subf %234, %242 : vector<16x32xf32>
      %244 = arith.mulf %243, %243 : vector<16x32xf32>
      %cst_103 = arith.constant dense<0.000000e+00> : vector<16xf32>
      %245 = vector.multi_reduction <add>, %244, %cst_103 [1] : vector<16x32xf32> to vector<16xf32>
      %246 = vector.shape_cast %245 : vector<16xf32> to vector<16x1xf32>
      %cst_104 = arith.constant 9.99999974E-5 : f32
      %cst_105 = arith.constant 1.000000e+04 : f32
      %247 = vector.broadcast %cst_104 : f32 to vector<16x1xf32>
      %248 = arith.maximumf %247, %246 : vector<16x1xf32>
      %249 = vector.broadcast %cst_105 : f32 to vector<16x1xf32>
      %250 = arith.minimumf %249, %248 : vector<16x1xf32>
      %251 = math.sqrt %250 : vector<16x1xf32>
      %252 = vector.shape_cast %251 : vector<16x1xf32> to vector<2x8x1xf32>
      %253 = tpu.iota {dimensions = array<i32: 2>} : vector<2x8x128xi32>
      %c0_i32_106 = arith.constant 0 : i32
      %254 = vector.broadcast %c0_i32_106 : i32 to vector<2x8x128xi32>
      %255 = arith.cmpi eq, %253, %254 : vector<2x8x128xi32>
      %cst_107 = arith.constant 0.000000e+00 : f32
      %256 = vector.shape_cast %208 : vector<2x8x1xf32> to vector<2x8x1xf32>
      %257 = vector.broadcast %256 : vector<2x8x1xf32> to vector<2x8x128xf32>
      %258 = vector.broadcast %cst_107 : f32 to vector<2x8x128xf32>
      %259 = arith.select %255, %257, %258 : vector<2x8x128xi1>, vector<2x8x128xf32>
      %c1_i32_108 = arith.constant 1 : i32
      %260 = vector.broadcast %c1_i32_108 : i32 to vector<2x8x128xi32>
      %261 = arith.cmpi eq, %253, %260 : vector<2x8x128xi32>
      %cst_109 = arith.constant 0.000000e+00 : f32
      %262 = vector.shape_cast %211 : vector<2x8x1xf32> to vector<2x8x1xf32>
      %263 = vector.broadcast %262 : vector<2x8x1xf32> to vector<2x8x128xf32>
      %264 = vector.broadcast %cst_109 : f32 to vector<2x8x128xf32>
      %265 = arith.select %261, %263, %264 : vector<2x8x128xi1>, vector<2x8x128xf32>
      %266 = arith.addf %259, %265 : vector<2x8x128xf32>
      %c2_i32 = arith.constant 2 : i32
      %267 = vector.broadcast %c2_i32 : i32 to vector<2x8x128xi32>
      %268 = arith.cmpi eq, %253, %267 : vector<2x8x128xi32>
      %cst_110 = arith.constant 0.000000e+00 : f32
      %269 = vector.shape_cast %219 : vector<2x8x1xf32> to vector<2x8x1xf32>
      %270 = vector.broadcast %269 : vector<2x8x1xf32> to vector<2x8x128xf32>
      %271 = vector.broadcast %cst_110 : f32 to vector<2x8x128xf32>
      %272 = arith.select %268, %270, %271 : vector<2x8x128xi1>, vector<2x8x128xf32>
      %273 = arith.addf %266, %272 : vector<2x8x128xf32>
      %c3_i32 = arith.constant 3 : i32
      %274 = vector.broadcast %c3_i32 : i32 to vector<2x8x128xi32>
      %275 = arith.cmpi eq, %253, %274 : vector<2x8x128xi32>
      %cst_111 = arith.constant 0.000000e+00 : f32
      %276 = vector.shape_cast %252 : vector<2x8x1xf32> to vector<2x8x1xf32>
      %277 = vector.broadcast %276 : vector<2x8x1xf32> to vector<2x8x128xf32>
      %278 = vector.broadcast %cst_111 : f32 to vector<2x8x128xf32>
      %279 = arith.select %275, %277, %278 : vector<2x8x128xi1>, vector<2x8x128xf32>
      %280 = arith.addf %273, %279 : vector<2x8x128xf32>
      %c0_112 = arith.constant 0 : index
      %c0_113 = arith.constant 0 : index
      %c0_114 = arith.constant 0 : index
      %281 = vector.load %arg28[%c0_112, %c0_113, %c0_114] : memref<2x8x128xf32, #tpu.memory_space<vmem>>, vector<2x8x128xf32>
      tpu.vector_store %arg28[%c0_112, %c0_113, %c0_114], %280 {strides = array<i32>} : memref<2x8x128xf32, #tpu.memory_space<vmem>>, vector<2x8x128xf32>,
    } else {
    }
    return
  }
  func.func @transform_0(%arg0: i32, %arg1: i32) -> (i32, i32, i32) {
    %c0_i32 = arith.constant 0 : i32
    %c0_i32_0 = arith.constant 0 : i32
    %c0_i32_1 = arith.constant 0 : i32
    return %arg0, %c0_i32, %c0_i32_0 : i32, i32, i32
  }
  func.func @transform_1(%arg0: i32, %arg1: i32) -> (i32, i32, i32) {
    %c0_i32 = arith.constant 0 : i32
    %c0_i32_0 = arith.constant 0 : i32
    %c0_i32_1 = arith.constant 0 : i32
    return %arg0, %c0_i32, %c0_i32_0 : i32, i32, i32
  }
  func.func @transform_2(%arg0: i32, %arg1: i32) -> (i32, i32) {
    %c0_i32 = arith.constant 0 : i32
    %c0_i32_0 = arith.constant 0 : i32
    %c0_i32_1 = arith.constant 0 : i32
    return %c0_i32, %c0_i32_0 : i32, i32
  }
  func.func @transform_3(%arg0: i32, %arg1: i32) -> (i32, i32) {
    %c0_i32 = arith.constant 0 : i32
    %c0_i32_0 = arith.constant 0 : i32
    %c0_i32_1 = arith.constant 0 : i32
    return %c0_i32, %c0_i32_0 : i32, i32
  }
  func.func @transform_4(%arg0: i32, %arg1: i32) -> (i32, i32) {
    %c0_i32 = arith.constant 0 : i32
    %c0_i32_0 = arith.constant 0 : i32
    %c0_i32_1 = arith.constant 0 : i32
    return %c0_i32, %c0_i32_0 : i32, i32
  }
  func.func @transform_5(%arg0: i32, %arg1: i32) -> (i32, i32) {
    %c0_i32 = arith.constant 0 : i32
    %c0_i32_0 = arith.constant 0 : i32
    %c0_i32_1 = arith.constant 0 : i32
    return %c0_i32, %c0_i32_0 : i32, i32
  }
  func.func @transform_6(%arg0: i32, %arg1: i32) -> (i32, i32) {
    %c0_i32 = arith.constant 0 : i32
    %c0_i32_0 = arith.constant 0 : i32
    %c0_i32_1 = arith.constant 0 : i32
    return %c0_i32, %c0_i32_0 : i32, i32
  }
  func.func @transform_7(%arg0: i32, %arg1: i32) -> (i32, i32) {
    %c0_i32 = arith.constant 0 : i32
    %c0_i32_0 = arith.constant 0 : i32
    %c0_i32_1 = arith.constant 0 : i32
    return %c0_i32, %c0_i32_0 : i32, i32
  }
  func.func @transform_8(%arg0: i32, %arg1: i32) -> (i32, i32) {
    %c0_i32 = arith.constant 0 : i32
    %c0_i32_0 = arith.constant 0 : i32
    %c0_i32_1 = arith.constant 0 : i32
    return %c0_i32, %c0_i32_0 : i32, i32
  }
  func.func @transform_9(%arg0: i32, %arg1: i32) -> (i32, i32) {
    %c0_i32 = arith.constant 0 : i32
    %c0_i32_0 = arith.constant 0 : i32
    %c0_i32_1 = arith.constant 0 : i32
    return %c0_i32, %c0_i32_0 : i32, i32
  }
  func.func @transform_10(%arg0: i32, %arg1: i32) -> (i32, i32, i32) {
    %c0_i32 = arith.constant 0 : i32
    %c0_i32_0 = arith.constant 0 : i32
    %c0_i32_1 = arith.constant 0 : i32
    return %arg1, %c0_i32, %c0_i32_0 : i32, i32, i32
  }
  func.func @transform_11(%arg0: i32, %arg1: i32) -> (i32, i32, i32) {
    %c0_i32 = arith.constant 0 : i32
    %c0_i32_0 = arith.constant 0 : i32
    %c0_i32_1 = arith.constant 0 : i32
    return %arg1, %c0_i32, %c0_i32_0 : i32, i32, i32
  }
  func.func @transform_12(%arg0: i32, %arg1: i32) -> (i32, i32, i32) {
    %c0_i32 = arith.constant 0 : i32
    %c0_i32_0 = arith.constant 0 : i32
    %c0_i32_1 = arith.constant 0 : i32
    return %arg1, %c0_i32, %c0_i32_0 : i32, i32, i32
  }
  func.func @transform_13(%arg0: i32, %arg1: i32) -> (i32, i32, i32) {
    %c0_i32 = arith.constant 0 : i32
    %c0_i32_0 = arith.constant 0 : i32
    %c0_i32_1 = arith.constant 0 : i32
    return %arg1, %c0_i32, %c0_i32_0 : i32, i32, i32
  }
  func.func @transform_14(%arg0: i32, %arg1: i32) -> (i32, i32, i32) {
    %c0_i32 = arith.constant 0 : i32
    %c0_i32_0 = arith.constant 0 : i32
    %c0_i32_1 = arith.constant 0 : i32
    return %arg1, %c0_i32, %c0_i32_0 : i32, i32, i32
  }
  func.func @transform_15(%arg0: i32, %arg1: i32) -> (i32, i32, i32) {
    %c0_i32 = arith.constant 0 : i32
    %c0_i32_0 = arith.constant 0 : i32
    %c0_i32_1 = arith.constant 0 : i32
    return %arg1, %c0_i32, %c0_i32_0 : i32, i32, i32
  }
  func.func @transform_16(%arg0: i32, %arg1: i32) -> (i32, i32, i32) {
    %c0_i32 = arith.constant 0 : i32
    %c0_i32_0 = arith.constant 0 : i32
    %c0_i32_1 = arith.constant 0 : i32
    return %arg1, %c0_i32, %c0_i32_0 : i32, i32, i32
  }
  func.func @transform_17(%arg0: i32, %arg1: i32) -> (i32, i32, i32) {
    %c0_i32 = arith.constant 0 : i32
    %c0_i32_0 = arith.constant 0 : i32
    %c0_i32_1 = arith.constant 0 : i32
    return %arg1, %c0_i32, %c0_i32_0 : i32, i32, i32
  }
  func.func @transform_18(%arg0: i32, %arg1: i32) -> (i32, i32, i32) {
    %c0_i32 = arith.constant 0 : i32
    %c0_i32_0 = arith.constant 0 : i32
    %c0_i32_1 = arith.constant 0 : i32
    return %arg1, %c0_i32, %c0_i32_0 : i32, i32, i32
  }
  func.func @transform_19(%arg0: i32, %arg1: i32) -> (i32, i32, i32) {
    %c0_i32 = arith.constant 0 : i32
    %c0_i32_0 = arith.constant 0 : i32
    %c0_i32_1 = arith.constant 0 : i32
    return %arg1, %c0_i32, %c0_i32_0 : i32, i32, i32
  }
  func.func @transform_20(%arg0: i32, %arg1: i32) -> (i32, i32, i32) {
    %c0_i32 = arith.constant 0 : i32
    %c0_i32_0 = arith.constant 0 : i32
    %c0_i32_1 = arith.constant 0 : i32
    return %arg1, %c0_i32, %c0_i32_0 : i32, i32, i32
  }
  func.func @transform_21(%arg0: i32, %arg1: i32) -> (i32, i32, i32) {
    %c0_i32 = arith.constant 0 : i32
    %c0_i32_0 = arith.constant 0 : i32
    %c0_i32_1 = arith.constant 0 : i32
    return %arg1, %c0_i32, %c0_i32_0 : i32, i32, i32
  }
  func.func @transform_22(%arg0: i32, %arg1: i32) -> (i32, i32, i32) {
    %c0_i32 = arith.constant 0 : i32
    %c0_i32_0 = arith.constant 0 : i32
    %c0_i32_1 = arith.constant 0 : i32
    return %arg1, %c0_i32, %c0_i32_0 : i32, i32, i32
  }
  func.func @transform_23(%arg0: i32, %arg1: i32) -> (i32, i32) {
    %c0_i32 = arith.constant 0 : i32
    %c0_i32_0 = arith.constant 0 : i32
    %c0_i32_1 = arith.constant 0 : i32
    return %c0_i32, %c0_i32_0 : i32, i32
  }
  func.func @transform_24(%arg0: i32, %arg1: i32) -> (i32, i32) {
    %c0_i32 = arith.constant 0 : i32
    %c0_i32_0 = arith.constant 0 : i32
    %c0_i32_1 = arith.constant 0 : i32
    return %c0_i32, %c0_i32_0 : i32, i32
  }
  func.func @transform_25(%arg0: i32, %arg1: i32) -> (i32, i32, i32) {
    %c0_i32 = arith.constant 0 : i32
    %c0_i32_0 = arith.constant 0 : i32
    %c0_i32_1 = arith.constant 0 : i32
    return %arg0, %c0_i32, %c0_i32_0 : i32, i32, i32
  }
  func.func @transform_26(%arg0: i32, %arg1: i32) -> (i32, i32, i32) {
    %c0_i32 = arith.constant 0 : i32
    %c0_i32_0 = arith.constant 0 : i32
    %c0_i32_1 = arith.constant 0 : i32
    return %arg0, %c0_i32, %c0_i32_0 : i32, i32, i32
  }
}

</mosaic_0001>

<llo_original>
// kernel: tpu_custom_call.1
$region0: #{tpu_custom_call.1}
  #allocation0 [shape = 'u32[]', space=smem, size = 0x4, offset = 0x4, fixed_abs, tag = 'smem constant byte address 0x4 - core index']
  #allocation1 [shape = 'u32[144,128]{1,0:T(1,128)}', space=vmem, size = 0x12000, scoped, tag = 'internal scratch']
  #allocation2 [shape = 'f32[16,64]{1,0:T(8,128)}', space=vmem, size = 0x2000, scoped, tag = 'scratch operand']
  %s0 = inlined_call_operand.vmem [shape: f32[4,8,32], index: 0, kind: input, shape index: {}]
  %s1 = inlined_call_operand.hbm [shape: f32[4,8,8], index: 1, kind: input, shape index: {}]
  %s2 = inlined_call_operand.hbm [shape: f32[1,8], index: 2, kind: input, shape index: {}]
  %s3 = inlined_call_operand.hbm [shape: f32[1,8], index: 3, kind: input, shape index: {}]
  %s4 = inlined_call_operand.hbm [shape: f32[1,8], index: 4, kind: input, shape index: {}]
  %s5 = inlined_call_operand.hbm [shape: f32[1,8], index: 5, kind: input, shape index: {}]
  %s6 = inlined_call_operand.vmem [shape: bf16[8,64], index: 6, kind: input, shape index: {}]
  %s7 = inlined_call_operand.vmem [shape: bf16[8,64], index: 7, kind: input, shape index: {}]
  %s8 = inlined_call_operand.vmem [shape: bf16[16,64], index: 8, kind: input, shape index: {}]
  %s9 = inlined_call_operand.hbm [shape: f32[1,64], index: 9, kind: input, shape index: {}]
  %s10 = inlined_call_operand.vmem [shape: f32[2,1,64], index: 10, kind: input, shape index: {}]
  %s11 = inlined_call_operand.vmem [shape: f32[2,1,64], index: 11, kind: input, shape index: {}]
  %s12 = inlined_call_operand.vmem [shape: bf16[2,64,64], index: 12, kind: input, shape index: {}]
  %s13 = inlined_call_operand.vmem [shape: bf16[2,64,64], index: 13, kind: input, shape index: {}]
  %s14 = inlined_call_operand.vmem [shape: bf16[2,64,64], index: 14, kind: input, shape index: {}]
  %s15 = inlined_call_operand.vmem [shape: bf16[2,64,64], index: 15, kind: input, shape index: {}]
  %s16 = inlined_call_operand.vmem [shape: f32[2,1,64], index: 16, kind: input, shape index: {}]
  %s17 = inlined_call_operand.vmem [shape: f32[2,1,64], index: 17, kind: input, shape index: {}]
  %s18 = inlined_call_operand.vmem [shape: f32[2,1,64], index: 18, kind: input, shape index: {}]
  %s19 = inlined_call_operand.vmem [shape: bf16[2,64,256], index: 19, kind: input, shape index: {}]
  %s20 = inlined_call_operand.vmem [shape: f32[2,1,256], index: 20, kind: input, shape index: {}]
  %s21 = inlined_call_operand.vmem [shape: bf16[2,256,64], index: 21, kind: input, shape index: {}]
  %s22 = inlined_call_operand.vmem [shape: f32[2,1,64], index: 22, kind: input, shape index: {}]
  %s23 = inlined_call_operand.vmem [shape: bf16[64,32], index: 23, kind: input, shape index: {}]
  %s24 = inlined_call_operand.vmem [shape: f32[1,32], index: 24, kind: input, shape index: {}]
  %s25 = inlined_call_operand.hbm [shape: f32[4,8,64], index: 25, kind: output, shape index: {0}]
  %s26 = inlined_call_operand.hbm [shape: f32[4,8,128], index: 26, kind: output, shape index: {1}]
  %27 = xla_tuple %s25, %s26
  %s28 = sld [smem:[#allocation0]]
  $region173: #{tpu_custom_call.1} parent=0
    _
  %s30 = ssub.s32 1, %s28
  %s31 = scalar_select 0, %s30, %s28
  $region1: #{tpu_custom_call.1} parent=0
    #allocation3 [shape = 'u8[16384]{0}', space=vmem, size = 0x4000, scoped, tag = 'input window, operand 1']
    #allocation4 [shape = 's32[2]{0}', space=sflag, size = 0x8, scoped, tag = 'scoped memory for tpu_custom_call.1']
    #allocation5 [shape = 's32[2]{0}', space=sflag, size = 0x8, scoped, tag = 'scoped memory for tpu_custom_call.1']
    #allocation6 [shape = 'u8[512]{0}', space=vmem, size = 0x400, scoped, tag = 'input window, operand 2, single buffered']
    #allocation7 [shape = 's32[1]{0}', space=sflag, size = 0x4, scoped, tag = 'scoped memory for tpu_custom_call.1']
    #allocation8 [shape = 'u8[512]{0}', space=vmem, size = 0x400, scoped, tag = 'input window, operand 3, single buffered']
    #allocation9 [shape = 'u8[512]{0}', space=vmem, size = 0x400, scoped, tag = 'input window, operand 4, single buffered']
    #allocation10 [shape = 's32[1]{0}', space=sflag, size = 0x4, scoped, tag = 'scoped memory for tpu_custom_call.1']
    #allocation11 [shape = 'u8[512]{0}', space=vmem, size = 0x400, scoped, tag = 'input window, operand 5, single buffered']
    #allocation12 [shape = 'u8[512]{0}', space=vmem, size = 0x400, scoped, tag = 'input window, operand 9, single buffered']
    #allocation13 [shape = 's32[1]{0}', space=sflag, size = 0x4, scoped, tag = 'scoped memory for tpu_custom_call.1']
    #allocation14 [shape = 'u8[16384]{0}', space=vmem, size = 0x4000, scoped, tag = 'output window, operand 0']
    #allocation15 [shape = 'u8[16384]{0}', space=vmem, size = 0x4000, scoped, tag = 'output window, operand 1']
    #allocation16 [shape = 's32[2]{0}', space=sflag, size = 0x8, scoped, tag = 'scoped memory for tpu_custom_call.1']
    %32 = vsyncpa [#allocation4], 0
    %s33 = scalar_lea.sflag [#allocation4], 1
    %34 = vsyncpa %s33, 0
    %35 = vsyncpa [#allocation7], 0
    %36 = vsyncpa [#allocation10], 0
    %37 = vsyncpa [#allocation13], 0
    %38 = vsyncpa [#allocation5], 0
    %s39 = scalar_lea.sflag [#allocation5], 1
    %40 = vsyncpa %s39, 0
    %41 = vsyncpa [#allocation16], 0
    %s42 = scalar_lea.sflag [#allocation16], 1
    %43 = vsyncpa %s42, 0
    loop: start=0, step=1, limit=6
    $region2: #{tpu_custom_call.1} parent=1 // loop_pre_header
      _
    $region3: #{tpu_custom_call.1} parent=1 // loop_header
      %s45 = sphi 0, %s49
      %p46 = scmp.ge.s32.totalorder %s45, 6
      %s52 = sphi 0, %s64
      %s53 = sphi 0, %s60
      %s54 = sphi 0, %s52
      %s55 = sphi 0, %s53
      %s56 = sphi 0, %s54
      %s57 = sphi 0, %s55
      %s67 = sphi 0, %s69
      %s70 = sphi 0, %s67
      %s71 = sphi 0, %s70
      %s87 = sphi 0, %s71
      %s93 = sphi 0, %s95
      %s96 = sphi 0, %s93
      %s97 = sphi 0, %s96
      %s113 = sphi 0, %s97
      %s117 = sphi 0, %s117
      %s119 = sphi 0, %s117
      %s120 = sphi 0, %s119
      %s134 = sphi 0, %s120
      %s138 = sphi 0, %s138
      %s140 = sphi 0, %s138
      %s141 = sphi 0, %s140
      %s155 = sphi 0, %s141
      %s159 = sphi 0, %s159
      %s161 = sphi 0, %s159
      %s162 = sphi 0, %s161
      %s176 = sphi 0, %s162
      %s180 = sphi 0, %s180
      %s182 = sphi 0, %s180
      %s183 = sphi 0, %s182
      %s197 = sphi 0, %s183
      %s201 = sphi 0, %s201
      %s203 = sphi 0, %s201
      %s204 = sphi 0, %s203
      %s218 = sphi 0, %s204
      %s222 = sphi 0, %s222
      %s224 = sphi 0, %s222
      %s225 = sphi 0, %s224
      %s239 = sphi 0, %s225
      %s243 = sphi 0, %s243
      %s245 = sphi 0, %s243
      %s246 = sphi 0, %s245
      %s260 = sphi 0, %s246
      %s264 = sphi 0, %s264
      %s266 = sphi 0, %s264
      %s267 = sphi 0, %s266
      %s281 = sphi 0, %s267
      %s287 = sphi 0, %s289
      %s290 = sphi 0, %s287
      %s291 = sphi 0, %s290
      %s307 = sphi 0, %s291
      %s313 = sphi 0, %s315
      %s316 = sphi 0, %s313
      %s317 = sphi 0, %s316
      %s333 = sphi 0, %s317
      %s339 = sphi 0, %s341
      %s342 = sphi 0, %s339
      %s343 = sphi 0, %s342
      %s359 = sphi 0, %s343
      %s365 = sphi 0, %s367
      %s368 = sphi 0, %s365
      %s369 = sphi 0, %s368
      %s385 = sphi 0, %s369
      %s391 = sphi 0, %s393
      %s394 = sphi 0, %s391
      %s395 = sphi 0, %s394
      %s411 = sphi 0, %s395
      %s417 = sphi 0, %s419
      %s420 = sphi 0, %s417
      %s421 = sphi 0, %s420
      %s437 = sphi 0, %s421
      %s443 = sphi 0, %s445
      %s446 = sphi 0, %s443
      %s447 = sphi 0, %s446
      %s463 = sphi 0, %s447
      %s469 = sphi 0, %s471
      %s472 = sphi 0, %s469
      %s473 = sphi 0, %s472
      %s489 = sphi 0, %s473
      %s495 = sphi 0, %s497
      %s498 = sphi 0, %s495
      %s499 = sphi 0, %s498
      %s515 = sphi 0, %s499
      %s521 = sphi 0, %s523
      %s524 = sphi 0, %s521
      %s525 = sphi 0, %s524
      %s541 = sphi 0, %s525
      %s547 = sphi 0, %s549
      %s550 = sphi 0, %s547
      %s551 = sphi 0, %s550
      %s567 = sphi 0, %s551
      %s573 = sphi 0, %s575
      %s576 = sphi 0, %s573
      %s577 = sphi 0, %s576
      %s593 = sphi 0, %s577
      %s599 = sphi 0, %s601
      %s602 = sphi 0, %s599
      %s603 = sphi 0, %s602
      %s619 = sphi 0, %s603
      %s623 = sphi 0, %s623
      %s625 = sphi 0, %s623
      %s626 = sphi 0, %s625
      %s640 = sphi 0, %s626
      %s644 = sphi 0, %s644
      %s646 = sphi 0, %s644
      %s647 = sphi 0, %s646
      %s661 = sphi 0, %s647
      %s667 = sphi 0, %s669
      %s670 = sphi 0, %s667
      %s671 = sphi 0, %s670
      %s687 = sphi 0, %s671
      %s693 = sphi 0, %s695
      %s696 = sphi 0, %s693
      %s697 = sphi 0, %s696
      %s713 = sphi 0, %s697
    $region4: #{tpu_custom_call.1} parent=1 // loop_header_branch
      %48 = sbr.rel (%p46) target = $region8
    $region5: #{tpu_custom_call.1} parent=1 // loop_body
      %s50 = ssub.s32 %s45, 1
      %s51 = ssub.s32 %s45, 2
      %s58 = sadd.s32 1, %s53
      %p59 = scmp.ge.s32.totalorder %s58, 2
      %s60 = scalar_select %p59, 0, %s58
      %s61 = sadd.s32 1, %s52
      %s62 = scalar_select %p59, %s61, %s52
      %p63 = scmp.ge.s32.totalorder %s62, 2
      %s64 = scalar_select %p63, 0, %s62
      %s65 = ssub.s32 %s52, %s64
      %p66 = scmp.eq.s32.totalorder %s65, 0
      %s68 = sadd.s32 %s67, 1
      %s69 = scalar_select %p66, %s67, %s68
      %p72 = pneg %p66
      %p73 = scmp.eq.s32.totalorder %s45, 3
      %p74 = por %p72, %p73
      %p75 = scmp.ne.s32.totalorder %s67, %s70
      %p76 = scmp.eq.s32.totalorder %s45, 0
      %p77 = por %p75, %p76
      %p78 = scmp.ne.s32.totalorder %s67, %s70
      %p79 = scmp.eq.s32.totalorder %s50, 3
      %p80 = por %p78, %p79
      %p81 = scmp.ne.s32.totalorder %s70, %s71
      %p82 = scmp.eq.s32.totalorder %s50, 0
      %p83 = por %p81, %p82
      %p84 = scmp.ne.s32.totalorder %s70, %s71
      %p85 = scmp.eq.s32.totalorder %s51, 3
      %p86 = por %p84, %p85
      %p88 = scmp.ne.s32.totalorder %s71, %s87
      %p89 = scmp.eq.s32.totalorder %s51, 0
      %p90 = por %p88, %p89
      %s91 = ssub.s32 %s52, %s64
      %p92 = scmp.eq.s32.totalorder %s91, 0
      %s94 = sadd.s32 %s93, 1
      %s95 = scalar_select %p92, %s93, %s94
      %p98 = pneg %p92
      %p99 = scmp.eq.s32.totalorder %s45, 3
      %p100 = por %p98, %p99
      %p101 = scmp.ne.s32.totalorder %s93, %s96
      %p102 = scmp.eq.s32.totalorder %s45, 0
      %p103 = por %p101, %p102
      %p104 = scmp.ne.s32.totalorder %s93, %s96
      %p105 = scmp.eq.s32.totalorder %s50, 3
      %p106 = por %p104, %p105
      %p107 = scmp.ne.s32.totalorder %s96, %s97
      %p108 = scmp.eq.s32.totalorder %s50, 0
      %p109 = por %p107, %p108
      %p110 = scmp.ne.s32.totalorder %s96, %s97
      %p111 = scmp.eq.s32.totalorder %s51, 3
      %p112 = por %p110, %p111
      %p114 = scmp.ne.s32.totalorder %s97, %s113
      %p115 = scmp.eq.s32.totalorder %s51, 0
      %p116 = por %p114, %p115
      %s118 = sadd.s32 %s117, 1
      %p121 = scmp.eq.s32.totalorder %s45, 3
      %p122 = scmp.ne.s32.totalorder %s117, %s119
      %p123 = scmp.eq.s32.totalorder %s45, 0
      %p124 = por %p122, %p123
      %p125 = scmp.ne.s32.totalorder %s117, %s119
      %p126 = scmp.eq.s32.totalorder %s50, 3
      %p127 = por %p125, %p126
      %p128 = scmp.ne.s32.totalorder %s119, %s120
      %p129 = scmp.eq.s32.totalorder %s50, 0
      %p130 = por %p128, %p129
      %p131 = scmp.ne.s32.totalorder %s119, %s120
      %p132 = scmp.eq.s32.totalorder %s51, 3
      %p133 = por %p131, %p132
      %p135 = scmp.ne.s32.totalorder %s120, %s134
      %p136 = scmp.eq.s32.totalorder %s51, 0
      %p137 = por %p135, %p136
      %s139 = sadd.s32 %s138, 1
      %p142 = scmp.eq.s32.totalorder %s45, 3
      %p143 = scmp.ne.s32.totalorder %s138, %s140
      %p144 = scmp.eq.s32.totalorder %s45, 0
      %p145 = por %p143, %p144
      %p146 = scmp.ne.s32.totalorder %s138, %s140
      %p147 = scmp.eq.s32.totalorder %s50, 3
      %p148 = por %p146, %p147
      %p149 = scmp.ne.s32.totalorder %s140, %s141
      %p150 = scmp.eq.s32.totalorder %s50, 0
      %p151 = por %p149, %p150
      %p152 = scmp.ne.s32.totalorder %s140, %s141
      %p153 = scmp.eq.s32.totalorder %s51, 3
      %p154 = por %p152, %p153
      %p156 = scmp.ne.s32.totalorder %s141, %s155
      %p157 = scmp.eq.s32.totalorder %s51, 0
      %p158 = por %p156, %p157
      %s160 = sadd.s32 %s159, 1
      %p163 = scmp.eq.s32.totalorder %s45, 3
      %p164 = scmp.ne.s32.totalorder %s159, %s161
      %p165 = scmp.eq.s32.totalorder %s45, 0
      %p166 = por %p164, %p165
      %p167 = scmp.ne.s32.totalorder %s159, %s161
      %p168 = scmp.eq.s32.totalorder %s50, 3
      %p169 = por %p167, %p168
      %p170 = scmp.ne.s32.totalorder %s161, %s162
      %p171 = scmp.eq.s32.totalorder %s50, 0
      %p172 = por %p170, %p171
      %p173 = scmp.ne.s32.totalorder %s161, %s162
      %p174 = scmp.eq.s32.totalorder %s51, 3
      %p175 = por %p173, %p174
      %p177 = scmp.ne.s32.totalorder %s162, %s176
      %p178 = scmp.eq.s32.totalorder %s51, 0
      %p179 = por %p177, %p178
      %s181 = sadd.s32 %s180, 1
      %p184 = scmp.eq.s32.totalorder %s45, 3
      %p185 = scmp.ne.s32.totalorder %s180, %s182
      %p186 = scmp.eq.s32.totalorder %s45, 0
      %p187 = por %p185, %p186
      %p188 = scmp.ne.s32.totalorder %s180, %s182
      %p189 = scmp.eq.s32.totalorder %s50, 3
      %p190 = por %p188, %p189
      %p191 = scmp.ne.s32.totalorder %s182, %s183
      %p192 = scmp.eq.s32.totalorder %s50, 0
      %p193 = por %p191, %p192
      %p194 = scmp.ne.s32.totalorder %s182, %s183
      %p195 = scmp.eq.s32.totalorder %s51, 3
      %p196 = por %p194, %p195
      %p198 = scmp.ne.s32.totalorder %s183, %s197
      %p199 = scmp.eq.s32.totalorder %s51, 0
      %p200 = por %p198, %p199
      %s202 = sadd.s32 %s201, 1
      %p205 = scmp.eq.s32.totalorder %s45, 3
      %p206 = scmp.ne.s32.totalorder %s201, %s203
      %p207 = scmp.eq.s32.totalorder %s45, 0
      %p208 = por %p206, %p207
      %p209 = scmp.ne.s32.totalorder %s201, %s203
      %p210 = scmp.eq.s32.totalorder %s50, 3
      %p211 = por %p209, %p210
      %p212 = scmp.ne.s32.totalorder %s203, %s204
      %p213 = scmp.eq.s32.totalorder %s50, 0
      %p214 = por %p212, %p213
      %p215 = scmp.ne.s32.totalorder %s203, %s204
      %p216 = scmp.eq.s32.totalorder %s51, 3
      %p217 = por %p215, %p216
      %p219 = scmp.ne.s32.totalorder %s204, %s218
      %p220 = scmp.eq.s32.totalorder %s51, 0
      %p221 = por %p219, %p220
      %s223 = sadd.s32 %s222, 1
      %p226 = scmp.eq.s32.totalorder %s45, 3
      %p227 = scmp.ne.s32.totalorder %s222, %s224
      %p228 = scmp.eq.s32.totalorder %s45, 0
      %p229 = por %p227, %p228
      %p230 = scmp.ne.s32.totalorder %s222, %s224
      %p231 = scmp.eq.s32.totalorder %s50, 3
      %p232 = por %p230, %p231
      %p233 = scmp.ne.s32.totalorder %s224, %s225
      %p234 = scmp.eq.s32.totalorder %s50, 0
      %p235 = por %p233, %p234
      %p236 = scmp.ne.s32.totalorder %s224, %s225
      %p237 = scmp.eq.s32.totalorder %s51, 3
      %p238 = por %p236, %p237
      %p240 = scmp.ne.s32.totalorder %s225, %s239
      %p241 = scmp.eq.s32.totalorder %s51, 0
      %p242 = por %p240, %p241
      %s244 = sadd.s32 %s243, 1
      %p247 = scmp.eq.s32.totalorder %s45, 3
      %p248 = scmp.ne.s32.totalorder %s243, %s245
      %p249 = scmp.eq.s32.totalorder %s45, 0
      %p250 = por %p248, %p249
      %p251 = scmp.ne.s32.totalorder %s243, %s245
      %p252 = scmp.eq.s32.totalorder %s50, 3
      %p253 = por %p251, %p252
      %p254 = scmp.ne.s32.totalorder %s245, %s246
      %p255 = scmp.eq.s32.totalorder %s50, 0
      %p256 = por %p254, %p255
      %p257 = scmp.ne.s32.totalorder %s245, %s246
      %p258 = scmp.eq.s32.totalorder %s51, 3
      %p259 = por %p257, %p258
      %p261 = scmp.ne.s32.totalorder %s246, %s260
      %p262 = scmp.eq.s32.totalorder %s51, 0
      %p263 = por %p261, %p262
      %s265 = sadd.s32 %s264, 1
      %p268 = scmp.eq.s32.totalorder %s45, 3
      %p269 = scmp.ne.s32.totalorder %s264, %s266
      %p270 = scmp.eq.s32.totalorder %s45, 0
      %p271 = por %p269, %p270
      %p272 = scmp.ne.s32.totalorder %s264, %s266
      %p273 = scmp.eq.s32.totalorder %s50, 3
      %p274 = por %p272, %p273
      %p275 = scmp.ne.s32.totalorder %s266, %s267
      %p276 = scmp.eq.s32.totalorder %s50, 0
      %p277 = por %p275, %p276
      %p278 = scmp.ne.s32.totalorder %s266, %s267
      %p279 = scmp.eq.s32.totalorder %s51, 3
      %p280 = por %p278, %p279
      %p282 = scmp.ne.s32.totalorder %s267, %s281
      %p283 = scmp.eq.s32.totalorder %s51, 0
      %p284 = por %p282, %p283
      %s285 = ssub.s32 %s53, %s60
      %p286 = scmp.eq.s32.totalorder %s285, 0
      %s288 = sadd.s32 %s287, 1
      %s289 = scalar_select %p286, %s287, %s288
      %p292 = pneg %p286
      %p293 = scmp.eq.s32.totalorder %s45, 3
      %p294 = por %p292, %p293
      %p295 = scmp.ne.s32.totalorder %s287, %s290
      %p296 = scmp.eq.s32.totalorder %s45, 0
      %p297 = por %p295, %p296
      %p298 = scmp.ne.s32.totalorder %s287, %s290
      %p299 = scmp.eq.s32.totalorder %s50, 3
      %p300 = por %p298, %p299
      %p301 = scmp.ne.s32.totalorder %s290, %s291
      %p302 = scmp.eq.s32.totalorder %s50, 0
      %p303 = por %p301, %p302
      %p304 = scmp.ne.s32.totalorder %s290, %s291
      %p305 = scmp.eq.s32.totalorder %s51, 3
      %p306 = por %p304, %p305
      %p308 = scmp.ne.s32.totalorder %s291, %s307
      %p309 = scmp.eq.s32.totalorder %s51, 0
      %p310 = por %p308, %p309
      %s311 = ssub.s32 %s53, %s60
      %p312 = scmp.eq.s32.totalorder %s311, 0
      %s314 = sadd.s32 %s313, 1
      %s315 = scalar_select %p312, %s313, %s314
      %p318 = pneg %p312
      %p319 = scmp.eq.s32.totalorder %s45, 3
      %p320 = por %p318, %p319
      %p321 = scmp.ne.s32.totalorder %s313, %s316
      %p322 = scmp.eq.s32.totalorder %s45, 0
      %p323 = por %p321, %p322
      %p324 = scmp.ne.s32.totalorder %s313, %s316
      %p325 = scmp.eq.s32.totalorder %s50, 3
      %p326 = por %p324, %p325
      %p327 = scmp.ne.s32.totalorder %s316, %s317
      %p328 = scmp.eq.s32.totalorder %s50, 0
      %p329 = por %p327, %p328
      %p330 = scmp.ne.s32.totalorder %s316, %s317
      %p331 = scmp.eq.s32.totalorder %s51, 3
      %p332 = por %p330, %p331
      %p334 = scmp.ne.s32.totalorder %s317, %s333
      %p335 = scmp.eq.s32.totalorder %s51, 0
      %p336 = por %p334, %p335
      %s337 = ssub.s32 %s53, %s60
      %p338 = scmp.eq.s32.totalorder %s337, 0
      %s340 = sadd.s32 %s339, 1
      %s341 = scalar_select %p338, %s339, %s340
      %p344 = pneg %p338
      %p345 = scmp.eq.s32.totalorder %s45, 3
      %p346 = por %p344, %p345
      %p347 = scmp.ne.s32.totalorder %s339, %s342
      %p348 = scmp.eq.s32.totalorder %s45, 0
      %p349 = por %p347, %p348
      %p350 = scmp.ne.s32.totalorder %s339, %s342
      %p351 = scmp.eq.s32.totalorder %s50, 3
      %p352 = por %p350, %p351
      %p353 = scmp.ne.s32.totalorder %s342, %s343
      %p354 = scmp.eq.s32.totalorder %s50, 0
      %p355 = por %p353, %p354
      %p356 = scmp.ne.s32.totalorder %s342, %s343
      %p357 = scmp.eq.s32.totalorder %s51, 3
      %p358 = por %p356, %p357
      %p360 = scmp.ne.s32.totalorder %s343, %s359
      %p361 = scmp.eq.s32.totalorder %s51, 0
      %p362 = por %p360, %p361
      %s363 = ssub.s32 %s53, %s60
      %p364 = scmp.eq.s32.totalorder %s363, 0
      %s366 = sadd.s32 %s365, 1
      %s367 = scalar_select %p364, %s365, %s366
      %p370 = pneg %p364
      %p371 = scmp.eq.s32.totalorder %s45, 3
      %p372 = por %p370, %p371
      %p373 = scmp.ne.s32.totalorder %s365, %s368
      %p374 = scmp.eq.s32.totalorder %s45, 0
      %p375 = por %p373, %p374
      %p376 = scmp.ne.s32.totalorder %s365, %s368
      %p377 = scmp.eq.s32.totalorder %s50, 3
      %p378 = por %p376, %p377
      %p379 = scmp.ne.s32.totalorder %s368, %s369
      %p380 = scmp.eq.s32.totalorder %s50, 0
      %p381 = por %p379, %p380
      %p382 = scmp.ne.s32.totalorder %s368, %s369
      %p383 = scmp.eq.s32.totalorder %s51, 3
      %p384 = por %p382, %p383
      %p386 = scmp.ne.s32.totalorder %s369, %s385
      %p387 = scmp.eq.s32.totalorder %s51, 0
      %p388 = por %p386, %p387
      %s389 = ssub.s32 %s53, %s60
      %p390 = scmp.eq.s32.totalorder %s389, 0
      %s392 = sadd.s32 %s391, 1
      %s393 = scalar_select %p390, %s391, %s392
      %p396 = pneg %p390
      %p397 = scmp.eq.s32.totalorder %s45, 3
      %p398 = por %p396, %p397
      %p399 = scmp.ne.s32.totalorder %s391, %s394
      %p400 = scmp.eq.s32.totalorder %s45, 0
      %p401 = por %p399, %p400
      %p402 = scmp.ne.s32.totalorder %s391, %s394
      %p403 = scmp.eq.s32.totalorder %s50, 3
      %p404 = por %p402, %p403
      %p405 = scmp.ne.s32.totalorder %s394, %s395
      %p406 = scmp.eq.s32.totalorder %s50, 0
      %p407 = por %p405, %p406
      %p408 = scmp.ne.s32.totalorder %s394, %s395
      %p409 = scmp.eq.s32.totalorder %s51, 3
      %p410 = por %p408, %p409
      %p412 = scmp.ne.s32.totalorder %s395, %s411
      %p413 = scmp.eq.s32.totalorder %s51, 0
      %p414 = por %p412, %p413
      %s415 = ssub.s32 %s53, %s60
      %p416 = scmp.eq.s32.totalorder %s415, 0
      %s418 = sadd.s32 %s417, 1
      %s419 = scalar_select %p416, %s417, %s418
      %p422 = pneg %p416
      %p423 = scmp.eq.s32.totalorder %s45, 3
      %p424 = por %p422, %p423
      %p425 = scmp.ne.s32.totalorder %s417, %s420
      %p426 = scmp.eq.s32.totalorder %s45, 0
      %p427 = por %p425, %p426
      %p428 = scmp.ne.s32.totalorder %s417, %s420
      %p429 = scmp.eq.s32.totalorder %s50, 3
      %p430 = por %p428, %p429
      %p431 = scmp.ne.s32.totalorder %s420, %s421
      %p432 = scmp.eq.s32.totalorder %s50, 0
      %p433 = por %p431, %p432
      %p434 = scmp.ne.s32.totalorder %s420, %s421
      %p435 = scmp.eq.s32.totalorder %s51, 3
      %p436 = por %p434, %p435
      %p438 = scmp.ne.s32.totalorder %s421, %s437
      %p439 = scmp.eq.s32.totalorder %s51, 0
      %p440 = por %p438, %p439
      %s441 = ssub.s32 %s53, %s60
      %p442 = scmp.eq.s32.totalorder %s441, 0
      %s444 = sadd.s32 %s443, 1
      %s445 = scalar_select %p442, %s443, %s444
      %p448 = pneg %p442
      %p449 = scmp.eq.s32.totalorder %s45, 3
      %p450 = por %p448, %p449
      %p451 = scmp.ne.s32.totalorder %s443, %s446
      %p452 = scmp.eq.s32.totalorder %s45, 0
      %p453 = por %p451, %p452
      %p454 = scmp.ne.s32.totalorder %s443, %s446
      %p455 = scmp.eq.s32.totalorder %s50, 3
      %p456 = por %p454, %p455
      %p457 = scmp.ne.s32.totalorder %s446, %s447
      %p458 = scmp.eq.s32.totalorder %s50, 0
      %p459 = por %p457, %p458
      %p460 = scmp.ne.s32.totalorder %s446, %s447
      %p461 = scmp.eq.s32.totalorder %s51, 3
      %p462 = por %p460, %p461
      %p464 = scmp.ne.s32.totalorder %s447, %s463
      %p465 = scmp.eq.s32.totalorder %s51, 0
      %p466 = por %p464, %p465
      %s467 = ssub.s32 %s53, %s60
      %p468 = scmp.eq.s32.totalorder %s467, 0
      %s470 = sadd.s32 %s469, 1
      %s471 = scalar_select %p468, %s469, %s470
      %p474 = pneg %p468
      %p475 = scmp.eq.s32.totalorder %s45, 3
      %p476 = por %p474, %p475
      %p477 = scmp.ne.s32.totalorder %s469, %s472
      %p478 = scmp.eq.s32.totalorder %s45, 0
      %p479 = por %p477, %p478
      %p480 = scmp.ne.s32.totalorder %s469, %s472
      %p481 = scmp.eq.s32.totalorder %s50, 3
      %p482 = por %p480, %p481
      %p483 = scmp.ne.s32.totalorder %s472, %s473
      %p484 = scmp.eq.s32.totalorder %s50, 0
      %p485 = por %p483, %p484
      %p486 = scmp.ne.s32.totalorder %s472, %s473
      %p487 = scmp.eq.s32.totalorder %s51, 3
      %p488 = por %p486, %p487
      %p490 = scmp.ne.s32.totalorder %s473, %s489
      %p491 = scmp.eq.s32.totalorder %s51, 0
      %p492 = por %p490, %p491
      %s493 = ssub.s32 %s53, %s60
      %p494 = scmp.eq.s32.totalorder %s493, 0
      %s496 = sadd.s32 %s495, 1
      %s497 = scalar_select %p494, %s495, %s496
      %p500 = pneg %p494
      %p501 = scmp.eq.s32.totalorder %s45, 3
      %p502 = por %p500, %p501
      %p503 = scmp.ne.s32.totalorder %s495, %s498
      %p504 = scmp.eq.s32.totalorder %s45, 0
      %p505 = por %p503, %p504
      %p506 = scmp.ne.s32.totalorder %s495, %s498
      %p507 = scmp.eq.s32.totalorder %s50, 3
      %p508 = por %p506, %p507
      %p509 = scmp.ne.s32.totalorder %s498, %s499
      %p510 = scmp.eq.s32.totalorder %s50, 0
      %p511 = por %p509, %p510
      %p512 = scmp.ne.s32.totalorder %s498, %s499
      %p513 = scmp.eq.s32.totalorder %s51, 3
      %p514 = por %p512, %p513
      %p516 = scmp.ne.s32.totalorder %s499, %s515
      %p517 = scmp.eq.s32.totalorder %s51, 0
      %p518 = por %p516, %p517
      %s519 = ssub.s32 %s53, %s60
      %p520 = scmp.eq.s32.totalorder %s519, 0
      %s522 = sadd.s32 %s521, 1
      %s523 = scalar_select %p520, %s521, %s522
      %p526 = pneg %p520
      %p527 = scmp.eq.s32.totalorder %s45, 3
      %p528 = por %p526, %p527
      %p529 = scmp.ne.s32.totalorder %s521, %s524
      %p530 = scmp.eq.s32.totalorder %s45, 0
      %p531 = por %p529, %p530
      %p532 = scmp.ne.s32.totalorder %s521, %s524
      %p533 = scmp.eq.s32.totalorder %s50, 3
      %p534 = por %p532, %p533
      %p535 = scmp.ne.s32.totalorder %s524, %s525
      %p536 = scmp.eq.s32.totalorder %s50, 0
      %p537 = por %p535, %p536
      %p538 = scmp.ne.s32.totalorder %s524, %s525
      %p539 = scmp.eq.s32.totalorder %s51, 3
      %p540 = por %p538, %p539
      %p542 = scmp.ne.s32.totalorder %s525, %s541
      %p543 = scmp.eq.s32.totalorder %s51, 0
      %p544 = por %p542, %p543
      %s545 = ssub.s32 %s53, %s60
      %p546 = scmp.eq.s32.totalorder %s545, 0
      %s548 = sadd.s32 %s547, 1
      %s549 = scalar_select %p546, %s547, %s548
      %p552 = pneg %p546
      %p553 = scmp.eq.s32.totalorder %s45, 3
      %p554 = por %p552, %p553
      %p555 = scmp.ne.s32.totalorder %s547, %s550
      %p556 = scmp.eq.s32.totalorder %s45, 0
      %p557 = por %p555, %p556
      %p558 = scmp.ne.s32.totalorder %s547, %s550
      %p559 = scmp.eq.s32.totalorder %s50, 3
      %p560 = por %p558, %p559
      %p561 = scmp.ne.s32.totalorder %s550, %s551
      %p562 = scmp.eq.s32.totalorder %s50, 0
      %p563 = por %p561, %p562
      %p564 = scmp.ne.s32.totalorder %s550, %s551
      %p565 = scmp.eq.s32.totalorder %s51, 3
      %p566 = por %p564, %p565
      %p568 = scmp.ne.s32.totalorder %s551, %s567
      %p569 = scmp.eq.s32.totalorder %s51, 0
      %p570 = por %p568, %p569
      %s571 = ssub.s32 %s53, %s60
      %p572 = scmp.eq.s32.totalorder %s571, 0
      %s574 = sadd.s32 %s573, 1
      %s575 = scalar_select %p572, %s573, %s574
      %p578 = pneg %p572
      %p579 = scmp.eq.s32.totalorder %s45, 3
      %p580 = por %p578, %p579
      %p581 = scmp.ne.s32.totalorder %s573, %s576
      %p582 = scmp.eq.s32.totalorder %s45, 0
      %p583 = por %p581, %p582
      %p584 = scmp.ne.s32.totalorder %s573, %s576
      %p585 = scmp.eq.s32.totalorder %s50, 3
      %p586 = por %p584, %p585
      %p587 = scmp.ne.s32.totalorder %s576, %s577
      %p588 = scmp.eq.s32.totalorder %s50, 0
      %p589 = por %p587, %p588
      %p590 = scmp.ne.s32.totalorder %s576, %s577
      %p591 = scmp.eq.s32.totalorder %s51, 3
      %p592 = por %p590, %p591
      %p594 = scmp.ne.s32.totalorder %s577, %s593
      %p595 = scmp.eq.s32.totalorder %s51, 0
      %p596 = por %p594, %p595
      %s597 = ssub.s32 %s53, %s60
      %p598 = scmp.eq.s32.totalorder %s597, 0
      %s600 = sadd.s32 %s599, 1
      %s601 = scalar_select %p598, %s599, %s600
      %p604 = pneg %p598
      %p605 = scmp.eq.s32.totalorder %s45, 3
      %p606 = por %p604, %p605
      %p607 = scmp.ne.s32.totalorder %s599, %s602
      %p608 = scmp.eq.s32.totalorder %s45, 0
      %p609 = por %p607, %p608
      %p610 = scmp.ne.s32.totalorder %s599, %s602
      %p611 = scmp.eq.s32.totalorder %s50, 3
      %p612 = por %p610, %p611
      %p613 = scmp.ne.s32.totalorder %s602, %s603
      %p614 = scmp.eq.s32.totalorder %s50, 0
      %p615 = por %p613, %p614
      %p616 = scmp.ne.s32.totalorder %s602, %s603
      %p617 = scmp.eq.s32.totalorder %s51, 3
      %p618 = por %p616, %p617
      %p620 = scmp.ne.s32.totalorder %s603, %s619
      %p621 = scmp.eq.s32.totalorder %s51, 0
      %p622 = por %p620, %p621
      %s624 = sadd.s32 %s623, 1
      %p627 = scmp.eq.s32.totalorder %s45, 3
      %p628 = scmp.ne.s32.totalorder %s623, %s625
      %p629 = scmp.eq.s32.totalorder %s45, 0
      %p630 = por %p628, %p629
      %p631 = scmp.ne.s32.totalorder %s623, %s625
      %p632 = scmp.eq.s32.totalorder %s50, 3
      %p633 = por %p631, %p632
      %p634 = scmp.ne.s32.totalorder %s625, %s626
      %p635 = scmp.eq.s32.totalorder %s50, 0
      %p636 = por %p634, %p635
      %p637 = scmp.ne.s32.totalorder %s625, %s626
      %p638 = scmp.eq.s32.totalorder %s51, 3
      %p639 = por %p637, %p638
      %p641 = scmp.ne.s32.totalorder %s626, %s640
      %p642 = scmp.eq.s32.totalorder %s51, 0
      %p643 = por %p641, %p642
      %s645 = sadd.s32 %s644, 1
      %p648 = scmp.eq.s32.totalorder %s45, 3
      %p649 = scmp.ne.s32.totalorder %s644, %s646
      %p650 = scmp.eq.s32.totalorder %s45, 0
      %p651 = por %p649, %p650
      %p652 = scmp.ne.s32.totalorder %s644, %s646
      %p653 = scmp.eq.s32.totalorder %s50, 3
      %p654 = por %p652, %p653
      %p655 = scmp.ne.s32.totalorder %s646, %s647
      %p656 = scmp.eq.s32.totalorder %s50, 0
      %p657 = por %p655, %p656
      %p658 = scmp.ne.s32.totalorder %s646, %s647
      %p659 = scmp.eq.s32.totalorder %s51, 3
      %p660 = por %p658, %p659
      %p662 = scmp.ne.s32.totalorder %s647, %s661
      %p663 = scmp.eq.s32.totalorder %s51, 0
      %p664 = por %p662, %p663
      %s665 = ssub.s32 %s52, %s64
      %p666 = scmp.eq.s32.totalorder %s665, 0
      %s668 = sadd.s32 %s667, 1
      %s669 = scalar_select %p666, %s667, %s668
      %p672 = pneg %p666
      %p673 = scmp.eq.s32.totalorder %s45, 3
      %p674 = por %p672, %p673
      %p675 = scmp.ne.s32.totalorder %s667, %s670
      %p676 = scmp.eq.s32.totalorder %s45, 0
      %p677 = por %p675, %p676
      %p678 = scmp.ne.s32.totalorder %s667, %s670
      %p679 = scmp.eq.s32.totalorder %s50, 3
      %p680 = por %p678, %p679
      %p681 = scmp.ne.s32.totalorder %s670, %s671
      %p682 = scmp.eq.s32.totalorder %s50, 0
      %p683 = por %p681, %p682
      %p684 = scmp.ne.s32.totalorder %s670, %s671
      %p685 = scmp.eq.s32.totalorder %s51, 3
      %p686 = por %p684, %p685
      %p688 = scmp.ne.s32.totalorder %s671, %s687
      %p689 = scmp.eq.s32.totalorder %s51, 0
      %p690 = por %p688, %p689
      %s691 = ssub.s32 %s52, %s64
      %p692 = scmp.eq.s32.totalorder %s691, 0
      %s694 = sadd.s32 %s693, 1
      %s695 = scalar_select %p692, %s693, %s694
      %p698 = pneg %p692
      %p699 = scmp.eq.s32.totalorder %s45, 3
      %p700 = por %p698, %p699
      %p701 = scmp.ne.s32.totalorder %s693, %s696
      %p702 = scmp.eq.s32.totalorder %s45, 0
      %p703 = por %p701, %p702
      %p704 = scmp.ne.s32.totalorder %s693, %s696
      %p705 = scmp.eq.s32.totalorder %s50, 3
      %p706 = por %p704, %p705
      %p707 = scmp.ne.s32.totalorder %s696, %s697
      %p708 = scmp.eq.s32.totalorder %s50, 0
      %p709 = por %p707, %p708
      %p710 = scmp.ne.s32.totalorder %s696, %s697
      %p711 = scmp.eq.s32.totalorder %s51, 3
      %p712 = por %p710, %p711
      %p714 = scmp.ne.s32.totalorder %s697, %s713
      %p715 = scmp.eq.s32.totalorder %s51, 0
      %p716 = por %p714, %p715
      %p717 = scmp.le.s32.totalorder 1, %s45
      %p718 = scmp.lt.s32.totalorder %s45, 5
      %p719 = pnand %p717, %p718
      %p720 = pneg %p719
      // Predicated region
      $region9: #{tpu_custom_call.1} parent=5 // pred_check
        _
      $region10: #{tpu_custom_call.1} parent=5 // pred_check_branch
        %722 = sbr.rel (%p719) target = $region12
      $region11: #{tpu_custom_call.1} parent=5 // pred_region
        %s723 = ssub.s32 %s45, 1
        // Predicated region
        $region13: #{tpu_custom_call.1} parent=11 // pred_check
          %p724 = pneg %p130
        $region14: #{tpu_custom_call.1} parent=11 // pred_check_branch
          %726 = sbr.rel (%p724) target = $region16
        $region15: #{tpu_custom_call.1} parent=11 // pred_region
          %s728 = ssub.s32 16, 16
          %729 = vsyncadd [#allocation7], %s728
          %s731 = sshll.u32 [#allocation6], 4
          %s732 = int_to_ptr.vmem [resolvable:$true] %s731
          %734 = dma.hbm_to_vmem [thread:$0]  %s2, 16, %s732, [#allocation7]
        $region16: #{tpu_custom_call.1} parent=11 // pred_fallthru
          _
        // Predicated region
        $region17: #{tpu_custom_call.1} parent=11 // pred_check
          %p735 = pneg %p151
        $region18: #{tpu_custom_call.1} parent=11 // pred_check_branch
          %737 = sbr.rel (%p735) target = $region20
        $region19: #{tpu_custom_call.1} parent=11 // pred_region
          %s739 = ssub.s32 16, 16
          %740 = vsyncadd [#allocation7], %s739
          %s742 = sshll.u32 [#allocation8], 4
          %s743 = int_to_ptr.vmem [resolvable:$true] %s742
          %745 = dma.hbm_to_vmem [thread:$0]  %s3, 16, %s743, [#allocation7]
        $region20: #{tpu_custom_call.1} parent=11 // pred_fallthru
          _
        // Predicated region
        $region21: #{tpu_custom_call.1} parent=11 // pred_check
          %p746 = pneg %p172
        $region22: #{tpu_custom_call.1} parent=11 // pred_check_branch
          %748 = sbr.rel (%p746) target = $region24
        $region23: #{tpu_custom_call.1} parent=11 // pred_region
          %s750 = ssub.s32 16, 16
          %751 = vsyncadd [#allocation10], %s750
          %s753 = sshll.u32 [#allocation9], 4
          %s754 = int_to_ptr.vmem [resolvable:$true] %s753
          %756 = dma.hbm_to_vmem [thread:$0]  %s4, 16, %s754, [#allocation10]
        $region24: #{tpu_custom_call.1} parent=11 // pred_fallthru
          _
        // Predicated region
        $region25: #{tpu_custom_call.1} parent=11 // pred_check
          %p757 = pneg %p193
        $region26: #{tpu_custom_call.1} parent=11 // pred_check_branch
          %759 = sbr.rel (%p757) target = $region28
        $region27: #{tpu_custom_call.1} parent=11 // pred_region
          %s761 = ssub.s32 16, 16
          %762 = vsyncadd [#allocation10], %s761
          %s764 = sshll.u32 [#allocation11], 4
          %s765 = int_to_ptr.vmem [resolvable:$true] %s764
          %767 = dma.hbm_to_vmem [thread:$0]  %s5, 16, %s765, [#allocation10]
        $region28: #{tpu_custom_call.1} parent=11 // pred_fallthru
          _
        // Predicated region
        $region29: #{tpu_custom_call.1} parent=11 // pred_check
          %p768 = pneg %p214
        $region30: #{tpu_custom_call.1} parent=11 // pred_check_branch
          %770 = sbr.rel (%p768) target = $region32
        $region31: #{tpu_custom_call.1} parent=11 // pred_region
          _
        $region32: #{tpu_custom_call.1} parent=11 // pred_fallthru
          _
        // Predicated region
        $region33: #{tpu_custom_call.1} parent=11 // pred_check
          %p771 = pneg %p235
        $region34: #{tpu_custom_call.1} parent=11 // pred_check_branch
          %773 = sbr.rel (%p771) target = $region36
        $region35: #{tpu_custom_call.1} parent=11 // pred_region
          _
        $region36: #{tpu_custom_call.1} parent=11 // pred_fallthru
          _
        // Predicated region
        $region37: #{tpu_custom_call.1} parent=11 // pred_check
          %p774 = pneg %p256
        $region38: #{tpu_custom_call.1} parent=11 // pred_check_branch
          %776 = sbr.rel (%p774) target = $region40
        $region39: #{tpu_custom_call.1} parent=11 // pred_region
          _
        $region40: #{tpu_custom_call.1} parent=11 // pred_fallthru
          _
        // Predicated region
        $region41: #{tpu_custom_call.1} parent=11 // pred_check
          %p777 = pneg %p277
        $region42: #{tpu_custom_call.1} parent=11 // pred_check_branch
          %779 = sbr.rel (%p777) target = $region44
        $region43: #{tpu_custom_call.1} parent=11 // pred_region
          %s781 = ssub.s32 16, 16
          %782 = vsyncadd [#allocation13], %s781
          %s784 = sshll.u32 [#allocation12], 4
          %s785 = int_to_ptr.vmem [resolvable:$true] %s784
          %787 = dma.hbm_to_vmem [thread:$0]  %s9, 16, %s785, [#allocation13]
        $region44: #{tpu_custom_call.1} parent=11 // pred_fallthru
          _
        // Predicated region
        $region45: #{tpu_custom_call.1} parent=11 // pred_check
          %p788 = pneg %p636
        $region46: #{tpu_custom_call.1} parent=11 // pred_check_branch
          %790 = sbr.rel (%p788) target = $region48
        $region47: #{tpu_custom_call.1} parent=11 // pred_region
          _
        $region48: #{tpu_custom_call.1} parent=11 // pred_fallthru
          _
        // Predicated region
        $region49: #{tpu_custom_call.1} parent=11 // pred_check
          %p791 = pneg %p657
        $region50: #{tpu_custom_call.1} parent=11 // pred_check_branch
          %793 = sbr.rel (%p791) target = $region52
        $region51: #{tpu_custom_call.1} parent=11 // pred_region
          _
        $region52: #{tpu_custom_call.1} parent=11 // pred_fallthru
          _
      $region12: #{tpu_custom_call.1} parent=5 // pred_fallthru
        _
      %p794 = scmp.lt.s32.totalorder %s45, 4
      // Predicated region
      $region53: #{tpu_custom_call.1} parent=5 // pred_check
        %p795 = pneg %p794
      $region54: #{tpu_custom_call.1} parent=5 // pred_check_branch
        %797 = sbr.rel (%p795) target = $region56
      $region55: #{tpu_custom_call.1} parent=5 // pred_region
        // Predicated region
        $region57: #{tpu_custom_call.1} parent=55 // pred_check
          %p798 = pneg %p77
        $region58: #{tpu_custom_call.1} parent=55 // pred_check_branch
          %800 = sbr.rel (%p798) target = $region60
        $region59: #{tpu_custom_call.1} parent=55 // pred_region
          %s801 = smul.u32 2, %s52
          %p802 = scmp.lt.s32.totalorder %s801, 3
          %s803 = scalar_select %p802, %s801, 3
          %s804 = smul.addr %s803, 8
          %s805 = scalar_lea.vmem %s0, %s804
          %s806 = smul.u32 2, %s52
        $region60: #{tpu_custom_call.1} parent=55 // pred_fallthru
          _
        // Predicated region
        $region61: #{tpu_custom_call.1} parent=55 // pred_check
          %p807 = pneg %p103
        $region62: #{tpu_custom_call.1} parent=55 // pred_check_branch
          %809 = sbr.rel (%p807) target = $region64
        $region63: #{tpu_custom_call.1} parent=55 // pred_region
          %s810 = sand.u32 %s93, 1
          %s811 = scalar_lea.sflag [#allocation4], %s810
          %s812 = sand.u32 %s93, 1
          %s813 = smul.addr %s812, 16
          %s814 = scalar_lea.vmem [#allocation3], %s813
          %s815 = smul.u32 2, %s52
          %s817 = ssub.s32 256, 256
          %818 = vsyncadd %s811, %s817
          %s819 = smul.addr %s815, 128
          %s820 = scalar_lea.hbm %s1, %s819
          %s821 = sshll.u32 %s814, 4
          %s822 = int_to_ptr.vmem [resolvable:$true] %s821
          %827 = dma.hbm_to_vmem [thread:$0]  %s820, 256, %s822, %s811, 128, 128, 8
        $region64: #{tpu_custom_call.1} parent=55 // pred_fallthru
          _
        // Predicated region
        $region65: #{tpu_custom_call.1} parent=55 // pred_check
          %p828 = pneg %p297
        $region66: #{tpu_custom_call.1} parent=55 // pred_check_branch
          %830 = sbr.rel (%p828) target = $region68
        $region67: #{tpu_custom_call.1} parent=55 // pred_region
          %p831 = scmp.lt.s32.totalorder %s53, 1
          %s832 = scalar_select %p831, %s53, 1
          %s833 = scalar_lea.vmem %s10, %s832
        $region68: #{tpu_custom_call.1} parent=55 // pred_fallthru
          _
        // Predicated region
        $region69: #{tpu_custom_call.1} parent=55 // pred_check
          %p834 = pneg %p323
        $region70: #{tpu_custom_call.1} parent=55 // pred_check_branch
          %836 = sbr.rel (%p834) target = $region72
        $region71: #{tpu_custom_call.1} parent=55 // pred_region
          %p837 = scmp.lt.s32.totalorder %s53, 1
          %s838 = scalar_select %p837, %s53, 1
          %s839 = scalar_lea.vmem %s11, %s838
        $region72: #{tpu_custom_call.1} parent=55 // pred_fallthru
          _
        // Predicated region
        $region73: #{tpu_custom_call.1} parent=55 // pred_check
          %p840 = pneg %p349
        $region74: #{tpu_custom_call.1} parent=55 // pred_check_branch
          %842 = sbr.rel (%p840) target = $region76
        $region75: #{tpu_custom_call.1} parent=55 // pred_region
          %p843 = scmp.lt.s32.totalorder %s53, 1
          %s844 = scalar_select %p843, %s53, 1
          %s845 = smul.addr %s844, 8
          %s846 = smul.addr %s845, 4
          %s847 = scalar_lea.vmem %s12, %s846
        $region76: #{tpu_custom_call.1} parent=55 // pred_fallthru
          _
        // Predicated region
        $region77: #{tpu_custom_call.1} parent=55 // pred_check
          %p848 = pneg %p375
        $region78: #{tpu_custom_call.1} parent=55 // pred_check_branch
          %850 = sbr.rel (%p848) target = $region80
        $region79: #{tpu_custom_call.1} parent=55 // pred_region
          %p851 = scmp.lt.s32.totalorder %s53, 1
          %s852 = scalar_select %p851, %s53, 1
          %s853 = smul.addr %s852, 8
          %s854 = smul.addr %s853, 4
          %s855 = scalar_lea.vmem %s13, %s854
        $region80: #{tpu_custom_call.1} parent=55 // pred_fallthru
          _
        // Predicated region
        $region81: #{tpu_custom_call.1} parent=55 // pred_check
          %p856 = pneg %p401
        $region82: #{tpu_custom_call.1} parent=55 // pred_check_branch
          %858 = sbr.rel (%p856) target = $region84
        $region83: #{tpu_custom_call.1} parent=55 // pred_region
          %p859 = scmp.lt.s32.totalorder %s53, 1
          %s860 = scalar_select %p859, %s53, 1
          %s861 = smul.addr %s860, 8
          %s862 = smul.addr %s861, 4
          %s863 = scalar_lea.vmem %s14, %s862
        $region84: #{tpu_custom_call.1} parent=55 // pred_fallthru
          _
        // Predicated region
        $region85: #{tpu_custom_call.1} parent=55 // pred_check
          %p864 = pneg %p427
        $region86: #{tpu_custom_call.1} parent=55 // pred_check_branch
          %866 = sbr.rel (%p864) target = $region88
        $region87: #{tpu_custom_call.1} parent=55 // pred_region
          %p867 = scmp.lt.s32.totalorder %s53, 1
          %s868 = scalar_select %p867, %s53, 1
          %s869 = smul.addr %s868, 8
          %s870 = smul.addr %s869, 4
          %s871 = scalar_lea.vmem %s15, %s870
        $region88: #{tpu_custom_call.1} parent=55 // pred_fallthru
          _
        // Predicated region
        $region89: #{tpu_custom_call.1} parent=55 // pred_check
          %p872 = pneg %p453
        $region90: #{tpu_custom_call.1} parent=55 // pred_check_branch
          %874 = sbr.rel (%p872) target = $region92
        $region91: #{tpu_custom_call.1} parent=55 // pred_region
          %p875 = scmp.lt.s32.totalorder %s53, 1
          %s876 = scalar_select %p875, %s53, 1
          %s877 = scalar_lea.vmem %s16, %s876
        $region92: #{tpu_custom_call.1} parent=55 // pred_fallthru
          _
        // Predicated region
        $region93: #{tpu_custom_call.1} parent=55 // pred_check
          %p878 = pneg %p479
        $region94: #{tpu_custom_call.1} parent=55 // pred_check_branch
          %880 = sbr.rel (%p878) target = $region96
        $region95: #{tpu_custom_call.1} parent=55 // pred_region
          %p881 = scmp.lt.s32.totalorder %s53, 1
          %s882 = scalar_select %p881, %s53, 1
          %s883 = scalar_lea.vmem %s17, %s882
        $region96: #{tpu_custom_call.1} parent=55 // pred_fallthru
          _
        // Predicated region
        $region97: #{tpu_custom_call.1} parent=55 // pred_check
          %p884 = pneg %p505
        $region98: #{tpu_custom_call.1} parent=55 // pred_check_branch
          %886 = sbr.rel (%p884) target = $region100
        $region99: #{tpu_custom_call.1} parent=55 // pred_region
          %p887 = scmp.lt.s32.totalorder %s53, 1
          %s888 = scalar_select %p887, %s53, 1
          %s889 = scalar_lea.vmem %s18, %s888
        $region100: #{tpu_custom_call.1} parent=55 // pred_fallthru
          _
        // Predicated region
        $region101: #{tpu_custom_call.1} parent=55 // pred_check
          %p890 = pneg %p531
        $region102: #{tpu_custom_call.1} parent=55 // pred_check_branch
          %892 = sbr.rel (%p890) target = $region104
        $region103: #{tpu_custom_call.1} parent=55 // pred_region
          %p893 = scmp.lt.s32.totalorder %s53, 1
          %s894 = scalar_select %p893, %s53, 1
          %s895 = smul.addr %s894, 16
          %s896 = smul.addr %s895, 4
          %s897 = scalar_lea.vmem %s19, %s896
        $region104: #{tpu_custom_call.1} parent=55 // pred_fallthru
          _
        // Predicated region
        $region105: #{tpu_custom_call.1} parent=55 // pred_check
          %p898 = pneg %p557
        $region106: #{tpu_custom_call.1} parent=55 // pred_check_branch
          %900 = sbr.rel (%p898) target = $region108
        $region107: #{tpu_custom_call.1} parent=55 // pred_region
          %p901 = scmp.lt.s32.totalorder %s53, 1
          %s902 = scalar_select %p901, %s53, 1
          %s903 = smul.addr %s902, 2
          %s904 = scalar_lea.vmem %s20, %s903
        $region108: #{tpu_custom_call.1} parent=55 // pred_fallthru
          _
        // Predicated region
        $region109: #{tpu_custom_call.1} parent=55 // pred_check
          %p905 = pneg %p583
        $region110: #{tpu_custom_call.1} parent=55 // pred_check_branch
          %907 = sbr.rel (%p905) target = $region112
        $region111: #{tpu_custom_call.1} parent=55 // pred_region
          %p908 = scmp.lt.s32.totalorder %s53, 1
          %s909 = scalar_select %p908, %s53, 1
          %s910 = smul.addr %s909, 32
          %s911 = smul.addr %s910, 4
          %s912 = scalar_lea.vmem %s21, %s911
        $region112: #{tpu_custom_call.1} parent=55 // pred_fallthru
          _
        // Predicated region
        $region113: #{tpu_custom_call.1} parent=55 // pred_check
          %p913 = pneg %p609
        $region114: #{tpu_custom_call.1} parent=55 // pred_check_branch
          %915 = sbr.rel (%p913) target = $region116
        $region115: #{tpu_custom_call.1} parent=55 // pred_region
          %p916 = scmp.lt.s32.totalorder %s53, 1
          %s917 = scalar_select %p916, %s53, 1
          %s918 = scalar_lea.vmem %s22, %s917
        $region116: #{tpu_custom_call.1} parent=55 // pred_fallthru
          _
      $region56: #{tpu_custom_call.1} parent=5 // pred_fallthru
        _
      %p919 = scmp.le.s32.totalorder 1, %s45
      %p920 = scmp.lt.s32.totalorder %s45, 5
      %p921 = pnand %p919, %p920
      %p922 = pneg %p921
      // Predicated region
      $region117: #{tpu_custom_call.1} parent=5 // pred_check
        _
      $region118: #{tpu_custom_call.1} parent=5 // pred_check_branch
        %924 = sbr.rel (%p921) target = $region120
      $region119: #{tpu_custom_call.1} parent=5 // pred_region
        %s925 = ssub.s32 %s45, 1
        %s926 = sand.u32 %s96, 1
        %s927 = scalar_lea.sflag [#allocation4], %s926
        %s928 = sand.u32 %s96, 1
        %s929 = smul.addr %s928, 16
        %s930 = scalar_lea.vmem [#allocation3], %s929
        // Predicated region
        $region121: #{tpu_custom_call.1} parent=119 // pred_check
          %p931 = pneg %p109
        $region122: #{tpu_custom_call.1} parent=119 // pred_check_branch
          %933 = sbr.rel (%p931) target = $region124
        $region123: #{tpu_custom_call.1} parent=119 // pred_region
          %934 = dma.done %s927, 256
        $region124: #{tpu_custom_call.1} parent=119 // pred_fallthru
          _
        // Predicated region
        $region125: #{tpu_custom_call.1} parent=119 // pred_check
          %p935 = pneg %p130
        $region126: #{tpu_custom_call.1} parent=119 // pred_check_branch
          %937 = sbr.rel (%p935) target = $region128
        $region127: #{tpu_custom_call.1} parent=119 // pred_region
          %938 = dma.done [#allocation7], 16
        $region128: #{tpu_custom_call.1} parent=119 // pred_fallthru
          _
        // Predicated region
        $region129: #{tpu_custom_call.1} parent=119 // pred_check
          %p939 = pneg %p151
        $region130: #{tpu_custom_call.1} parent=119 // pred_check_branch
          %941 = sbr.rel (%p939) target = $region132
        $region131: #{tpu_custom_call.1} parent=119 // pred_region
          %942 = dma.done [#allocation7], 16
        $region132: #{tpu_custom_call.1} parent=119 // pred_fallthru
          _
        // Predicated region
        $region133: #{tpu_custom_call.1} parent=119 // pred_check
          %p943 = pneg %p172
        $region134: #{tpu_custom_call.1} parent=119 // pred_check_branch
          %945 = sbr.rel (%p943) target = $region136
        $region135: #{tpu_custom_call.1} parent=119 // pred_region
          %946 = dma.done [#allocation10], 16
        $region136: #{tpu_custom_call.1} parent=119 // pred_fallthru
          _
        // Predicated region
        $region137: #{tpu_custom_call.1} parent=119 // pred_check
          %p947 = pneg %p193
        $region138: #{tpu_custom_call.1} parent=119 // pred_check_branch
          %949 = sbr.rel (%p947) target = $region140
        $region139: #{tpu_custom_call.1} parent=119 // pred_region
          %950 = dma.done [#allocation10], 16
        $region140: #{tpu_custom_call.1} parent=119 // pred_fallthru
          _
        // Predicated region
        $region141: #{tpu_custom_call.1} parent=119 // pred_check
          %p951 = pneg %p277
        $region142: #{tpu_custom_call.1} parent=119 // pred_check_branch
          %953 = sbr.rel (%p951) target = $region144
        $region143: #{tpu_custom_call.1} parent=119 // pred_region
          %954 = dma.done [#allocation13], 16
        $region144: #{tpu_custom_call.1} parent=119 // pred_fallthru
          _
        %s955 = smul.u32 2, %s54
        %p956 = scmp.lt.s32.totalorder %s955, 3
        %s957 = scalar_select %p956, %s955, 3
        %s958 = smul.addr %s957, 8
        %s959 = scalar_lea.vmem %s0, %s958
        %p960 = pneg %p83
        %p961 = pneg %p80
        %s962 = sand.u32 %s96, 1
        %s963 = scalar_lea.sflag [#allocation4], %s962
        %s964 = sand.u32 %s96, 1
        %s965 = smul.addr %s964, 16
        %s966 = scalar_lea.vmem [#allocation3], %s965
        %p967 = pneg %p109
        %p968 = pneg %p106
        %p969 = pneg %p130
        %p970 = pneg %p127
        %p971 = pneg %p151
        %p972 = pneg %p148
        %p973 = pneg %p172
        %p974 = pneg %p169
        %p975 = pneg %p193
        %p976 = pneg %p190
        %p977 = pneg %p214
        %p978 = pneg %p211
        %p979 = pneg %p235
        %p980 = pneg %p232
        %p981 = pneg %p256
        %p982 = pneg %p253
        %p983 = pneg %p277
        %p984 = pneg %p274
        %p985 = scmp.lt.s32.totalorder %s55, 1
        %s986 = scalar_select %p985, %s55, 1
        %s987 = scalar_lea.vmem %s10, %s986
        %p988 = pneg %p303
        %p989 = pneg %p300
        %p990 = scmp.lt.s32.totalorder %s55, 1
        %s991 = scalar_select %p990, %s55, 1
        %s992 = scalar_lea.vmem %s11, %s991
        %p993 = pneg %p329
        %p994 = pneg %p326
        %p995 = scmp.lt.s32.totalorder %s55, 1
        %s996 = scalar_select %p995, %s55, 1
        %s997 = smul.addr %s996, 8
        %s998 = smul.addr %s997, 4
        %s999 = scalar_lea.vmem %s12, %s998
        %p1000 = pneg %p355
        %p1001 = pneg %p352
        %p1002 = scmp.lt.s32.totalorder %s55, 1
        %s1003 = scalar_select %p1002, %s55, 1
        %s1004 = smul.addr %s1003, 8
        %s1005 = smul.addr %s1004, 4
        %s1006 = scalar_lea.vmem %s13, %s1005
        %p1007 = pneg %p381
        %p1008 = pneg %p378
        %p1009 = scmp.lt.s32.totalorder %s55, 1
        %s1010 = scalar_select %p1009, %s55, 1
        %s1011 = smul.addr %s1010, 8
        %s1012 = smul.addr %s1011, 4
        %s1013 = scalar_lea.vmem %s14, %s1012
        %p1014 = pneg %p407
        %p1015 = pneg %p404
        %p1016 = scmp.lt.s32.totalorder %s55, 1
        %s1017 = scalar_select %p1016, %s55, 1
        %s1018 = smul.addr %s1017, 8
        %s1019 = smul.addr %s1018, 4
        %s1020 = scalar_lea.vmem %s15, %s1019
        %p1021 = pneg %p433
        %p1022 = pneg %p430
        %p1023 = scmp.lt.s32.totalorder %s55, 1
        %s1024 = scalar_select %p1023, %s55, 1
        %s1025 = scalar_lea.vmem %s16, %s1024
        %p1026 = pneg %p459
        %p1027 = pneg %p456
        %p1028 = scmp.lt.s32.totalorder %s55, 1
        %s1029 = scalar_select %p1028, %s55, 1
        %s1030 = scalar_lea.vmem %s17, %s1029
        %p1031 = pneg %p485
        %p1032 = pneg %p482
        %p1033 = scmp.lt.s32.totalorder %s55, 1
        %s1034 = scalar_select %p1033, %s55, 1
        %s1035 = scalar_lea.vmem %s18, %s1034
        %p1036 = pneg %p511
        %p1037 = pneg %p508
        %p1038 = scmp.lt.s32.totalorder %s55, 1
        %s1039 = scalar_select %p1038, %s55, 1
        %s1040 = smul.addr %s1039, 16
        %s1041 = smul.addr %s1040, 4
        %s1042 = scalar_lea.vmem %s19, %s1041
        %p1043 = pneg %p537
        %p1044 = pneg %p534
        %p1045 = scmp.lt.s32.totalorder %s55, 1
        %s1046 = scalar_select %p1045, %s55, 1
        %s1047 = smul.addr %s1046, 2
        %s1048 = scalar_lea.vmem %s20, %s1047
        %p1049 = pneg %p563
        %p1050 = pneg %p560
        %p1051 = scmp.lt.s32.totalorder %s55, 1
        %s1052 = scalar_select %p1051, %s55, 1
        %s1053 = smul.addr %s1052, 32
        %s1054 = smul.addr %s1053, 4
        %s1055 = scalar_lea.vmem %s21, %s1054
        %p1056 = pneg %p589
        %p1057 = pneg %p586
        %p1058 = scmp.lt.s32.totalorder %s55, 1
        %s1059 = scalar_select %p1058, %s55, 1
        %s1060 = scalar_lea.vmem %s22, %s1059
        %p1061 = pneg %p615
        %p1062 = pneg %p612
        %p1063 = pneg %p636
        %p1064 = pneg %p633
        %p1065 = pneg %p657
        %p1066 = pneg %p654
        %p1067 = pneg %p683
        %p1068 = pneg %p680
        %s1069 = sand.u32 %s670, 1
        %s1070 = scalar_lea.sflag [#allocation5], %s1069
        %s1071 = sand.u32 %s670, 1
        %s1072 = smul.addr %s1071, 16
        %s1073 = scalar_lea.vmem [#allocation14], %s1072
        %p1074 = pneg %p709
        %p1075 = pneg %p706
        %s1076 = sand.u32 %s696, 1
        %s1077 = scalar_lea.sflag [#allocation16], %s1076
        %s1078 = sand.u32 %s696, 1
        %s1079 = smul.addr %s1078, 16
        %s1080 = scalar_lea.vmem [#allocation15], %s1079
        %s1081 = smul.u32 2, %s54
        %p1082 = scmp.lt.s32.totalorder %s1081, 3
        %s1083 = scalar_select %p1082, %s1081, 3
        %s1084 = smul.addr %s1083, 8
        %s1085 = scalar_lea.vmem %s0, %s1084
        %s1086 = smul.u32 2, %s54
        %s1087 = smul.u32 2, %s54
        %p1088 = scmp.lt.s32.totalorder %s55, 1
        %s1089 = scalar_select %p1088, %s55, 1
        %s1090 = scalar_lea.vmem %s10, %s1089
        %p1091 = scmp.lt.s32.totalorder %s55, 1
        %s1092 = scalar_select %p1091, %s55, 1
        %s1093 = scalar_lea.vmem %s11, %s1092
        %p1094 = scmp.lt.s32.totalorder %s55, 1
        %s1095 = scalar_select %p1094, %s55, 1
        %s1096 = smul.addr %s1095, 8
        %s1097 = smul.addr %s1096, 4
        %s1098 = scalar_lea.vmem %s12, %s1097
        %p1099 = scmp.lt.s32.totalorder %s55, 1
        %s1100 = scalar_select %p1099, %s55, 1
        %s1101 = smul.addr %s1100, 8
        %s1102 = smul.addr %s1101, 4
        %s1103 = scalar_lea.vmem %s13, %s1102
        %p1104 = scmp.lt.s32.totalorder %s55, 1
        %s1105 = scalar_select %p1104, %s55, 1
        %s1106 = smul.addr %s1105, 8
        %s1107 = smul.addr %s1106, 4
        %s1108 = scalar_lea.vmem %s14, %s1107
        %p1109 = scmp.lt.s32.totalorder %s55, 1
        %s1110 = scalar_select %p1109, %s55, 1
        %s1111 = smul.addr %s1110, 8
        %s1112 = smul.addr %s1111, 4
        %s1113 = scalar_lea.vmem %s15, %s1112
        %p1114 = scmp.lt.s32.totalorder %s55, 1
        %s1115 = scalar_select %p1114, %s55, 1
        %s1116 = scalar_lea.vmem %s16, %s1115
        %p1117 = scmp.lt.s32.totalorder %s55, 1
        %s1118 = scalar_select %p1117, %s55, 1
        %s1119 = scalar_lea.vmem %s17, %s1118
        %p1120 = scmp.lt.s32.totalorder %s55, 1
        %s1121 = scalar_select %p1120, %s55, 1
        %s1122 = scalar_lea.vmem %s18, %s1121
        %p1123 = scmp.lt.s32.totalorder %s55, 1
        %s1124 = scalar_select %p1123, %s55, 1
        %s1125 = smul.addr %s1124, 16
        %s1126 = smul.addr %s1125, 4
        %s1127 = scalar_lea.vmem %s19, %s1126
        %p1128 = scmp.lt.s32.totalorder %s55, 1
        %s1129 = scalar_select %p1128, %s55, 1
        %s1130 = smul.addr %s1129, 2
        %s1131 = scalar_lea.vmem %s20, %s1130
        %p1132 = scmp.lt.s32.totalorder %s55, 1
        %s1133 = scalar_select %p1132, %s55, 1
        %s1134 = smul.addr %s1133, 32
        %s1135 = smul.addr %s1134, 4
        %s1136 = scalar_lea.vmem %s21, %s1135
        %p1137 = scmp.lt.s32.totalorder %s55, 1
        %s1138 = scalar_select %p1137, %s55, 1
        %s1139 = scalar_lea.vmem %s22, %s1138
        %s1140 = smul.u32 2, %s54
        %s1141 = smul.u32 2, %s54
        %p1143 = scmp.eq.s32.totalorder %s55, 0
        // Predicated region
        $region145: #{tpu_custom_call.1} parent=119 // pred_check
          %p1144 = pneg %p1143
        $region146: #{tpu_custom_call.1} parent=119 // pred_check_branch
          %1146 = sbr.rel (%p1144) target = $region148
        $region147: #{tpu_custom_call.1} parent=119 // pred_region
          %v1147 = vld [vmem:[%s1085] sm:$0xff]
          %v1148 = vld [vmem:[%s1085 + $0x8] sm:$0xff]
          %v1149 = vld [vmem:[#allocation6] sm:$0x1]
          %v1150 = vld [vmem:[#allocation8] sm:$0x1]
          %vm1151 = vcmask 64512
          %v1152 = vsel %vm1151, %v1147, 0.0
          %1153 = vadd.xlane.f32.xlu0 %v1152
          %v1154 = vpop.xlane.xlu0 %1153
          %v1155 = vsel %vm1151, %v1148, 0.0
          %1156 = vadd.xlane.f32.xlu0 %v1155
          %v1157 = vpop.xlane.xlu0 %1156
          %v1158 = vrcp.pop 8.0
          %v1159 = vmul.f32 %v1154, %v1158
          %v1160 = vmul.f32 %v1157, %v1158
          %v1161 = vsub.f32 %v1147, %v1159
          %v1162 = vsub.f32 %v1148, %v1160
          %v1163 = vmul.f32 %v1161, %v1161
          %v1164 = vmul.f32 %v1162, %v1162
          %v1165 = vsel %vm1151, %v1163, 0.0
          %1166 = vadd.xlane.f32.xlu0 %v1165
          %v1167 = vpop.xlane.xlu0 %1166
          %v1168 = vsel %vm1151, %v1164, 0.0
          %1169 = vadd.xlane.f32.xlu0 %v1168
          %v1170 = vpop.xlane.xlu0 %1169
          %v1171 = vmul.f32 %v1167, %v1158
          %v1172 = vmul.f32 %v1170, %v1158
          %v1173 = vadd.f32 %v1171, 1e-05
          %v1174 = vadd.f32 %v1172, 1e-05
          %v1175 = vrsqrt.pop %v1173
          %v1176 = vrsqrt.pop %v1174
          %v1177 = vmul.f32 %v1161, %v1175
          %v1178 = vmul.f32 %v1162, %v1176
          %v1180 = vlaneseq
          %v1181 = vshrl.u32 %v1180, 7
          %v1182 = vsub.s32 0, %v1181
          %v1183 = vrot.slane %v1149, %v1182
          %v1185 = vmul.f32 %v1177, %v1183
          %v1186 = vmul.f32 %v1178, %v1183
          %v1188 = vlaneseq
          %v1189 = vshrl.u32 %v1188, 7
          %v1190 = vsub.s32 0, %v1189
          %v1191 = vrot.slane %v1150, %v1190
          %v1193 = vadd.f32 %v1185, %v1191
          %v1194 = vadd.f32 %v1186, %v1191
          %v1195 = vld [vmem:[#allocation9] sm:$0x1]
          %v1196 = vld [vmem:[#allocation11] sm:$0x1]
          %1199 = vrot.lane.b32.xlu0 %v1147, 120
          %v1200 = vpop.permute.xlu0 %1199
          %1201 = vrot.lane.b32.xlu0 %v1148, 120
          %v1202 = vpop.permute.xlu0 %1201
          %v1205 = vsel %vm1151, %v1200, 0.0
          %1206 = vadd.xlane.f32.xlu0 %v1205
          %v1207 = vpop.xlane.xlu0 %1206
          %v1208 = vsel %vm1151, %v1202, 0.0
          %1209 = vadd.xlane.f32.xlu0 %v1208
          %v1210 = vpop.xlane.xlu0 %1209
          %v1211 = vmul.f32 %v1207, %v1158
          %v1212 = vmul.f32 %v1210, %v1158
          %v1213 = vsub.f32 %v1147, %v1211
          %v1214 = vsub.f32 %v1148, %v1212
          %v1215 = vmul.f32 %v1213, %v1213
          %v1216 = vmul.f32 %v1214, %v1214
          %1219 = vrot.lane.b32.xlu0 %v1215, 120
          %v1220 = vpop.permute.xlu0 %1219
          %1221 = vrot.lane.b32.xlu0 %v1216, 120
          %v1222 = vpop.permute.xlu0 %1221
          %v1225 = vsel %vm1151, %v1220, 0.0
          %1226 = vadd.xlane.f32.xlu0 %v1225
          %v1227 = vpop.xlane.xlu0 %1226
          %v1228 = vsel %vm1151, %v1222, 0.0
          %1229 = vadd.xlane.f32.xlu0 %v1228
          %v1230 = vpop.xlane.xlu0 %1229
          %v1231 = vmul.f32 %v1227, %v1158
          %v1232 = vmul.f32 %v1230, %v1158
          %v1233 = vadd.f32 %v1231, 1e-05
          %v1234 = vadd.f32 %v1232, 1e-05
          %v1235 = vrsqrt.pop %v1233
          %v1236 = vrsqrt.pop %v1234
          %v1237 = vmul.f32 %v1213, %v1235
          %v1238 = vmul.f32 %v1214, %v1236
          %v1240 = vlaneseq
          %v1241 = vshrl.u32 %v1240, 7
          %v1242 = vsub.s32 0, %v1241
          %v1243 = vrot.slane %v1195, %v1242
          %1244 = vrot.lane.b32.xlu0 %v1243, 8
          %v1245 = vpop.permute.xlu0 %1244
          %v1247 = vmul.f32 %v1237, %v1245
          %v1248 = vmul.f32 %v1238, %v1245
          %v1250 = vlaneseq
          %v1251 = vshrl.u32 %v1250, 7
          %v1252 = vsub.s32 0, %v1251
          %v1253 = vrot.slane %v1196, %v1252
          %1254 = vrot.lane.b32.xlu0 %v1253, 8
          %v1255 = vpop.permute.xlu0 %1254
          %v1257 = vadd.f32 %v1247, %v1255
          %v1258 = vadd.f32 %v1248, %v1255
          %v1259 = vpack.c.bf16 %v1194, %v1193
          %v1260 = vld [vmem:[%s6] sm:$0xf]
          %v1261 = vpack.c.bf16 %v1258, %v1257
          %v1262 = vld [vmem:[%s7] sm:$0xf]
          %1264 = vrot.lane.b32.xlu0 %v1261, 120
          %v1265 = vpop.permute.xlu0 %1264
          %v1267 = vsel %vm1151, %v1265, 0
          %vm1269 = vcmask 1043456
          %v1271 = vsel %vm1269, %v1262, 0
          %1273 = vmatprep.subr.bf16.mxu0 0
          %1274 = vmatpush1.bf16.msra.mxu0 0
          %1275 = vmatprep.subr.bf16.mxu0 0
          %1276 = vmatpush1.bf16.msra.mxu0 0
          %1277 = vmatprep.subr.bf16.mxu0 0
          %1278 = vmatpush1.bf16.msra.mxu0 0
          %1279 = vmatprep.subr.bf16.mxu0 0
          %1280 = vmatpush1.bf16.msra.mxu0 0
          %1281 = vmatprep.subr.bf16.mxu0 0
          %1282 = vmatpush1.bf16.msra.mxu0 0
          %1283 = vmatprep.subr.bf16.mxu0 0
          %1284 = vmatpush1.bf16.msra.mxu0 0
          %1285 = vmatprep.subr.bf16.mxu0 0
          %1286 = vmatpush1.bf16.msra.mxu0 0
          %1287 = vmatprep.subr.bf16.mxu0 0
          %1288 = vmatpush1.bf16.msra.mxu0 %v1271
          %1289 = vmatprep.subr.bf16.mxu0 0
          %1290 = vmatpush2.bf16.msra.mxu0 0
          %1291 = vmatprep.subr.bf16.mxu0 0
          %1292 = vmatpush2.bf16.msra.mxu0 0
          %1293 = vmatprep.subr.bf16.mxu0 0
          %1294 = vmatpush2.bf16.msra.mxu0 0
          %1295 = vmatprep.subr.bf16.mxu0 0
          %1296 = vmatpush2.bf16.msra.mxu0 0
          %1297 = vmatprep.subr.bf16.mxu0 0
          %1298 = vmatpush2.bf16.msra.mxu0 0
          %1299 = vmatprep.subr.bf16.mxu0 0
          %1300 = vmatpush2.bf16.msra.mxu0 0
          %1301 = vmatprep.subr.bf16.mxu0 0
          %1302 = vmatpush2.bf16.msra.mxu0 0
          %1303 = vmatprep.subr.bf16.mxu0 0
          %1304 = vmatpush2.bf16.msra.mxu0 0
          %1305 = vmatprep.mubr.bf16.mxu0 0
          %1306 = vmatmul.mubr.bf16.gmra.mxu0 %v1267
          %v1307 = vpop.f32.mrf.mxu0
          %v1308 = vadd.f32 0.0, %v1307
          %v1309 = vpop.f32.mrf.mxu0
          %v1310 = vpop.f32.mrf.mxu0
          %v1311 = vadd.f32 0.0, %v1310
          %v1312 = vpop.f32.mrf.mxu0
          %1313 = vdwg.mxu0
          %v1315 = vsel %vm1151, %v1259, 0
          %v1318 = vsel %vm1269, %v1260, 0
          %1320 = vmatprep.subr.bf16.mxu0 0
          %1321 = vmatpush1.bf16.msra.mxu0 0
          %1322 = vmatprep.subr.bf16.mxu0 0
          %1323 = vmatpush1.bf16.msra.mxu0 0
          %1324 = vmatprep.subr.bf16.mxu0 0
          %1325 = vmatpush1.bf16.msra.mxu0 0
          %1326 = vmatprep.subr.bf16.mxu0 0
          %1327 = vmatpush1.bf16.msra.mxu0 0
          %1328 = vmatprep.subr.bf16.mxu0 0
          %1329 = vmatpush1.bf16.msra.mxu0 0
          %1330 = vmatprep.subr.bf16.mxu0 0
          %1331 = vmatpush1.bf16.msra.mxu0 0
          %1332 = vmatprep.subr.bf16.mxu0 0
          %1333 = vmatpush1.bf16.msra.mxu0 0
          %1334 = vmatprep.subr.bf16.mxu0 0
          %1335 = vmatpush1.bf16.msra.mxu0 %v1318
          %1336 = vmatprep.subr.bf16.mxu0 0
          %1337 = vmatpush2.bf16.msra.mxu0 0
          %1338 = vmatprep.subr.bf16.mxu0 0
          %1339 = vmatpush2.bf16.msra.mxu0 0
          %1340 = vmatprep.subr.bf16.mxu0 0
          %1341 = vmatpush2.bf16.msra.mxu0 0
          %1342 = vmatprep.subr.bf16.mxu0 0
          %1343 = vmatpush2.bf16.msra.mxu0 0
          %1344 = vmatprep.subr.bf16.mxu0 0
          %1345 = vmatpush2.bf16.msra.mxu0 0
          %1346 = vmatprep.subr.bf16.mxu0 0
          %1347 = vmatpush2.bf16.msra.mxu0 0
          %1348 = vmatprep.subr.bf16.mxu0 0
          %1349 = vmatpush2.bf16.msra.mxu0 0
          %1350 = vmatprep.subr.bf16.mxu0 0
          %1351 = vmatpush2.bf16.msra.mxu0 0
          %1352 = vmatprep.mubr.bf16.mxu0 0
          %1353 = vmatmul.mubr.bf16.gmra.mxu0 %v1315
          %v1354 = vpop.f32.mrf.mxu0
          %v1355 = vadd.f32 %v1308, %v1354
          %v1356 = vpop.f32.mrf.mxu0
          %v1357 = vpop.f32.mrf.mxu0
          %v1358 = vadd.f32 %v1311, %v1357
          %v1359 = vpop.f32.mrf.mxu0
          %1360 = vdwg.mxu0
          %v1361 = vpack.c.bf16 %v1148, %v1147
          %v1362 = vld [vmem:[%s8] sm:$0xf]
          %v1363 = vld [vmem:[%s8 + $0x4] sm:$0xf]
          %1365 = vrot.lane.b32.xlu0 %v1361, 112
          %v1366 = vpop.permute.xlu0 %1365
          %v1369 = vunpack.c.l.b16 %v1362
          %v1370 = vunpack.c.l.b16 %v1363
          %v1371 = vpack.c.b16 %v1370, %v1369
          %vm1373 = vcmask 130048
          %v1375 = vsel %vm1373, %v1366, 0
          %1377 = vmatprep.subr.bf16.mxu0 0
          %1378 = vmatpush1.bf16.msra.mxu0 0
          %1379 = vmatprep.subr.bf16.mxu0 0
          %1380 = vmatpush1.bf16.msra.mxu0 0
          %1381 = vmatprep.subr.bf16.mxu0 0
          %1382 = vmatpush1.bf16.msra.mxu0 0
          %1383 = vmatprep.subr.bf16.mxu0 0
          %1384 = vmatpush1.bf16.msra.mxu0 0
          %1385 = vmatprep.subr.bf16.mxu0 0
          %1386 = vmatpush1.bf16.msra.mxu0 0
          %1387 = vmatprep.subr.bf16.mxu0 0
          %1388 = vmatpush1.bf16.msra.mxu0 0
          %1389 = vmatprep.subr.bf16.mxu0 0
          %1390 = vmatpush1.bf16.msra.mxu0 0
          %1391 = vmatprep.subr.bf16.mxu0 0
          %1392 = vmatpush1.bf16.msra.mxu0 %v1371
          %1393 = vmatprep.subr.bf16.mxu0 0
          %1394 = vmatpush2.bf16.msra.mxu0 0
          %1395 = vmatprep.subr.bf16.mxu0 0
          %1396 = vmatpush2.bf16.msra.mxu0 0
          %1397 = vmatprep.subr.bf16.mxu0 0
          %1398 = vmatpush2.bf16.msra.mxu0 0
          %1399 = vmatprep.subr.bf16.mxu0 0
          %1400 = vmatpush2.bf16.msra.mxu0 0
          %1401 = vmatprep.subr.bf16.mxu0 0
          %1402 = vmatpush2.bf16.msra.mxu0 0
          %1403 = vmatprep.subr.bf16.mxu0 0
          %1404 = vmatpush2.bf16.msra.mxu0 0
          %1405 = vmatprep.subr.bf16.mxu0 0
          %1406 = vmatpush2.bf16.msra.mxu0 0
          %1407 = vmatprep.subr.bf16.mxu0 0
          %1408 = vmatpush2.bf16.msra.mxu0 0
          %1409 = vmatprep.mubr.bf16.mxu0 0
          %1410 = vmatmul.mubr.bf16.gmra.mxu0 %v1375
          %v1411 = vpop.f32.mrf.mxu0
          %v1412 = vadd.f32 0.0, %v1411
          %v1413 = vpop.f32.mrf.mxu0
          %v1414 = vpop.f32.mrf.mxu0
          %v1415 = vadd.f32 0.0, %v1414
          %v1416 = vpop.f32.mrf.mxu0
          %1417 = vdwg.mxu0
          %v1418 = vadd.f32 %v1355, %v1412
          %v1419 = vadd.f32 %v1358, %v1415
          %v1420 = vld [vmem:[#allocation12] sm:$0x1]
          %v1422 = vlaneseq
          %v1423 = vshrl.u32 %v1422, 7
          %v1424 = vsub.s32 0, %v1423
          %v1425 = vrot.slane %v1420, %v1424
          %v1427 = vadd.f32 %v1418, %v1425
          %v1428 = vadd.f32 %v1419, %v1425
          %vm1429 = vcmask 523264
          %1430 = vst.msk [vmem:[#allocation2] sm:$0xff] %vm1429, %v1427
          %1431 = vst.msk [vmem:[#allocation2 + $0x8] sm:$0xff] %vm1429, %v1428
        $region148: #{tpu_custom_call.1} parent=119 // pred_fallthru
          _
        %v1432 = vld [vmem:[#allocation2] sm:$0xff]
        %v1433 = vld [vmem:[#allocation2 + $0x8] sm:$0xff]
        %v1434 = vld [vmem:[%s930] sm:$0xff]
        %v1435 = vld [vmem:[%s930 + $0x8] sm:$0xff]
        %v1436 = vld [vmem:[%s1090] sm:$0x1]
        %v1437 = vld [vmem:[%s1093] sm:$0x1]
        %vm1438 = vcmask 523264
        %v1439 = vsel %vm1438, %v1432, 0.0
        %1440 = vadd.xlane.f32.xlu0 %v1439
        %v1441 = vpop.xlane.xlu0 %1440
        %v1442 = vsel %vm1438, %v1433, 0.0
        %1443 = vadd.xlane.f32.xlu0 %v1442
        %v1444 = vpop.xlane.xlu0 %1443
        %v1445 = vrcp.pop 64.0
        %v1446 = vmul.f32 %v1441, %v1445
        %v1447 = vmul.f32 %v1444, %v1445
        %v1448 = vsub.f32 %v1432, %v1446
        %v1449 = vsub.f32 %v1433, %v1447
        %v1450 = vmul.f32 %v1448, %v1448
        %v1451 = vmul.f32 %v1449, %v1449
        %v1452 = vsel %vm1438, %v1450, 0.0
        %1453 = vadd.xlane.f32.xlu0 %v1452
        %v1454 = vpop.xlane.xlu0 %1453
        %v1455 = vsel %vm1438, %v1451, 0.0
        %1456 = vadd.xlane.f32.xlu0 %v1455
        %v1457 = vpop.xlane.xlu0 %1456
        %v1458 = vmul.f32 %v1454, %v1445
        %v1459 = vmul.f32 %v1457, %v1445
        %v1460 = vadd.f32 %v1458, 1e-05
        %v1461 = vadd.f32 %v1459, 1e-05
        %v1462 = vrsqrt.pop %v1460
        %v1463 = vrsqrt.pop %v1461
        %v1464 = vmul.f32 %v1448, %v1462
        %v1465 = vmul.f32 %v1449, %v1463
        %v1467 = vlaneseq
        %v1468 = vshrl.u32 %v1467, 7
        %v1469 = vsub.s32 0, %v1468
        %v1470 = vrot.slane %v1436, %v1469
        %v1472 = vmul.f32 %v1464, %v1470
        %v1473 = vmul.f32 %v1465, %v1470
        %v1475 = vlaneseq
        %v1476 = vshrl.u32 %v1475, 7
        %v1477 = vsub.s32 0, %v1476
        %v1478 = vrot.slane %v1437, %v1477
        %v1480 = vadd.f32 %v1472, %v1478
        %v1481 = vadd.f32 %v1473, %v1478
        %v1482 = vpack.c.bf16 %v1481, %v1480
        %v1483 = vld [vmem:[%s1098] sm:$0xf]
        %v1484 = vld [vmem:[%s1098 + $0x4] sm:$0xf]
        %v1485 = vld [vmem:[%s1098 + $0x8] sm:$0xf]
        %v1486 = vld [vmem:[%s1098 + $0xc] sm:$0xf]
        %v1487 = vld [vmem:[%s1098 + $0x10] sm:$0xf]
        %v1488 = vld [vmem:[%s1098 + $0x14] sm:$0xf]
        %v1489 = vld [vmem:[%s1098 + $0x18] sm:$0xf]
        %v1490 = vld [vmem:[%s1098 + $0x1c] sm:$0xf]
        %v1499 = vunpack.c.l.b16 %v1483
        %v1500 = vunpack.c.l.b16 %v1484
        %v1501 = vunpack.c.l.b16 %v1485
        %v1502 = vunpack.c.l.b16 %v1486
        %v1503 = vunpack.c.l.b16 %v1487
        %v1504 = vunpack.c.l.b16 %v1488
        %v1505 = vunpack.c.l.b16 %v1489
        %v1506 = vunpack.c.l.b16 %v1490
        %v1507 = vpack.c.b16 %v1500, %v1499
        %v1508 = vpack.c.b16 %v1502, %v1501
        %v1509 = vpack.c.b16 %v1504, %v1503
        %v1510 = vpack.c.b16 %v1506, %v1505
        %v1516 = vsel %vm1438, %v1482, 0
        %1518 = vmatprep.subr.bf16.mxu0 0
        %1519 = vmatpush1.bf16.msra.mxu0 0
        %1520 = vmatprep.subr.bf16.mxu0 0
        %1521 = vmatpush1.bf16.msra.mxu0 0
        %1522 = vmatprep.subr.bf16.mxu0 0
        %1523 = vmatpush1.bf16.msra.mxu0 0
        %1524 = vmatprep.subr.bf16.mxu0 0
        %1525 = vmatpush1.bf16.msra.mxu0 0
        %1526 = vmatprep.subr.bf16.mxu0 0
        %1527 = vmatpush1.bf16.msra.mxu0 %v1510
        %1528 = vmatprep.subr.bf16.mxu0 0
        %1529 = vmatpush1.bf16.msra.mxu0 %v1509
        %1530 = vmatprep.subr.bf16.mxu0 0
        %1531 = vmatpush1.bf16.msra.mxu0 %v1508
        %1532 = vmatprep.subr.bf16.mxu0 0
        %1533 = vmatpush1.bf16.msra.mxu0 %v1507
        %1534 = vmatprep.subr.bf16.mxu0 0
        %1535 = vmatpush2.bf16.msra.mxu0 0
        %1536 = vmatprep.subr.bf16.mxu0 0
        %1537 = vmatpush2.bf16.msra.mxu0 0
        %1538 = vmatprep.subr.bf16.mxu0 0
        %1539 = vmatpush2.bf16.msra.mxu0 0
        %1540 = vmatprep.subr.bf16.mxu0 0
        %1541 = vmatpush2.bf16.msra.mxu0 0
        %1542 = vmatprep.subr.bf16.mxu0 0
        %1543 = vmatpush2.bf16.msra.mxu0 0
        %1544 = vmatprep.subr.bf16.mxu0 0
        %1545 = vmatpush2.bf16.msra.mxu0 0
        %1546 = vmatprep.subr.bf16.mxu0 0
        %1547 = vmatpush2.bf16.msra.mxu0 0
        %1548 = vmatprep.subr.bf16.mxu0 0
        %1549 = vmatpush2.bf16.msra.mxu0 0
        %1550 = vmatprep.mubr.bf16.mxu0 0
        %1551 = vmatmul.mubr.bf16.gmra.mxu0 %v1516
        %v1552 = vpop.f32.mrf.mxu0
        %v1553 = vadd.f32 0.0, %v1552
        %v1554 = vpop.f32.mrf.mxu0
        %v1555 = vpop.f32.mrf.mxu0
        %v1556 = vadd.f32 0.0, %v1555
        %v1557 = vpop.f32.mrf.mxu0
        %1558 = vdwg.mxu0
        %v1559 = vld [vmem:[%s1103] sm:$0xf]
        %v1560 = vld [vmem:[%s1103 + $0x4] sm:$0xf]
        %v1561 = vld [vmem:[%s1103 + $0x8] sm:$0xf]
        %v1562 = vld [vmem:[%s1103 + $0xc] sm:$0xf]
        %v1563 = vld [vmem:[%s1103 + $0x10] sm:$0xf]
        %v1564 = vld [vmem:[%s1103 + $0x14] sm:$0xf]
        %v1565 = vld [vmem:[%s1103 + $0x18] sm:$0xf]
        %v1566 = vld [vmem:[%s1103 + $0x1c] sm:$0xf]
        %v1575 = vunpack.c.l.b16 %v1559
        %v1576 = vunpack.c.l.b16 %v1560
        %v1577 = vunpack.c.l.b16 %v1561
        %v1578 = vunpack.c.l.b16 %v1562
        %v1579 = vunpack.c.l.b16 %v1563
        %v1580 = vunpack.c.l.b16 %v1564
        %v1581 = vunpack.c.l.b16 %v1565
        %v1582 = vunpack.c.l.b16 %v1566
        %v1583 = vpack.c.b16 %v1576, %v1575
        %v1584 = vpack.c.b16 %v1578, %v1577
        %v1585 = vpack.c.b16 %v1580, %v1579
        %v1586 = vpack.c.b16 %v1582, %v1581
        %1591 = vmatprep.subr.bf16.mxu0 0
        %1592 = vmatpush1.bf16.msra.mxu0 0
        %1593 = vmatprep.subr.bf16.mxu0 0
        %1594 = vmatpush1.bf16.msra.mxu0 0
        %1595 = vmatprep.subr.bf16.mxu0 0
        %1596 = vmatpush1.bf16.msra.mxu0 0
        %1597 = vmatprep.subr.bf16.mxu0 0
        %1598 = vmatpush1.bf16.msra.mxu0 0
        %1599 = vmatprep.subr.bf16.mxu0 0
        %1600 = vmatpush1.bf16.msra.mxu0 %v1586
        %1601 = vmatprep.subr.bf16.mxu0 0
        %1602 = vmatpush1.bf16.msra.mxu0 %v1585
        %1603 = vmatprep.subr.bf16.mxu0 0
        %1604 = vmatpush1.bf16.msra.mxu0 %v1584
        %1605 = vmatprep.subr.bf16.mxu0 0
        %1606 = vmatpush1.bf16.msra.mxu0 %v1583
        %1607 = vmatprep.subr.bf16.mxu0 0
        %1608 = vmatpush2.bf16.msra.mxu0 0
        %1609 = vmatprep.subr.bf16.mxu0 0
        %1610 = vmatpush2.bf16.msra.mxu0 0
        %1611 = vmatprep.subr.bf16.mxu0 0
        %1612 = vmatpush2.bf16.msra.mxu0 0
        %1613 = vmatprep.subr.bf16.mxu0 0
        %1614 = vmatpush2.bf16.msra.mxu0 0
        %1615 = vmatprep.subr.bf16.mxu0 0
        %1616 = vmatpush2.bf16.msra.mxu0 0
        %1617 = vmatprep.subr.bf16.mxu0 0
        %1618 = vmatpush2.bf16.msra.mxu0 0
        %1619 = vmatprep.subr.bf16.mxu0 0
        %1620 = vmatpush2.bf16.msra.mxu0 0
        %1621 = vmatprep.subr.bf16.mxu0 0
        %1622 = vmatpush2.bf16.msra.mxu0 0
        %1623 = vmatprep.mubr.bf16.mxu0 0
        %1624 = vmatmul.mubr.bf16.gmra.mxu0 %v1516
        %v1625 = vpop.f32.mrf.mxu0
        %v1626 = vadd.f32 0.0, %v1625
        %v1627 = vpop.f32.mrf.mxu0
        %v1628 = vpop.f32.mrf.mxu0
        %v1629 = vadd.f32 0.0, %v1628
        %v1630 = vpop.f32.mrf.mxu0
        %1631 = vdwg.mxu0
        %v1632 = vld [vmem:[%s1108] sm:$0xf]
        %v1633 = vld [vmem:[%s1108 + $0x4] sm:$0xf]
        %v1634 = vld [vmem:[%s1108 + $0x8] sm:$0xf]
        %v1635 = vld [vmem:[%s1108 + $0xc] sm:$0xf]
        %v1636 = vld [vmem:[%s1108 + $0x10] sm:$0xf]
        %v1637 = vld [vmem:[%s1108 + $0x14] sm:$0xf]
        %v1638 = vld [vmem:[%s1108 + $0x18] sm:$0xf]
        %v1639 = vld [vmem:[%s1108 + $0x1c] sm:$0xf]
        %v1648 = vunpack.c.l.b16 %v1632
        %v1649 = vunpack.c.l.b16 %v1633
        %v1650 = vunpack.c.l.b16 %v1634
        %v1651 = vunpack.c.l.b16 %v1635
        %v1652 = vunpack.c.l.b16 %v1636
        %v1653 = vunpack.c.l.b16 %v1637
        %v1654 = vunpack.c.l.b16 %v1638
        %v1655 = vunpack.c.l.b16 %v1639
        %v1656 = vpack.c.b16 %v1649, %v1648
        %v1657 = vpack.c.b16 %v1651, %v1650
        %v1658 = vpack.c.b16 %v1653, %v1652
        %v1659 = vpack.c.b16 %v1655, %v1654
        %1664 = vmatprep.subr.bf16.mxu0 0
        %1665 = vmatpush1.bf16.msra.mxu0 0
        %1666 = vmatprep.subr.bf16.mxu0 0
        %1667 = vmatpush1.bf16.msra.mxu0 0
        %1668 = vmatprep.subr.bf16.mxu0 0
        %1669 = vmatpush1.bf16.msra.mxu0 0
        %1670 = vmatprep.subr.bf16.mxu0 0
        %1671 = vmatpush1.bf16.msra.mxu0 0
        %1672 = vmatprep.subr.bf16.mxu0 0
        %1673 = vmatpush1.bf16.msra.mxu0 %v1659
        %1674 = vmatprep.subr.bf16.mxu0 0
        %1675 = vmatpush1.bf16.msra.mxu0 %v1658
        %1676 = vmatprep.subr.bf16.mxu0 0
        %1677 = vmatpush1.bf16.msra.mxu0 %v1657
        %1678 = vmatprep.subr.bf16.mxu0 0
        %1679 = vmatpush1.bf16.msra.mxu0 %v1656
        %1680 = vmatprep.subr.bf16.mxu0 0
        %1681 = vmatpush2.bf16.msra.mxu0 0
        %1682 = vmatprep.subr.bf16.mxu0 0
        %1683 = vmatpush2.bf16.msra.mxu0 0
        %1684 = vmatprep.subr.bf16.mxu0 0
        %1685 = vmatpush2.bf16.msra.mxu0 0
        %1686 = vmatprep.subr.bf16.mxu0 0
        %1687 = vmatpush2.bf16.msra.mxu0 0
        %1688 = vmatprep.subr.bf16.mxu0 0
        %1689 = vmatpush2.bf16.msra.mxu0 0
        %1690 = vmatprep.subr.bf16.mxu0 0
        %1691 = vmatpush2.bf16.msra.mxu0 0
        %1692 = vmatprep.subr.bf16.mxu0 0
        %1693 = vmatpush2.bf16.msra.mxu0 0
        %1694 = vmatprep.subr.bf16.mxu0 0
        %1695 = vmatpush2.bf16.msra.mxu0 0
        %1696 = vmatprep.mubr.bf16.mxu0 0
        %1697 = vmatmul.mubr.bf16.gmra.mxu0 %v1516
        %v1698 = vpop.f32.mrf.mxu0
        %v1699 = vadd.f32 0.0, %v1698
        %v1700 = vpop.f32.mrf.mxu0
        %v1701 = vpop.f32.mrf.mxu0
        %v1702 = vadd.f32 0.0, %v1701
        %v1703 = vpop.f32.mrf.mxu0
        %1704 = vdwg.mxu0
        %v1705 = vpack.c.bf16 %v1553, %v1553
        %v1706 = vpack.c.bf16 %v1556, %v1556
        %v1707 = vpack.c.bf16 %v1626, %v1626
        %v1708 = vpack.c.bf16 %v1629, %v1629
        %v1709 = vpack.c.bf16 %v1699, %v1699
        %v1710 = vpack.c.bf16 %v1702, %v1702
        %vm1711 = vcmask 130048
        %v1713 = vsel %vm1711, %v1705, 0
        %v1716 = vsel %vm1711, %v1707, 0
        %1718 = vmatprep.subr.bf16.mxu0 0
        %1719 = vmatpush1.bf16.xpose.msra.mxu0 0
        %1720 = vmatprep.subr.bf16.mxu0 0
        %1721 = vmatpush1.bf16.xpose.msra.mxu0 0
        %1722 = vmatprep.subr.bf16.mxu0 0
        %1723 = vmatpush1.bf16.xpose.msra.mxu0 0
        %1724 = vmatprep.subr.bf16.mxu0 0
        %1725 = vmatpush1.bf16.xpose.msra.mxu0 0
        %1726 = vmatprep.subr.bf16.mxu0 0
        %1727 = vmatpush1.bf16.xpose.msra.mxu0 0
        %1728 = vmatprep.subr.bf16.mxu0 0
        %1729 = vmatpush1.bf16.xpose.msra.mxu0 0
        %1730 = vmatprep.subr.bf16.mxu0 0
        %1731 = vmatpush1.bf16.xpose.msra.mxu0 0
        %1732 = vmatprep.subr.bf16.mxu0 0
        %1733 = vmatpush1.bf16.xpose.msra.mxu0 %v1716
        %1734 = vmatprep.subr.bf16.mxu0 0
        %1735 = vmatpush2.bf16.xpose.msra.mxu0 0
        %1736 = vmatprep.subr.bf16.mxu0 0
        %1737 = vmatpush2.bf16.xpose.msra.mxu0 0
        %1738 = vmatprep.subr.bf16.mxu0 0
        %1739 = vmatpush2.bf16.xpose.msra.mxu0 0
        %1740 = vmatprep.subr.bf16.mxu0 0
        %1741 = vmatpush2.bf16.xpose.msra.mxu0 0
        %1742 = vmatprep.subr.bf16.mxu0 0
        %1743 = vmatpush2.bf16.xpose.msra.mxu0 0
        %1744 = vmatprep.subr.bf16.mxu0 0
        %1745 = vmatpush2.bf16.xpose.msra.mxu0 0
        %1746 = vmatprep.subr.bf16.mxu0 0
        %1747 = vmatpush2.bf16.xpose.msra.mxu0 0
        %1748 = vmatprep.subr.bf16.mxu0 0
        %1749 = vmatpush2.bf16.xpose.msra.mxu0 0
        %1750 = vmatprep.mubr.bf16.mxu0 0
        %1751 = vmatmul.mubr.bf16.gmra.mxu0 %v1713
        %v1752 = vpop.f32.mrf.mxu0
        %v1753 = vadd.f32 %v1434, %v1752
        %v1754 = vpop.f32.mrf.mxu0
        %v1755 = vpop.f32.mrf.mxu0
        %v1756 = vpop.f32.mrf.mxu0
        %1757 = vdwg.mxu0
        %v1759 = vsel %vm1711, %v1706, 0
        %v1762 = vsel %vm1711, %v1708, 0
        %1764 = vmatprep.subr.bf16.mxu0 0
        %1765 = vmatpush1.bf16.xpose.msra.mxu0 0
        %1766 = vmatprep.subr.bf16.mxu0 0
        %1767 = vmatpush1.bf16.xpose.msra.mxu0 0
        %1768 = vmatprep.subr.bf16.mxu0 0
        %1769 = vmatpush1.bf16.xpose.msra.mxu0 0
        %1770 = vmatprep.subr.bf16.mxu0 0
        %1771 = vmatpush1.bf16.xpose.msra.mxu0 0
        %1772 = vmatprep.subr.bf16.mxu0 0
        %1773 = vmatpush1.bf16.xpose.msra.mxu0 0
        %1774 = vmatprep.subr.bf16.mxu0 0
        %1775 = vmatpush1.bf16.xpose.msra.mxu0 0
        %1776 = vmatprep.subr.bf16.mxu0 0
        %1777 = vmatpush1.bf16.xpose.msra.mxu0 0
        %1778 = vmatprep.subr.bf16.mxu0 0
        %1779 = vmatpush1.bf16.xpose.msra.mxu0 %v1762
        %1780 = vmatprep.subr.bf16.mxu0 0
        %1781 = vmatpush2.bf16.xpose.msra.mxu0 0
        %1782 = vmatprep.subr.bf16.mxu0 0
        %1783 = vmatpush2.bf16.xpose.msra.mxu0 0
        %1784 = vmatprep.subr.bf16.mxu0 0
        %1785 = vmatpush2.bf16.xpose.msra.mxu0 0
        %1786 = vmatprep.subr.bf16.mxu0 0
        %1787 = vmatpush2.bf16.xpose.msra.mxu0 0
        %1788 = vmatprep.subr.bf16.mxu0 0
        %1789 = vmatpush2.bf16.xpose.msra.mxu0 0
        %1790 = vmatprep.subr.bf16.mxu0 0
        %1791 = vmatpush2.bf16.xpose.msra.mxu0 0
        %1792 = vmatprep.subr.bf16.mxu0 0
        %1793 = vmatpush2.bf16.xpose.msra.mxu0 0
        %1794 = vmatprep.subr.bf16.mxu0 0
        %1795 = vmatpush2.bf16.xpose.msra.mxu0 0
        %1796 = vmatprep.mubr.bf16.mxu0 0
        %1797 = vmatmul.mubr.bf16.gmra.mxu0 %v1759
        %v1798 = vpop.f32.mrf.mxu0
        %v1799 = vadd.f32 %v1435, %v1798
        %v1800 = vpop.f32.mrf.mxu0
        %v1801 = vpop.f32.mrf.mxu0
        %v1802 = vpop.f32.mrf.mxu0
        %1803 = vdwg.mxu0
        %vm1804 = vcmask 64512
        %v1805 = vsel %vm1804, %v1753, -inf
        %1806 = vmax.xlane.f32.xlu0 %v1805
        %v1807 = vpop.xlane.xlu0 %1806
        %v1808 = vsel %vm1804, %v1799, -inf
        %1809 = vmax.xlane.f32.xlu0 %v1808
        %v1810 = vpop.xlane.xlu0 %1809
        %v1811 = vsub.f32 %v1753, %v1807
        %v1812 = vsub.f32 %v1799, %v1810
        %v1813 = vmul.f32 %v1811, 1.442695
        %v1814 = vpow.pop %v1813
        %v1815 = vmul.f32 %v1812, 1.442695
        %v1816 = vpow.pop %v1815
        %v1817 = vsel %vm1804, %v1814, 0.0
        %1818 = vadd.xlane.f32.xlu0 %v1817
        %v1819 = vpop.xlane.xlu0 %1818
        %v1820 = vsel %vm1804, %v1816, 0.0
        %1821 = vadd.xlane.f32.xlu0 %v1820
        %v1822 = vpop.xlane.xlu0 %1821
        %v1823 = vrcp.pop %v1819
        %v1824 = vrcp.pop %v1822
        %v1825 = vmul.f32 %v1814, %v1823
        %v1826 = vmul.f32 %v1816, %v1824
        %v1827 = vpack.c.bf16 %v1825, %v1825
        %v1828 = vpack.c.bf16 %v1826, %v1826
        %v1830 = vsel %vm1804, %v1827, 0
        %vm1832 = vcmask 1043456
        %v1834 = vsel %vm1832, %v1709, 0
        %1836 = vmatprep.subr.bf16.mxu0 0
        %1837 = vmatpush1.bf16.msra.mxu0 0
        %1838 = vmatprep.subr.bf16.mxu0 0
        %1839 = vmatpush1.bf16.msra.mxu0 0
        %1840 = vmatprep.subr.bf16.mxu0 0
        %1841 = vmatpush1.bf16.msra.mxu0 0
        %1842 = vmatprep.subr.bf16.mxu0 0
        %1843 = vmatpush1.bf16.msra.mxu0 0
        %1844 = vmatprep.subr.bf16.mxu0 0
        %1845 = vmatpush1.bf16.msra.mxu0 0
        %1846 = vmatprep.subr.bf16.mxu0 0
        %1847 = vmatpush1.bf16.msra.mxu0 0
        %1848 = vmatprep.subr.bf16.mxu0 0
        %1849 = vmatpush1.bf16.msra.mxu0 0
        %1850 = vmatprep.subr.bf16.mxu0 0
        %1851 = vmatpush1.bf16.msra.mxu0 %v1834
        %1852 = vmatprep.subr.bf16.mxu0 0
        %1853 = vmatpush2.bf16.msra.mxu0 0
        %1854 = vmatprep.subr.bf16.mxu0 0
        %1855 = vmatpush2.bf16.msra.mxu0 0
        %1856 = vmatprep.subr.bf16.mxu0 0
        %1857 = vmatpush2.bf16.msra.mxu0 0
        %1858 = vmatprep.subr.bf16.mxu0 0
        %1859 = vmatpush2.bf16.msra.mxu0 0
        %1860 = vmatprep.subr.bf16.mxu0 0
        %1861 = vmatpush2.bf16.msra.mxu0 0
        %1862 = vmatprep.subr.bf16.mxu0 0
        %1863 = vmatpush2.bf16.msra.mxu0 0
        %1864 = vmatprep.subr.bf16.mxu0 0
        %1865 = vmatpush2.bf16.msra.mxu0 0
        %1866 = vmatprep.subr.bf16.mxu0 0
        %1867 = vmatpush2.bf16.msra.mxu0 0
        %1868 = vmatprep.mubr.bf16.mxu0 0
        %1869 = vmatmul.mubr.bf16.gmra.mxu0 %v1830
        %v1870 = vpop.f32.mrf.mxu0
        %v1871 = vadd.f32 0.0, %v1870
        %v1872 = vpop.f32.mrf.mxu0
        %v1873 = vpop.f32.mrf.mxu0
        %v1874 = vpop.f32.mrf.mxu0
        %1875 = vdwg.mxu0
        %v1877 = vsel %vm1804, %v1828, 0
        %v1880 = vsel %vm1832, %v1710, 0
        %1882 = vmatprep.subr.bf16.mxu0 0
        %1883 = vmatpush1.bf16.msra.mxu0 0
        %1884 = vmatprep.subr.bf16.mxu0 0
        %1885 = vmatpush1.bf16.msra.mxu0 0
        %1886 = vmatprep.subr.bf16.mxu0 0
        %1887 = vmatpush1.bf16.msra.mxu0 0
        %1888 = vmatprep.subr.bf16.mxu0 0
        %1889 = vmatpush1.bf16.msra.mxu0 0
        %1890 = vmatprep.subr.bf16.mxu0 0
        %1891 = vmatpush1.bf16.msra.mxu0 0
        %1892 = vmatprep.subr.bf16.mxu0 0
        %1893 = vmatpush1.bf16.msra.mxu0 0
        %1894 = vmatprep.subr.bf16.mxu0 0
        %1895 = vmatpush1.bf16.msra.mxu0 0
        %1896 = vmatprep.subr.bf16.mxu0 0
        %1897 = vmatpush1.bf16.msra.mxu0 %v1880
        %1898 = vmatprep.subr.bf16.mxu0 0
        %1899 = vmatpush2.bf16.msra.mxu0 0
        %1900 = vmatprep.subr.bf16.mxu0 0
        %1901 = vmatpush2.bf16.msra.mxu0 0
        %1902 = vmatprep.subr.bf16.mxu0 0
        %1903 = vmatpush2.bf16.msra.mxu0 0
        %1904 = vmatprep.subr.bf16.mxu0 0
        %1905 = vmatpush2.bf16.msra.mxu0 0
        %1906 = vmatprep.subr.bf16.mxu0 0
        %1907 = vmatpush2.bf16.msra.mxu0 0
        %1908 = vmatprep.subr.bf16.mxu0 0
        %1909 = vmatpush2.bf16.msra.mxu0 0
        %1910 = vmatprep.subr.bf16.mxu0 0
        %1911 = vmatpush2.bf16.msra.mxu0 0
        %1912 = vmatprep.subr.bf16.mxu0 0
        %1913 = vmatpush2.bf16.msra.mxu0 0
        %1914 = vmatprep.mubr.bf16.mxu0 0
        %1915 = vmatmul.mubr.bf16.gmra.mxu0 %v1877
        %v1916 = vpop.f32.mrf.mxu0
        %v1917 = vadd.f32 0.0, %v1916
        %v1918 = vpop.f32.mrf.mxu0
        %v1919 = vpop.f32.mrf.mxu0
        %v1920 = vpop.f32.mrf.mxu0
        %1921 = vdwg.mxu0
        %1923 = vrot.lane.b32.xlu0 %v1705, 112
        %v1924 = vpop.permute.xlu0 %1923
        %1926 = vrot.lane.b32.xlu0 %v1707, 112
        %v1927 = vpop.permute.xlu0 %1926
        %v1929 = vsel %vm1711, %v1924, 0
        %v1932 = vsel %vm1711, %v1927, 0
        %1934 = vmatprep.subr.bf16.mxu0 0
        %1935 = vmatpush1.bf16.xpose.msra.mxu0 0
        %1936 = vmatprep.subr.bf16.mxu0 0
        %1937 = vmatpush1.bf16.xpose.msra.mxu0 0
        %1938 = vmatprep.subr.bf16.mxu0 0
        %1939 = vmatpush1.bf16.xpose.msra.mxu0 0
        %1940 = vmatprep.subr.bf16.mxu0 0
        %1941 = vmatpush1.bf16.xpose.msra.mxu0 0
        %1942 = vmatprep.subr.bf16.mxu0 0
        %1943 = vmatpush1.bf16.xpose.msra.mxu0 0
        %1944 = vmatprep.subr.bf16.mxu0 0
        %1945 = vmatpush1.bf16.xpose.msra.mxu0 0
        %1946 = vmatprep.subr.bf16.mxu0 0
        %1947 = vmatpush1.bf16.xpose.msra.mxu0 0
        %1948 = vmatprep.subr.bf16.mxu0 0
        %1949 = vmatpush1.bf16.xpose.msra.mxu0 %v1932
        %1950 = vmatprep.subr.bf16.mxu0 0
        %1951 = vmatpush2.bf16.xpose.msra.mxu0 0
        %1952 = vmatprep.subr.bf16.mxu0 0
        %1953 = vmatpush2.bf16.xpose.msra.mxu0 0
        %1954 = vmatprep.subr.bf16.mxu0 0
        %1955 = vmatpush2.bf16.xpose.msra.mxu0 0
        %1956 = vmatprep.subr.bf16.mxu0 0
        %1957 = vmatpush2.bf16.xpose.msra.mxu0 0
        %1958 = vmatprep.subr.bf16.mxu0 0
        %1959 = vmatpush2.bf16.xpose.msra.mxu0 0
        %1960 = vmatprep.subr.bf16.mxu0 0
        %1961 = vmatpush2.bf16.xpose.msra.mxu0 0
        %1962 = vmatprep.subr.bf16.mxu0 0
        %1963 = vmatpush2.bf16.xpose.msra.mxu0 0
        %1964 = vmatprep.subr.bf16.mxu0 0
        %1965 = vmatpush2.bf16.xpose.msra.mxu0 0
        %1966 = vmatprep.mubr.bf16.mxu0 0
        %1967 = vmatmul.mubr.bf16.gmra.mxu0 %v1929
        %v1968 = vpop.f32.mrf.mxu0
        %v1969 = vadd.f32 %v1434, %v1968
        %v1970 = vpop.f32.mrf.mxu0
        %v1971 = vpop.f32.mrf.mxu0
        %v1972 = vpop.f32.mrf.mxu0
        %1973 = vdwg.mxu0
        %1975 = vrot.lane.b32.xlu0 %v1706, 112
        %v1976 = vpop.permute.xlu0 %1975
        %1978 = vrot.lane.b32.xlu0 %v1708, 112
        %v1979 = vpop.permute.xlu0 %1978
        %v1981 = vsel %vm1711, %v1976, 0
        %v1984 = vsel %vm1711, %v1979, 0
        %1986 = vmatprep.subr.bf16.mxu0 0
        %1987 = vmatpush1.bf16.xpose.msra.mxu0 0
        %1988 = vmatprep.subr.bf16.mxu0 0
        %1989 = vmatpush1.bf16.xpose.msra.mxu0 0
        %1990 = vmatprep.subr.bf16.mxu0 0
        %1991 = vmatpush1.bf16.xpose.msra.mxu0 0
        %1992 = vmatprep.subr.bf16.mxu0 0
        %1993 = vmatpush1.bf16.xpose.msra.mxu0 0
        %1994 = vmatprep.subr.bf16.mxu0 0
        %1995 = vmatpush1.bf16.xpose.msra.mxu0 0
        %1996 = vmatprep.subr.bf16.mxu0 0
        %1997 = vmatpush1.bf16.xpose.msra.mxu0 0
        %1998 = vmatprep.subr.bf16.mxu0 0
        %1999 = vmatpush1.bf16.xpose.msra.mxu0 0
        %2000 = vmatprep.subr.bf16.mxu0 0
        %2001 = vmatpush1.bf16.xpose.msra.mxu0 %v1984
        %2002 = vmatprep.subr.bf16.mxu0 0
        %2003 = vmatpush2.bf16.xpose.msra.mxu0 0
        %2004 = vmatprep.subr.bf16.mxu0 0
        %2005 = vmatpush2.bf16.xpose.msra.mxu0 0
        %2006 = vmatprep.subr.bf16.mxu0 0
        %2007 = vmatpush2.bf16.xpose.msra.mxu0 0
        %2008 = vmatprep.subr.bf16.mxu0 0
        %2009 = vmatpush2.bf16.xpose.msra.mxu0 0
        %2010 = vmatprep.subr.bf16.mxu0 0
        %2011 = vmatpush2.bf16.xpose.msra.mxu0 0
        %2012 = vmatprep.subr.bf16.mxu0 0
        %2013 = vmatpush2.bf16.xpose.msra.mxu0 0
        %2014 = vmatprep.subr.bf16.mxu0 0
        %2015 = vmatpush2.bf16.xpose.msra.mxu0 0
        %2016 = vmatprep.subr.bf16.mxu0 0
        %2017 = vmatpush2.bf16.xpose.msra.mxu0 0
        %2018 = vmatprep.mubr.bf16.mxu0 0
        %2019 = vmatmul.mubr.bf16.gmra.mxu0 %v1981
        %v2020 = vpop.f32.mrf.mxu0
        %v2021 = vadd.f32 %v1435, %v2020
        %v2022 = vpop.f32.mrf.mxu0
        %v2023 = vpop.f32.mrf.mxu0
        %v2024 = vpop.f32.mrf.mxu0
        %2025 = vdwg.mxu0
        %v2026 = vsel %vm1804, %v1969, -inf
        %2027 = vmax.xlane.f32.xlu0 %v2026
        %v2028 = vpop.xlane.xlu0 %2027
        %v2029 = vsel %vm1804, %v2021, -inf
        %2030 = vmax.xlane.f32.xlu0 %v2029
        %v2031 = vpop.xlane.xlu0 %2030
        %v2032 = vsub.f32 %v1969, %v2028
        %v2033 = vsub.f32 %v2021, %v2031
        %v2034 = vmul.f32 %v2032, 1.442695
        %v2035 = vpow.pop %v2034
        %v2036 = vmul.f32 %v2033, 1.442695
        %v2037 = vpow.pop %v2036
        %v2038 = vsel %vm1804, %v2035, 0.0
        %2039 = vadd.xlane.f32.xlu0 %v2038
        %v2040 = vpop.xlane.xlu0 %2039
        %v2041 = vsel %vm1804, %v2037, 0.0
        %2042 = vadd.xlane.f32.xlu0 %v2041
        %v2043 = vpop.xlane.xlu0 %2042
        %v2044 = vrcp.pop %v2040
        %v2045 = vrcp.pop %v2043
        %v2046 = vmul.f32 %v2035, %v2044
        %v2047 = vmul.f32 %v2037, %v2045
        %v2048 = vpack.c.bf16 %v2046, %v2046
        %v2049 = vpack.c.bf16 %v2047, %v2047
        %2051 = vrot.lane.b32.xlu0 %v1709, 112
        %v2052 = vpop.permute.xlu0 %2051
        %v2054 = vsel %vm1804, %v2048, 0
        %v2057 = vsel %vm1832, %v2052, 0
        %2059 = vmatprep.subr.bf16.mxu0 0
        %2060 = vmatpush1.bf16.msra.mxu0 0
        %2061 = vmatprep.subr.bf16.mxu0 0
        %2062 = vmatpush1.bf16.msra.mxu0 0
        %2063 = vmatprep.subr.bf16.mxu0 0
        %2064 = vmatpush1.bf16.msra.mxu0 0
        %2065 = vmatprep.subr.bf16.mxu0 0
        %2066 = vmatpush1.bf16.msra.mxu0 0
        %2067 = vmatprep.subr.bf16.mxu0 0
        %2068 = vmatpush1.bf16.msra.mxu0 0
        %2069 = vmatprep.subr.bf16.mxu0 0
        %2070 = vmatpush1.bf16.msra.mxu0 0
        %2071 = vmatprep.subr.bf16.mxu0 0
        %2072 = vmatpush1.bf16.msra.mxu0 0
        %2073 = vmatprep.subr.bf16.mxu0 0
        %2074 = vmatpush1.bf16.msra.mxu0 %v2057
        %2075 = vmatprep.subr.bf16.mxu0 0
        %2076 = vmatpush2.bf16.msra.mxu0 0
        %2077 = vmatprep.subr.bf16.mxu0 0
        %2078 = vmatpush2.bf16.msra.mxu0 0
        %2079 = vmatprep.subr.bf16.mxu0 0
        %2080 = vmatpush2.bf16.msra.mxu0 0
        %2081 = vmatprep.subr.bf16.mxu0 0
        %2082 = vmatpush2.bf16.msra.mxu0 0
        %2083 = vmatprep.subr.bf16.mxu0 0
        %2084 = vmatpush2.bf16.msra.mxu0 0
        %2085 = vmatprep.subr.bf16.mxu0 0
        %2086 = vmatpush2.bf16.msra.mxu0 0
        %2087 = vmatprep.subr.bf16.mxu0 0
        %2088 = vmatpush2.bf16.msra.mxu0 0
        %2089 = vmatprep.subr.bf16.mxu0 0
        %2090 = vmatpush2.bf16.msra.mxu0 0
        %2091 = vmatprep.mubr.bf16.mxu0 0
        %2092 = vmatmul.mubr.bf16.gmra.mxu0 %v2054
        %v2093 = vpop.f32.mrf.mxu0
        %v2094 = vadd.f32 0.0, %v2093
        %v2095 = vpop.f32.mrf.mxu0
        %v2096 = vpop.f32.mrf.mxu0
        %v2097 = vpop.f32.mrf.mxu0
        %2098 = vdwg.mxu0
        %2100 = vrot.lane.b32.xlu0 %v1710, 112
        %v2101 = vpop.permute.xlu0 %2100
        %v2103 = vsel %vm1804, %v2049, 0
        %v2106 = vsel %vm1832, %v2101, 0
        %2108 = vmatprep.subr.bf16.mxu0 0
        %2109 = vmatpush1.bf16.msra.mxu0 0
        %2110 = vmatprep.subr.bf16.mxu0 0
        %2111 = vmatpush1.bf16.msra.mxu0 0
        %2112 = vmatprep.subr.bf16.mxu0 0
        %2113 = vmatpush1.bf16.msra.mxu0 0
        %2114 = vmatprep.subr.bf16.mxu0 0
        %2115 = vmatpush1.bf16.msra.mxu0 0
        %2116 = vmatprep.subr.bf16.mxu0 0
        %2117 = vmatpush1.bf16.msra.mxu0 0
        %2118 = vmatprep.subr.bf16.mxu0 0
        %2119 = vmatpush1.bf16.msra.mxu0 0
        %2120 = vmatprep.subr.bf16.mxu0 0
        %2121 = vmatpush1.bf16.msra.mxu0 0
        %2122 = vmatprep.subr.bf16.mxu0 0
        %2123 = vmatpush1.bf16.msra.mxu0 %v2106
        %2124 = vmatprep.subr.bf16.mxu0 0
        %2125 = vmatpush2.bf16.msra.mxu0 0
        %2126 = vmatprep.subr.bf16.mxu0 0
        %2127 = vmatpush2.bf16.msra.mxu0 0
        %2128 = vmatprep.subr.bf16.mxu0 0
        %2129 = vmatpush2.bf16.msra.mxu0 0
        %2130 = vmatprep.subr.bf16.mxu0 0
        %2131 = vmatpush2.bf16.msra.mxu0 0
        %2132 = vmatprep.subr.bf16.mxu0 0
        %2133 = vmatpush2.bf16.msra.mxu0 0
        %2134 = vmatprep.subr.bf16.mxu0 0
        %2135 = vmatpush2.bf16.msra.mxu0 0
        %2136 = vmatprep.subr.bf16.mxu0 0
        %2137 = vmatpush2.bf16.msra.mxu0 0
        %2138 = vmatprep.subr.bf16.mxu0 0
        %2139 = vmatpush2.bf16.msra.mxu0 0
        %2140 = vmatprep.mubr.bf16.mxu0 0
        %2141 = vmatmul.mubr.bf16.gmra.mxu0 %v2103
        %v2142 = vpop.f32.mrf.mxu0
        %v2143 = vadd.f32 0.0, %v2142
        %v2144 = vpop.f32.mrf.mxu0
        %v2145 = vpop.f32.mrf.mxu0
        %v2146 = vpop.f32.mrf.mxu0
        %2147 = vdwg.mxu0
        %2148 = vrot.lane.b32.xlu0 %v1705, 96
        %v2149 = vpop.permute.xlu0 %2148
        %2150 = vrot.lane.b32.xlu0 %v1707, 96
        %v2151 = vpop.permute.xlu0 %2150
        %v2153 = vsel %vm1711, %v2149, 0
        %v2156 = vsel %vm1711, %v2151, 0
        %2158 = vmatprep.subr.bf16.mxu0 0
        %2159 = vmatpush1.bf16.xpose.msra.mxu0 0
        %2160 = vmatprep.subr.bf16.mxu0 0
        %2161 = vmatpush1.bf16.xpose.msra.mxu0 0
        %2162 = vmatprep.subr.bf16.mxu0 0
        %2163 = vmatpush1.bf16.xpose.msra.mxu0 0
        %2164 = vmatprep.subr.bf16.mxu0 0
        %2165 = vmatpush1.bf16.xpose.msra.mxu0 0
        %2166 = vmatprep.subr.bf16.mxu0 0
        %2167 = vmatpush1.bf16.xpose.msra.mxu0 0
        %2168 = vmatprep.subr.bf16.mxu0 0
        %2169 = vmatpush1.bf16.xpose.msra.mxu0 0
        %2170 = vmatprep.subr.bf16.mxu0 0
        %2171 = vmatpush1.bf16.xpose.msra.mxu0 0
        %2172 = vmatprep.subr.bf16.mxu0 0
        %2173 = vmatpush1.bf16.xpose.msra.mxu0 %v2156
        %2174 = vmatprep.subr.bf16.mxu0 0
        %2175 = vmatpush2.bf16.xpose.msra.mxu0 0
        %2176 = vmatprep.subr.bf16.mxu0 0
        %2177 = vmatpush2.bf16.xpose.msra.mxu0 0
        %2178 = vmatprep.subr.bf16.mxu0 0
        %2179 = vmatpush2.bf16.xpose.msra.mxu0 0
        %2180 = vmatprep.subr.bf16.mxu0 0
        %2181 = vmatpush2.bf16.xpose.msra.mxu0 0
        %2182 = vmatprep.subr.bf16.mxu0 0
        %2183 = vmatpush2.bf16.xpose.msra.mxu0 0
        %2184 = vmatprep.subr.bf16.mxu0 0
        %2185 = vmatpush2.bf16.xpose.msra.mxu0 0
        %2186 = vmatprep.subr.bf16.mxu0 0
        %2187 = vmatpush2.bf16.xpose.msra.mxu0 0
        %2188 = vmatprep.subr.bf16.mxu0 0
        %2189 = vmatpush2.bf16.xpose.msra.mxu0 0
        %2190 = vmatprep.mubr.bf16.mxu0 0
        %2191 = vmatmul.mubr.bf16.gmra.mxu0 %v2153
        %v2192 = vpop.f32.mrf.mxu0
        %v2193 = vadd.f32 %v1434, %v2192
        %v2194 = vpop.f32.mrf.mxu0
        %v2195 = vpop.f32.mrf.mxu0
        %v2196 = vpop.f32.mrf.mxu0
        %2197 = vdwg.mxu0
        %2198 = vrot.lane.b32.xlu0 %v1706, 96
        %v2199 = vpop.permute.xlu0 %2198
        %2200 = vrot.lane.b32.xlu0 %v1708, 96
        %v2201 = vpop.permute.xlu0 %2200
        %v2203 = vsel %vm1711, %v2199, 0
        %v2206 = vsel %vm1711, %v2201, 0
        %2208 = vmatprep.subr.bf16.mxu0 0
        %2209 = vmatpush1.bf16.xpose.msra.mxu0 0
        %2210 = vmatprep.subr.bf16.mxu0 0
        %2211 = vmatpush1.bf16.xpose.msra.mxu0 0
        %2212 = vmatprep.subr.bf16.mxu0 0
        %2213 = vmatpush1.bf16.xpose.msra.mxu0 0
        %2214 = vmatprep.subr.bf16.mxu0 0
        %2215 = vmatpush1.bf16.xpose.msra.mxu0 0
        %2216 = vmatprep.subr.bf16.mxu0 0
        %2217 = vmatpush1.bf16.xpose.msra.mxu0 0
        %2218 = vmatprep.subr.bf16.mxu0 0
        %2219 = vmatpush1.bf16.xpose.msra.mxu0 0
        %2220 = vmatprep.subr.bf16.mxu0 0
        %2221 = vmatpush1.bf16.xpose.msra.mxu0 0
        %2222 = vmatprep.subr.bf16.mxu0 0
        %2223 = vmatpush1.bf16.xpose.msra.mxu0 %v2206
        %2224 = vmatprep.subr.bf16.mxu0 0
        %2225 = vmatpush2.bf16.xpose.msra.mxu0 0
        %2226 = vmatprep.subr.bf16.mxu0 0
        %2227 = vmatpush2.bf16.xpose.msra.mxu0 0
        %2228 = vmatprep.subr.bf16.mxu0 0
        %2229 = vmatpush2.bf16.xpose.msra.mxu0 0
        %2230 = vmatprep.subr.bf16.mxu0 0
        %2231 = vmatpush2.bf16.xpose.msra.mxu0 0
        %2232 = vmatprep.subr.bf16.mxu0 0
        %2233 = vmatpush2.bf16.xpose.msra.mxu0 0
        %2234 = vmatprep.subr.bf16.mxu0 0
        %2235 = vmatpush2.bf16.xpose.msra.mxu0 0
        %2236 = vmatprep.subr.bf16.mxu0 0
        %2237 = vmatpush2.bf16.xpose.msra.mxu0 0
        %2238 = vmatprep.subr.bf16.mxu0 0
        %2239 = vmatpush2.bf16.xpose.msra.mxu0 0
        %2240 = vmatprep.mubr.bf16.mxu0 0
        %2241 = vmatmul.mubr.bf16.gmra.mxu0 %v2203
        %v2242 = vpop.f32.mrf.mxu0
        %v2243 = vadd.f32 %v1435, %v2242
        %v2244 = vpop.f32.mrf.mxu0
        %v2245 = vpop.f32.mrf.mxu0
        %v2246 = vpop.f32.mrf.mxu0
        %2247 = vdwg.mxu0
        %v2248 = vsel %vm1804, %v2193, -inf
        %2249 = vmax.xlane.f32.xlu0 %v2248
        %v2250 = vpop.xlane.xlu0 %2249
        %v2251 = vsel %vm1804, %v2243, -inf
        %2252 = vmax.xlane.f32.xlu0 %v2251
        %v2253 = vpop.xlane.xlu0 %2252
        %v2254 = vsub.f32 %v2193, %v2250
        %v2255 = vsub.f32 %v2243, %v2253
        %v2256 = vmul.f32 %v2254, 1.442695
        %v2257 = vpow.pop %v2256
        %v2258 = vmul.f32 %v2255, 1.442695
        %v2259 = vpow.pop %v2258
        %v2260 = vsel %vm1804, %v2257, 0.0
        %2261 = vadd.xlane.f32.xlu0 %v2260
        %v2262 = vpop.xlane.xlu0 %2261
        %v2263 = vsel %vm1804, %v2259, 0.0
        %2264 = vadd.xlane.f32.xlu0 %v2263
        %v2265 = vpop.xlane.xlu0 %2264
        %v2266 = vrcp.pop %v2262
        %v2267 = vrcp.pop %v2265
        %v2268 = vmul.f32 %v2257, %v2266
        %v2269 = vmul.f32 %v2259, %v2267
        %v2270 = vpack.c.bf16 %v2268, %v2268
        %v2271 = vpack.c.bf16 %v2269, %v2269
        %2272 = vrot.lane.b32.xlu0 %v1709, 96
        %v2273 = vpop.permute.xlu0 %2272
        %v2275 = vsel %vm1804, %v2270, 0
        %v2278 = vsel %vm1832, %v2273, 0
        %2280 = vmatprep.subr.bf16.mxu0 0
        %2281 = vmatpush1.bf16.msra.mxu0 0
        %2282 = vmatprep.subr.bf16.mxu0 0
        %2283 = vmatpush1.bf16.msra.mxu0 0
        %2284 = vmatprep.subr.bf16.mxu0 0
        %2285 = vmatpush1.bf16.msra.mxu0 0
        %2286 = vmatprep.subr.bf16.mxu0 0
        %2287 = vmatpush1.bf16.msra.mxu0 0
        %2288 = vmatprep.subr.bf16.mxu0 0
        %2289 = vmatpush1.bf16.msra.mxu0 0
        %2290 = vmatprep.subr.bf16.mxu0 0
        %2291 = vmatpush1.bf16.msra.mxu0 0
        %2292 = vmatprep.subr.bf16.mxu0 0
        %2293 = vmatpush1.bf16.msra.mxu0 0
        %2294 = vmatprep.subr.bf16.mxu0 0
        %2295 = vmatpush1.bf16.msra.mxu0 %v2278
        %2296 = vmatprep.subr.bf16.mxu0 0
        %2297 = vmatpush2.bf16.msra.mxu0 0
        %2298 = vmatprep.subr.bf16.mxu0 0
        %2299 = vmatpush2.bf16.msra.mxu0 0
        %2300 = vmatprep.subr.bf16.mxu0 0
        %2301 = vmatpush2.bf16.msra.mxu0 0
        %2302 = vmatprep.subr.bf16.mxu0 0
        %2303 = vmatpush2.bf16.msra.mxu0 0
        %2304 = vmatprep.subr.bf16.mxu0 0
        %2305 = vmatpush2.bf16.msra.mxu0 0
        %2306 = vmatprep.subr.bf16.mxu0 0
        %2307 = vmatpush2.bf16.msra.mxu0 0
        %2308 = vmatprep.subr.bf16.mxu0 0
        %2309 = vmatpush2.bf16.msra.mxu0 0
        %2310 = vmatprep.subr.bf16.mxu0 0
        %2311 = vmatpush2.bf16.msra.mxu0 0
        %2312 = vmatprep.mubr.bf16.mxu0 0
        %2313 = vmatmul.mubr.bf16.gmra.mxu0 %v2275
        %v2314 = vpop.f32.mrf.mxu0
        %v2315 = vadd.f32 0.0, %v2314
        %v2316 = vpop.f32.mrf.mxu0
        %v2317 = vpop.f32.mrf.mxu0
        %v2318 = vpop.f32.mrf.mxu0
        %2319 = vdwg.mxu0
        %2320 = vrot.lane.b32.xlu0 %v1710, 96
        %v2321 = vpop.permute.xlu0 %2320
        %v2323 = vsel %vm1804, %v2271, 0
        %v2326 = vsel %vm1832, %v2321, 0
        %2328 = vmatprep.subr.bf16.mxu0 0
        %2329 = vmatpush1.bf16.msra.mxu0 0
        %2330 = vmatprep.subr.bf16.mxu0 0
        %2331 = vmatpush1.bf16.msra.mxu0 0
        %2332 = vmatprep.subr.bf16.mxu0 0
        %2333 = vmatpush1.bf16.msra.mxu0 0
        %2334 = vmatprep.subr.bf16.mxu0 0
        %2335 = vmatpush1.bf16.msra.mxu0 0
        %2336 = vmatprep.subr.bf16.mxu0 0
        %2337 = vmatpush1.bf16.msra.mxu0 0
        %2338 = vmatprep.subr.bf16.mxu0 0
        %2339 = vmatpush1.bf16.msra.mxu0 0
        %2340 = vmatprep.subr.bf16.mxu0 0
        %2341 = vmatpush1.bf16.msra.mxu0 0
        %2342 = vmatprep.subr.bf16.mxu0 0
        %2343 = vmatpush1.bf16.msra.mxu0 %v2326
        %2344 = vmatprep.subr.bf16.mxu0 0
        %2345 = vmatpush2.bf16.msra.mxu0 0
        %2346 = vmatprep.subr.bf16.mxu0 0
        %2347 = vmatpush2.bf16.msra.mxu0 0
        %2348 = vmatprep.subr.bf16.mxu0 0
        %2349 = vmatpush2.bf16.msra.mxu0 0
        %2350 = vmatprep.subr.bf16.mxu0 0
        %2351 = vmatpush2.bf16.msra.mxu0 0
        %2352 = vmatprep.subr.bf16.mxu0 0
        %2353 = vmatpush2.bf16.msra.mxu0 0
        %2354 = vmatprep.subr.bf16.mxu0 0
        %2355 = vmatpush2.bf16.msra.mxu0 0
        %2356 = vmatprep.subr.bf16.mxu0 0
        %2357 = vmatpush2.bf16.msra.mxu0 0
        %2358 = vmatprep.subr.bf16.mxu0 0
        %2359 = vmatpush2.bf16.msra.mxu0 0
        %2360 = vmatprep.mubr.bf16.mxu0 0
        %2361 = vmatmul.mubr.bf16.gmra.mxu0 %v2323
        %v2362 = vpop.f32.mrf.mxu0
        %v2363 = vadd.f32 0.0, %v2362
        %v2364 = vpop.f32.mrf.mxu0
        %v2365 = vpop.f32.mrf.mxu0
        %v2366 = vpop.f32.mrf.mxu0
        %2367 = vdwg.mxu0
        %2368 = vrot.lane.b32.xlu0 %v1705, 80
        %v2369 = vpop.permute.xlu0 %2368
        %2370 = vrot.lane.b32.xlu0 %v1707, 80
        %v2371 = vpop.permute.xlu0 %2370
        %v2373 = vsel %vm1711, %v2369, 0
        %v2376 = vsel %vm1711, %v2371, 0
        %2378 = vmatprep.subr.bf16.mxu0 0
        %2379 = vmatpush1.bf16.xpose.msra.mxu0 0
        %2380 = vmatprep.subr.bf16.mxu0 0
        %2381 = vmatpush1.bf16.xpose.msra.mxu0 0
        %2382 = vmatprep.subr.bf16.mxu0 0
        %2383 = vmatpush1.bf16.xpose.msra.mxu0 0
        %2384 = vmatprep.subr.bf16.mxu0 0
        %2385 = vmatpush1.bf16.xpose.msra.mxu0 0
        %2386 = vmatprep.subr.bf16.mxu0 0
        %2387 = vmatpush1.bf16.xpose.msra.mxu0 0
        %2388 = vmatprep.subr.bf16.mxu0 0
        %2389 = vmatpush1.bf16.xpose.msra.mxu0 0
        %2390 = vmatprep.subr.bf16.mxu0 0
        %2391 = vmatpush1.bf16.xpose.msra.mxu0 0
        %2392 = vmatprep.subr.bf16.mxu0 0
        %2393 = vmatpush1.bf16.xpose.msra.mxu0 %v2376
        %2394 = vmatprep.subr.bf16.mxu0 0
        %2395 = vmatpush2.bf16.xpose.msra.mxu0 0
        %2396 = vmatprep.subr.bf16.mxu0 0
        %2397 = vmatpush2.bf16.xpose.msra.mxu0 0
        %2398 = vmatprep.subr.bf16.mxu0 0
        %2399 = vmatpush2.bf16.xpose.msra.mxu0 0
        %2400 = vmatprep.subr.bf16.mxu0 0
        %2401 = vmatpush2.bf16.xpose.msra.mxu0 0
        %2402 = vmatprep.subr.bf16.mxu0 0
        %2403 = vmatpush2.bf16.xpose.msra.mxu0 0
        %2404 = vmatprep.subr.bf16.mxu0 0
        %2405 = vmatpush2.bf16.xpose.msra.mxu0 0
        %2406 = vmatprep.subr.bf16.mxu0 0
        %2407 = vmatpush2.bf16.xpose.msra.mxu0 0
        %2408 = vmatprep.subr.bf16.mxu0 0
        %2409 = vmatpush2.bf16.xpose.msra.mxu0 0
        %2410 = vmatprep.mubr.bf16.mxu0 0
        %2411 = vmatmul.mubr.bf16.gmra.mxu0 %v2373
        %v2412 = vpop.f32.mrf.mxu0
        %v2413 = vadd.f32 %v1434, %v2412
        %v2414 = vpop.f32.mrf.mxu0
        %v2415 = vpop.f32.mrf.mxu0
        %v2416 = vpop.f32.mrf.mxu0
        %2417 = vdwg.mxu0
        %2418 = vrot.lane.b32.xlu0 %v1706, 80
        %v2419 = vpop.permute.xlu0 %2418
        %2420 = vrot.lane.b32.xlu0 %v1708, 80
        %v2421 = vpop.permute.xlu0 %2420
        %v2423 = vsel %vm1711, %v2419, 0
        %v2426 = vsel %vm1711, %v2421, 0
        %2428 = vmatprep.subr.bf16.mxu0 0
        %2429 = vmatpush1.bf16.xpose.msra.mxu0 0
        %2430 = vmatprep.subr.bf16.mxu0 0
        %2431 = vmatpush1.bf16.xpose.msra.mxu0 0
        %2432 = vmatprep.subr.bf16.mxu0 0
        %2433 = vmatpush1.bf16.xpose.msra.mxu0 0
        %2434 = vmatprep.subr.bf16.mxu0 0
        %2435 = vmatpush1.bf16.xpose.msra.mxu0 0
        %2436 = vmatprep.subr.bf16.mxu0 0
        %2437 = vmatpush1.bf16.xpose.msra.mxu0 0
        %2438 = vmatprep.subr.bf16.mxu0 0
        %2439 = vmatpush1.bf16.xpose.msra.mxu0 0
        %2440 = vmatprep.subr.bf16.mxu0 0
        %2441 = vmatpush1.bf16.xpose.msra.mxu0 0
        %2442 = vmatprep.subr.bf16.mxu0 0
        %2443 = vmatpush1.bf16.xpose.msra.mxu0 %v2426
        %2444 = vmatprep.subr.bf16.mxu0 0
        %2445 = vmatpush2.bf16.xpose.msra.mxu0 0
        %2446 = vmatprep.subr.bf16.mxu0 0
        %2447 = vmatpush2.bf16.xpose.msra.mxu0 0
        %2448 = vmatprep.subr.bf16.mxu0 0
        %2449 = vmatpush2.bf16.xpose.msra.mxu0 0
        %2450 = vmatprep.subr.bf16.mxu0 0
        %2451 = vmatpush2.bf16.xpose.msra.mxu0 0
        %2452 = vmatprep.subr.bf16.mxu0 0
        %2453 = vmatpush2.bf16.xpose.msra.mxu0 0
        %2454 = vmatprep.subr.bf16.mxu0 0
        %2455 = vmatpush2.bf16.xpose.msra.mxu0 0
        %2456 = vmatprep.subr.bf16.mxu0 0
        %2457 = vmatpush2.bf16.xpose.msra.mxu0 0
        %2458 = vmatprep.subr.bf16.mxu0 0
        %2459 = vmatpush2.bf16.xpose.msra.mxu0 0
        %2460 = vmatprep.mubr.bf16.mxu0 0
        %2461 = vmatmul.mubr.bf16.gmra.mxu0 %v2423
        %v2462 = vpop.f32.mrf.mxu0
        %v2463 = vadd.f32 %v1435, %v2462
        %v2464 = vpop.f32.mrf.mxu0
        %v2465 = vpop.f32.mrf.mxu0
        %v2466 = vpop.f32.mrf.mxu0
        %2467 = vdwg.mxu0
        %v2468 = vsel %vm1804, %v2413, -inf
        %2469 = vmax.xlane.f32.xlu0 %v2468
        %v2470 = vpop.xlane.xlu0 %2469
        %v2471 = vsel %vm1804, %v2463, -inf
        %2472 = vmax.xlane.f32.xlu0 %v2471
        %v2473 = vpop.xlane.xlu0 %2472
        %v2474 = vsub.f32 %v2413, %v2470
        %v2475 = vsub.f32 %v2463, %v2473
        %v2476 = vmul.f32 %v2474, 1.442695
        %v2477 = vpow.pop %v2476
        %v2478 = vmul.f32 %v2475, 1.442695
        %v2479 = vpow.pop %v2478
        %v2480 = vsel %vm1804, %v2477, 0.0
        %2481 = vadd.xlane.f32.xlu0 %v2480
        %v2482 = vpop.xlane.xlu0 %2481
        %v2483 = vsel %vm1804, %v2479, 0.0
        %2484 = vadd.xlane.f32.xlu0 %v2483
        %v2485 = vpop.xlane.xlu0 %2484
        %v2486 = vrcp.pop %v2482
        %v2487 = vrcp.pop %v2485
        %v2488 = vmul.f32 %v2477, %v2486
        %v2489 = vmul.f32 %v2479, %v2487
        %v2490 = vpack.c.bf16 %v2488, %v2488
        %v2491 = vpack.c.bf16 %v2489, %v2489
        %2492 = vrot.lane.b32.xlu0 %v1709, 80
        %v2493 = vpop.permute.xlu0 %2492
        %v2495 = vsel %vm1804, %v2490, 0
        %v2498 = vsel %vm1832, %v2493, 0
        %2500 = vmatprep.subr.bf16.mxu0 0
        %2501 = vmatpush1.bf16.msra.mxu0 0
        %2502 = vmatprep.subr.bf16.mxu0 0
        %2503 = vmatpush1.bf16.msra.mxu0 0
        %2504 = vmatprep.subr.bf16.mxu0 0
        %2505 = vmatpush1.bf16.msra.mxu0 0
        %2506 = vmatprep.subr.bf16.mxu0 0
        %2507 = vmatpush1.bf16.msra.mxu0 0
        %2508 = vmatprep.subr.bf16.mxu0 0
        %2509 = vmatpush1.bf16.msra.mxu0 0
        %2510 = vmatprep.subr.bf16.mxu0 0
        %2511 = vmatpush1.bf16.msra.mxu0 0
        %2512 = vmatprep.subr.bf16.mxu0 0
        %2513 = vmatpush1.bf16.msra.mxu0 0
        %2514 = vmatprep.subr.bf16.mxu0 0
        %2515 = vmatpush1.bf16.msra.mxu0 %v2498
        %2516 = vmatprep.subr.bf16.mxu0 0
        %2517 = vmatpush2.bf16.msra.mxu0 0
        %2518 = vmatprep.subr.bf16.mxu0 0
        %2519 = vmatpush2.bf16.msra.mxu0 0
        %2520 = vmatprep.subr.bf16.mxu0 0
        %2521 = vmatpush2.bf16.msra.mxu0 0
        %2522 = vmatprep.subr.bf16.mxu0 0
        %2523 = vmatpush2.bf16.msra.mxu0 0
        %2524 = vmatprep.subr.bf16.mxu0 0
        %2525 = vmatpush2.bf16.msra.mxu0 0
        %2526 = vmatprep.subr.bf16.mxu0 0
        %2527 = vmatpush2.bf16.msra.mxu0 0
        %2528 = vmatprep.subr.bf16.mxu0 0
        %2529 = vmatpush2.bf16.msra.mxu0 0
        %2530 = vmatprep.subr.bf16.mxu0 0
        %2531 = vmatpush2.bf16.msra.mxu0 0
        %2532 = vmatprep.mubr.bf16.mxu0 0
        %2533 = vmatmul.mubr.bf16.gmra.mxu0 %v2495
        %v2534 = vpop.f32.mrf.mxu0
        %v2535 = vadd.f32 0.0, %v2534
        %v2536 = vpop.f32.mrf.mxu0
        %v2537 = vpop.f32.mrf.mxu0
        %v2538 = vpop.f32.mrf.mxu0
        %2539 = vdwg.mxu0
        %2540 = vrot.lane.b32.xlu0 %v1710, 80
        %v2541 = vpop.permute.xlu0 %2540
        %v2543 = vsel %vm1804, %v2491, 0
        %v2546 = vsel %vm1832, %v2541, 0
        %2548 = vmatprep.subr.bf16.mxu0 0
        %2549 = vmatpush1.bf16.msra.mxu0 0
        %2550 = vmatprep.subr.bf16.mxu0 0
        %2551 = vmatpush1.bf16.msra.mxu0 0
        %2552 = vmatprep.subr.bf16.mxu0 0
        %2553 = vmatpush1.bf16.msra.mxu0 0
        %2554 = vmatprep.subr.bf16.mxu0 0
        %2555 = vmatpush1.bf16.msra.mxu0 0
        %2556 = vmatprep.subr.bf16.mxu0 0
        %2557 = vmatpush1.bf16.msra.mxu0 0
        %2558 = vmatprep.subr.bf16.mxu0 0
        %2559 = vmatpush1.bf16.msra.mxu0 0
        %2560 = vmatprep.subr.bf16.mxu0 0
        %2561 = vmatpush1.bf16.msra.mxu0 0
        %2562 = vmatprep.subr.bf16.mxu0 0
        %2563 = vmatpush1.bf16.msra.mxu0 %v2546
        %2564 = vmatprep.subr.bf16.mxu0 0
        %2565 = vmatpush2.bf16.msra.mxu0 0
        %2566 = vmatprep.subr.bf16.mxu0 0
        %2567 = vmatpush2.bf16.msra.mxu0 0
        %2568 = vmatprep.subr.bf16.mxu0 0
        %2569 = vmatpush2.bf16.msra.mxu0 0
        %2570 = vmatprep.subr.bf16.mxu0 0
        %2571 = vmatpush2.bf16.msra.mxu0 0
        %2572 = vmatprep.subr.bf16.mxu0 0
        %2573 = vmatpush2.bf16.msra.mxu0 0
        %2574 = vmatprep.subr.bf16.mxu0 0
        %2575 = vmatpush2.bf16.msra.mxu0 0
        %2576 = vmatprep.subr.bf16.mxu0 0
        %2577 = vmatpush2.bf16.msra.mxu0 0
        %2578 = vmatprep.subr.bf16.mxu0 0
        %2579 = vmatpush2.bf16.msra.mxu0 0
        %2580 = vmatprep.mubr.bf16.mxu0 0
        %2581 = vmatmul.mubr.bf16.gmra.mxu0 %v2543
        %v2582 = vpop.f32.mrf.mxu0
        %v2583 = vadd.f32 0.0, %v2582
        %v2584 = vpop.f32.mrf.mxu0
        %v2585 = vpop.f32.mrf.mxu0
        %v2586 = vpop.f32.mrf.mxu0
        %2587 = vdwg.mxu0
        %2590 = vrot.lane.b32.xlu0 %v2094, 16
        %v2591 = vpop.permute.xlu0 %2590
        %2592 = vrot.lane.b32.xlu0 %v2143, 16
        %v2593 = vpop.permute.xlu0 %2592
        %2598 = vrot.lane.b32.xlu0 %v2315, 32
        %v2599 = vpop.permute.xlu0 %2598
        %2600 = vrot.lane.b32.xlu0 %v2363, 32
        %v2601 = vpop.permute.xlu0 %2600
        %2606 = vrot.lane.b32.xlu0 %v2535, 48
        %v2607 = vpop.permute.xlu0 %2606
        %2608 = vrot.lane.b32.xlu0 %v2583, 48
        %v2609 = vpop.permute.xlu0 %2608
        %v2612 = vsel %vm1711, %v1871, %v2591
        %v2613 = vsel %vm1711, %v1917, %v2593
        %vm2614 = vcmask 261120
        %v2615 = vsel %vm2614, %v2612, %v2599
        %v2616 = vsel %vm2614, %v2613, %v2601
        %vm2617 = vcmask 392192
        %v2618 = vsel %vm2617, %v2615, %v2607
        %v2619 = vsel %vm2617, %v2616, %v2609
        %v2620 = vpack.c.bf16 %v2619, %v2618
        %v2621 = vld [vmem:[%s1113] sm:$0xf]
        %v2622 = vld [vmem:[%s1113 + $0x4] sm:$0xf]
        %v2623 = vld [vmem:[%s1113 + $0x8] sm:$0xf]
        %v2624 = vld [vmem:[%s1113 + $0xc] sm:$0xf]
        %v2625 = vld [vmem:[%s1113 + $0x10] sm:$0xf]
        %v2626 = vld [vmem:[%s1113 + $0x14] sm:$0xf]
        %v2627 = vld [vmem:[%s1113 + $0x18] sm:$0xf]
        %v2628 = vld [vmem:[%s1113 + $0x1c] sm:$0xf]
        %v2637 = vunpack.c.l.b16 %v2621
        %v2638 = vunpack.c.l.b16 %v2622
        %v2639 = vunpack.c.l.b16 %v2623
        %v2640 = vunpack.c.l.b16 %v2624
        %v2641 = vunpack.c.l.b16 %v2625
        %v2642 = vunpack.c.l.b16 %v2626
        %v2643 = vunpack.c.l.b16 %v2627
        %v2644 = vunpack.c.l.b16 %v2628
        %v2645 = vpack.c.b16 %v2638, %v2637
        %v2646 = vpack.c.b16 %v2640, %v2639
        %v2647 = vpack.c.b16 %v2642, %v2641
        %v2648 = vpack.c.b16 %v2644, %v2643
        %v2654 = vsel %vm1438, %v2620, 0
        %2656 = vmatprep.subr.bf16.mxu0 0
        %2657 = vmatpush1.bf16.msra.mxu0 0
        %2658 = vmatprep.subr.bf16.mxu0 0
        %2659 = vmatpush1.bf16.msra.mxu0 0
        %2660 = vmatprep.subr.bf16.mxu0 0
        %2661 = vmatpush1.bf16.msra.mxu0 0
        %2662 = vmatprep.subr.bf16.mxu0 0
        %2663 = vmatpush1.bf16.msra.mxu0 0
        %2664 = vmatprep.subr.bf16.mxu0 0
        %2665 = vmatpush1.bf16.msra.mxu0 %v2648
        %2666 = vmatprep.subr.bf16.mxu0 0
        %2667 = vmatpush1.bf16.msra.mxu0 %v2647
        %2668 = vmatprep.subr.bf16.mxu0 0
        %2669 = vmatpush1.bf16.msra.mxu0 %v2646
        %2670 = vmatprep.subr.bf16.mxu0 0
        %2671 = vmatpush1.bf16.msra.mxu0 %v2645
        %2672 = vmatprep.subr.bf16.mxu0 0
        %2673 = vmatpush2.bf16.msra.mxu0 0
        %2674 = vmatprep.subr.bf16.mxu0 0
        %2675 = vmatpush2.bf16.msra.mxu0 0
        %2676 = vmatprep.subr.bf16.mxu0 0
        %2677 = vmatpush2.bf16.msra.mxu0 0
        %2678 = vmatprep.subr.bf16.mxu0 0
        %2679 = vmatpush2.bf16.msra.mxu0 0
        %2680 = vmatprep.subr.bf16.mxu0 0
        %2681 = vmatpush2.bf16.msra.mxu0 0
        %2682 = vmatprep.subr.bf16.mxu0 0
        %2683 = vmatpush2.bf16.msra.mxu0 0
        %2684 = vmatprep.subr.bf16.mxu0 0
        %2685 = vmatpush2.bf16.msra.mxu0 0
        %2686 = vmatprep.subr.bf16.mxu0 0
        %2687 = vmatpush2.bf16.msra.mxu0 0
        %2688 = vmatprep.mubr.bf16.mxu0 0
        %2689 = vmatmul.mubr.bf16.gmra.mxu0 %v2654
        %v2690 = vpop.f32.mrf.mxu0
        %v2691 = vadd.f32 0.0, %v2690
        %v2692 = vpop.f32.mrf.mxu0
        %v2693 = vpop.f32.mrf.mxu0
        %v2694 = vadd.f32 0.0, %v2693
        %v2695 = vpop.f32.mrf.mxu0
        %2696 = vdwg.mxu0
        %v2697 = vadd.f32 %v1432, %v2691
        %v2698 = vadd.f32 %v1433, %v2694
        %v2699 = vld [vmem:[%s1116] sm:$0x1]
        %v2701 = vlaneseq
        %v2702 = vshrl.u32 %v2701, 7
        %v2703 = vsub.s32 0, %v2702
        %v2704 = vrot.slane %v2699, %v2703
        %v2706 = vadd.f32 %v2697, %v2704
        %v2707 = vadd.f32 %v2698, %v2704
        %v2708 = vld [vmem:[%s1119] sm:$0x1]
        %v2709 = vld [vmem:[%s1122] sm:$0x1]
        %v2710 = vsel %vm1438, %v2706, 0.0
        %2711 = vadd.xlane.f32.xlu0 %v2710
        %v2712 = vpop.xlane.xlu0 %2711
        %v2713 = vsel %vm1438, %v2707, 0.0
        %2714 = vadd.xlane.f32.xlu0 %v2713
        %v2715 = vpop.xlane.xlu0 %2714
        %v2716 = vmul.f32 %v2712, %v1445
        %v2717 = vmul.f32 %v2715, %v1445
        %v2718 = vsub.f32 %v2706, %v2716
        %v2719 = vsub.f32 %v2707, %v2717
        %v2720 = vmul.f32 %v2718, %v2718
        %v2721 = vmul.f32 %v2719, %v2719
        %v2722 = vsel %vm1438, %v2720, 0.0
        %2723 = vadd.xlane.f32.xlu0 %v2722
        %v2724 = vpop.xlane.xlu0 %2723
        %v2725 = vsel %vm1438, %v2721, 0.0
        %2726 = vadd.xlane.f32.xlu0 %v2725
        %v2727 = vpop.xlane.xlu0 %2726
        %v2728 = vmul.f32 %v2724, %v1445
        %v2729 = vmul.f32 %v2727, %v1445
        %v2730 = vadd.f32 %v2728, 1e-05
        %v2731 = vadd.f32 %v2729, 1e-05
        %v2732 = vrsqrt.pop %v2730
        %v2733 = vrsqrt.pop %v2731
        %v2734 = vmul.f32 %v2718, %v2732
        %v2735 = vmul.f32 %v2719, %v2733
        %v2737 = vlaneseq
        %v2738 = vshrl.u32 %v2737, 7
        %v2739 = vsub.s32 0, %v2738
        %v2740 = vrot.slane %v2708, %v2739
        %v2742 = vmul.f32 %v2734, %v2740
        %v2743 = vmul.f32 %v2735, %v2740
        %v2745 = vlaneseq
        %v2746 = vshrl.u32 %v2745, 7
        %v2747 = vsub.s32 0, %v2746
        %v2748 = vrot.slane %v2709, %v2747
        %v2750 = vadd.f32 %v2742, %v2748
        %v2751 = vadd.f32 %v2743, %v2748
        %v2752 = vpack.c.bf16 %v2751, %v2750
        %v2753 = vld [vmem:[%s1127] sm:$0xff]
        %v2754 = vld [vmem:[%s1127 + $0x8] sm:$0xff]
        %v2755 = vld [vmem:[%s1127 + $0x10] sm:$0xff]
        %v2756 = vld [vmem:[%s1127 + $0x18] sm:$0xff]
        %v2757 = vld [vmem:[%s1127 + $0x20] sm:$0xff]
        %v2758 = vld [vmem:[%s1127 + $0x28] sm:$0xff]
        %v2759 = vld [vmem:[%s1127 + $0x30] sm:$0xff]
        %v2760 = vld [vmem:[%s1127 + $0x38] sm:$0xff]
        %v2761 = vld [vmem:[%s1131] sm:$0x3]
        %v2763 = vlaneseq
        %v2764 = vshrl.u32 %v2763, 7
        %v2765 = vsub.s32 0, %v2764
        %v2766 = vrot.slane %v2761, %v2765
        %v2767 = vlaneseq
        %v2768 = vshrl.u32 %v2767, 7
        %v2769 = vsub.s32 1, %v2768
        %v2770 = vrot.slane %v2761, %v2769
        %v2781 = vunpack.c.l.b16 %v2753
        %v2782 = vunpack.c.h.b16 %v2753
        %v2783 = vunpack.c.l.b16 %v2754
        %v2784 = vunpack.c.h.b16 %v2754
        %v2785 = vunpack.c.l.b16 %v2755
        %v2786 = vunpack.c.h.b16 %v2755
        %v2787 = vunpack.c.l.b16 %v2756
        %v2788 = vunpack.c.h.b16 %v2756
        %v2789 = vunpack.c.l.b16 %v2757
        %v2790 = vunpack.c.h.b16 %v2757
        %v2791 = vunpack.c.l.b16 %v2758
        %v2792 = vunpack.c.h.b16 %v2758
        %v2793 = vunpack.c.l.b16 %v2759
        %v2794 = vunpack.c.h.b16 %v2759
        %v2795 = vunpack.c.l.b16 %v2760
        %v2796 = vunpack.c.h.b16 %v2760
        %v2797 = vpack.c.b16 %v2783, %v2781
        %v2798 = vpack.c.b16 %v2784, %v2782
        %v2799 = vpack.c.b16 %v2787, %v2785
        %v2800 = vpack.c.b16 %v2788, %v2786
        %v2801 = vpack.c.b16 %v2791, %v2789
        %v2802 = vpack.c.b16 %v2792, %v2790
        %v2803 = vpack.c.b16 %v2795, %v2793
        %v2804 = vpack.c.b16 %v2796, %v2794
        %v2814 = vsel %vm1438, %v2752, 0
        %2816 = vmatprep.subr.bf16.mxu0 0
        %2817 = vmatpush1.bf16.msra.mxu0 0
        %2818 = vmatprep.subr.bf16.mxu0 0
        %2819 = vmatpush1.bf16.msra.mxu0 0
        %2820 = vmatprep.subr.bf16.mxu0 0
        %2821 = vmatpush1.bf16.msra.mxu0 0
        %2822 = vmatprep.subr.bf16.mxu0 0
        %2823 = vmatpush1.bf16.msra.mxu0 0
        %2824 = vmatprep.subr.bf16.mxu0 %v2804
        %2825 = vmatpush1.bf16.msra.mxu0 %v2803
        %2826 = vmatprep.subr.bf16.mxu0 %v2802
        %2827 = vmatpush1.bf16.msra.mxu0 %v2801
        %2828 = vmatprep.subr.bf16.mxu0 %v2800
        %2829 = vmatpush1.bf16.msra.mxu0 %v2799
        %2830 = vmatprep.subr.bf16.mxu0 %v2798
        %2831 = vmatpush1.bf16.msra.mxu0 %v2797
        %2832 = vmatprep.subr.bf16.mxu0 0
        %2833 = vmatpush2.bf16.msra.mxu0 0
        %2834 = vmatprep.subr.bf16.mxu0 0
        %2835 = vmatpush2.bf16.msra.mxu0 0
        %2836 = vmatprep.subr.bf16.mxu0 0
        %2837 = vmatpush2.bf16.msra.mxu0 0
        %2838 = vmatprep.subr.bf16.mxu0 0
        %2839 = vmatpush2.bf16.msra.mxu0 0
        %2840 = vmatprep.subr.bf16.mxu0 0
        %2841 = vmatpush2.bf16.msra.mxu0 0
        %2842 = vmatprep.subr.bf16.mxu0 0
        %2843 = vmatpush2.bf16.msra.mxu0 0
        %2844 = vmatprep.subr.bf16.mxu0 0
        %2845 = vmatpush2.bf16.msra.mxu0 0
        %2846 = vmatprep.subr.bf16.mxu0 0
        %2847 = vmatpush2.bf16.msra.mxu0 0
        %2848 = vmatprep.mubr.bf16.mxu0 0
        %2849 = vmatmul.mubr.bf16.gmra.mxu0 %v2814
        %v2850 = vpop.f32.mrf.mxu0
        %v2851 = vadd.f32 %v2766, %v2850
        %v2852 = vpop.f32.mrf.mxu0
        %v2853 = vadd.f32 %v2770, %v2852
        %v2854 = vpop.f32.mrf.mxu0
        %v2855 = vadd.f32 %v2766, %v2854
        %v2856 = vpop.f32.mrf.mxu0
        %v2857 = vadd.f32 %v2770, %v2856
        %2858 = vdwg.mxu0
        %v2859 = vmul.f32 %v2851, %v2851
        %v2860 = vmul.f32 %v2853, %v2853
        %v2861 = vmul.f32 %v2855, %v2855
        %v2862 = vmul.f32 %v2857, %v2857
        %v2863 = vmul.f32 %v2851, %v2859
        %v2864 = vmul.f32 %v2853, %v2860
        %v2865 = vmul.f32 %v2855, %v2861
        %v2866 = vmul.f32 %v2857, %v2862
        %v2867 = vmul.f32 %v2863, 0.044715
        %v2868 = vmul.f32 %v2864, 0.044715
        %v2869 = vmul.f32 %v2865, 0.044715
        %v2870 = vmul.f32 %v2866, 0.044715
        %v2871 = vadd.f32 %v2851, %v2867
        %v2872 = vadd.f32 %v2853, %v2868
        %v2873 = vadd.f32 %v2855, %v2869
        %v2874 = vadd.f32 %v2857, %v2870
        %v2875 = vmul.f32 %v2871, 0.7978846
        %v2876 = vmul.f32 %v2872, 0.7978846
        %v2877 = vmul.f32 %v2873, 0.7978846
        %v2878 = vmul.f32 %v2874, 0.7978846
        %v2879 = vtanh.pop %v2875
        %v2880 = vtanh.pop %v2876
        %v2881 = vtanh.pop %v2877
        %v2882 = vtanh.pop %v2878
        %v2883 = vadd.f32 %v2879, 1.0
        %v2884 = vadd.f32 %v2880, 1.0
        %v2885 = vadd.f32 %v2881, 1.0
        %v2886 = vadd.f32 %v2882, 1.0
        %v2887 = vmul.f32 %v2883, 0.5
        %v2888 = vmul.f32 %v2884, 0.5
        %v2889 = vmul.f32 %v2885, 0.5
        %v2890 = vmul.f32 %v2886, 0.5
        %v2891 = vmul.f32 %v2851, %v2887
        %v2892 = vmul.f32 %v2853, %v2888
        %v2893 = vmul.f32 %v2855, %v2889
        %v2894 = vmul.f32 %v2857, %v2890
        %v2895 = vpack.c.bf16 %v2893, %v2891
        %v2896 = vpack.c.bf16 %v2894, %v2892
        %v2897 = vld [vmem:[%s1136] sm:$0xf]
        %v2898 = vld [vmem:[%s1136 + $0x4] sm:$0xf]
        %v2899 = vld [vmem:[%s1136 + $0x8] sm:$0xf]
        %v2900 = vld [vmem:[%s1136 + $0xc] sm:$0xf]
        %v2901 = vld [vmem:[%s1136 + $0x10] sm:$0xf]
        %v2902 = vld [vmem:[%s1136 + $0x14] sm:$0xf]
        %v2903 = vld [vmem:[%s1136 + $0x18] sm:$0xf]
        %v2904 = vld [vmem:[%s1136 + $0x1c] sm:$0xf]
        %v2905 = vld [vmem:[%s1136 + $0x20] sm:$0xf]
        %v2906 = vld [vmem:[%s1136 + $0x24] sm:$0xf]
        %v2907 = vld [vmem:[%s1136 + $0x28] sm:$0xf]
        %v2908 = vld [vmem:[%s1136 + $0x2c] sm:$0xf]
        %v2909 = vld [vmem:[%s1136 + $0x30] sm:$0xf]
        %v2910 = vld [vmem:[%s1136 + $0x34] sm:$0xf]
        %v2911 = vld [vmem:[%s1136 + $0x38] sm:$0xf]
        %v2912 = vld [vmem:[%s1136 + $0x3c] sm:$0xf]
        %v2913 = vld [vmem:[%s1136 + $0x40] sm:$0xf]
        %v2914 = vld [vmem:[%s1136 + $0x44] sm:$0xf]
        %v2915 = vld [vmem:[%s1136 + $0x48] sm:$0xf]
        %v2916 = vld [vmem:[%s1136 + $0x4c] sm:$0xf]
        %v2917 = vld [vmem:[%s1136 + $0x50] sm:$0xf]
        %v2918 = vld [vmem:[%s1136 + $0x54] sm:$0xf]
        %v2919 = vld [vmem:[%s1136 + $0x58] sm:$0xf]
        %v2920 = vld [vmem:[%s1136 + $0x5c] sm:$0xf]
        %v2921 = vld [vmem:[%s1136 + $0x60] sm:$0xf]
        %v2922 = vld [vmem:[%s1136 + $0x64] sm:$0xf]
        %v2923 = vld [vmem:[%s1136 + $0x68] sm:$0xf]
        %v2924 = vld [vmem:[%s1136 + $0x6c] sm:$0xf]
        %v2925 = vld [vmem:[%s1136 + $0x70] sm:$0xf]
        %v2926 = vld [vmem:[%s1136 + $0x74] sm:$0xf]
        %v2927 = vld [vmem:[%s1136 + $0x78] sm:$0xf]
        %v2928 = vld [vmem:[%s1136 + $0x7c] sm:$0xf]
        %v2929 = vld [vmem:[%s1139] sm:$0x1]
        %v2931 = vlaneseq
        %v2932 = vshrl.u32 %v2931, 7
        %v2933 = vsub.s32 0, %v2932
        %v2934 = vrot.slane %v2929, %v2933
        %v2968 = vunpack.c.l.b16 %v2897
        %v2969 = vunpack.c.l.b16 %v2898
        %v2970 = vunpack.c.l.b16 %v2899
        %v2971 = vunpack.c.l.b16 %v2900
        %v2972 = vunpack.c.l.b16 %v2901
        %v2973 = vunpack.c.l.b16 %v2902
        %v2974 = vunpack.c.l.b16 %v2903
        %v2975 = vunpack.c.l.b16 %v2904
        %v2976 = vunpack.c.l.b16 %v2905
        %v2977 = vunpack.c.l.b16 %v2906
        %v2978 = vunpack.c.l.b16 %v2907
        %v2979 = vunpack.c.l.b16 %v2908
        %v2980 = vunpack.c.l.b16 %v2909
        %v2981 = vunpack.c.l.b16 %v2910
        %v2982 = vunpack.c.l.b16 %v2911
        %v2983 = vunpack.c.l.b16 %v2912
        %v2984 = vunpack.c.l.b16 %v2913
        %v2985 = vunpack.c.l.b16 %v2914
        %v2986 = vunpack.c.l.b16 %v2915
        %v2987 = vunpack.c.l.b16 %v2916
        %v2988 = vunpack.c.l.b16 %v2917
        %v2989 = vunpack.c.l.b16 %v2918
        %v2990 = vunpack.c.l.b16 %v2919
        %v2991 = vunpack.c.l.b16 %v2920
        %v2992 = vunpack.c.l.b16 %v2921
        %v2993 = vunpack.c.l.b16 %v2922
        %v2994 = vunpack.c.l.b16 %v2923
        %v2995 = vunpack.c.l.b16 %v2924
        %v2996 = vunpack.c.l.b16 %v2925
        %v2997 = vunpack.c.l.b16 %v2926
        %v2998 = vunpack.c.l.b16 %v2927
        %v2999 = vunpack.c.l.b16 %v2928
        %v3000 = vpack.c.b16 %v2969, %v2968
        %v3001 = vpack.c.b16 %v2971, %v2970
        %v3002 = vpack.c.b16 %v2973, %v2972
        %v3003 = vpack.c.b16 %v2975, %v2974
        %v3004 = vpack.c.b16 %v2977, %v2976
        %v3005 = vpack.c.b16 %v2979, %v2978
        %v3006 = vpack.c.b16 %v2981, %v2980
        %v3007 = vpack.c.b16 %v2983, %v2982
        %v3008 = vpack.c.b16 %v2985, %v2984
        %v3009 = vpack.c.b16 %v2987, %v2986
        %v3010 = vpack.c.b16 %v2989, %v2988
        %v3011 = vpack.c.b16 %v2991, %v2990
        %v3012 = vpack.c.b16 %v2993, %v2992
        %v3013 = vpack.c.b16 %v2995, %v2994
        %v3014 = vpack.c.b16 %v2997, %v2996
        %v3015 = vpack.c.b16 %v2999, %v2998
        %3032 = vmatprep.subr.bf16.mxu0 0
        %3033 = vmatpush1.bf16.msra.mxu0 %v3007
        %3034 = vmatprep.subr.bf16.mxu0 0
        %3035 = vmatpush1.bf16.msra.mxu0 %v3006
        %3036 = vmatprep.subr.bf16.mxu0 0
        %3037 = vmatpush1.bf16.msra.mxu0 %v3005
        %3038 = vmatprep.subr.bf16.mxu0 0
        %3039 = vmatpush1.bf16.msra.mxu0 %v3004
        %3040 = vmatprep.subr.bf16.mxu0 0
        %3041 = vmatpush1.bf16.msra.mxu0 %v3003
        %3042 = vmatprep.subr.bf16.mxu0 0
        %3043 = vmatpush1.bf16.msra.mxu0 %v3002
        %3044 = vmatprep.subr.bf16.mxu0 0
        %3045 = vmatpush1.bf16.msra.mxu0 %v3001
        %3046 = vmatprep.subr.bf16.mxu0 0
        %3047 = vmatpush1.bf16.msra.mxu0 %v3000
        %3048 = vmatprep.subr.bf16.mxu0 0
        %3049 = vmatpush2.bf16.msra.mxu0 %v3015
        %3050 = vmatprep.subr.bf16.mxu0 0
        %3051 = vmatpush2.bf16.msra.mxu0 %v3014
        %3052 = vmatprep.subr.bf16.mxu0 0
        %3053 = vmatpush2.bf16.msra.mxu0 %v3013
        %3054 = vmatprep.subr.bf16.mxu0 0
        %3055 = vmatpush2.bf16.msra.mxu0 %v3012
        %3056 = vmatprep.subr.bf16.mxu0 0
        %3057 = vmatpush2.bf16.msra.mxu0 %v3011
        %3058 = vmatprep.subr.bf16.mxu0 0
        %3059 = vmatpush2.bf16.msra.mxu0 %v3010
        %3060 = vmatprep.subr.bf16.mxu0 0
        %3061 = vmatpush2.bf16.msra.mxu0 %v3009
        %3062 = vmatprep.subr.bf16.mxu0 0
        %3063 = vmatpush2.bf16.msra.mxu0 %v3008
        %3064 = vmatprep.mubr.bf16.mxu0 %v2896
        %3065 = vmatmul.mubr.bf16.gmra.mxu0 %v2895
        %v3066 = vpop.f32.mrf.mxu0
        %v3067 = vadd.f32 %v2934, %v3066
        %v3068 = vpop.f32.mrf.mxu0
        %v3069 = vpop.f32.mrf.mxu0
        %v3070 = vadd.f32 %v2934, %v3069
        %v3071 = vpop.f32.mrf.mxu0
        %3072 = vdwg.mxu0
        %v3073 = vadd.f32 %v2706, %v3067
        %v3074 = vadd.f32 %v2707, %v3070
        %3075 = vst.msk [vmem:[#allocation2] sm:$0xff] %vm1438, %v3073
        %3076 = vst.msk [vmem:[#allocation2 + $0x8] sm:$0xff] %vm1438, %v3074
        %p3077 = scmp.eq.s32.totalorder %s55, 1
        // Predicated region
        $region149: #{tpu_custom_call.1} parent=119 // pred_check
          %p3078 = pneg %p3077
        $region150: #{tpu_custom_call.1} parent=119 // pred_check_branch
          %3080 = sbr.rel (%p3078) target = $region152
        $region151: #{tpu_custom_call.1} parent=119 // pred_region
          %v3081 = vmul.f32 %v3073, %v3073
          %v3082 = vmul.f32 %v3074, %v3074
          %v3083 = vsel %vm1438, %v3081, 0.0
          %3084 = vadd.xlane.f32.xlu0 %v3083
          %v3085 = vpop.xlane.xlu0 %3084
          %v3086 = vsel %vm1438, %v3082, 0.0
          %3087 = vadd.xlane.f32.xlu0 %v3086
          %v3088 = vpop.xlane.xlu0 %3087
          %v3089 = vmax.f32 %v3085, 1e-24
          %v3090 = vmax.f32 %v3088, 1e-24
          %v3091 = vrsqrt.pop %v3089
          %v3092 = vrsqrt.pop %v3090
          %v3093 = vmul.f32 %v3073, %v3091
          %v3094 = vmul.f32 %v3074, %v3092
          %3095 = vst.msk [vmem:[%s1073] sm:$0xff] %vm1438, %v3093
          %3096 = vst.msk [vmem:[%s1073 + $0x8] sm:$0xff] %vm1438, %v3094
          %v3097 = vlaneseq
          %v3098 = vshrl.u32 %v3097, 7
          %v3099 = vsub.s32 0, %v3098
          %v3100 = vrot.slane %v3093, %v3099
          %v3101 = vlaneseq
          %v3102 = vshrl.u32 %v3101, 7
          %v3103 = vsub.s32 0, %v3102
          %v3104 = vrot.slane %v3094, %v3103
          %v3105 = vmul.f32 %v3100, %v3093
          %v3106 = vmul.f32 %v3104, %v3094
          %v3107 = vsel %vm1438, %v3105, 0.0
          %3108 = vadd.xlane.f32.xlu0 %v3107
          %v3109 = vpop.xlane.xlu0 %3108
          %v3110 = vsel %vm1438, %v3106, 0.0
          %3111 = vadd.xlane.f32.xlu0 %v3110
          %v3112 = vpop.xlane.xlu0 %3111
          %v3113 = vmul.f32 %v3109, 0.5
          %v3114 = vmul.f32 %v3112, 0.5
          %v3115 = vmul.f32 %v3113, 1.442695
          %v3116 = vpow.pop %v3115
          %v3117 = vmul.f32 %v3114, 1.442695
          %v3118 = vpow.pop %v3117
          %v3119 = vld [vmem:[%s1085] sm:$0xff]
          %v3120 = vld [vmem:[%s1085 + $0x8] sm:$0xff]
          %vm3121 = vcmask 7168
          %v3122 = vsel %vm3121, %v3119, inf
          %v3123 = vrot.slane %v3122, 4
          %v3124 = vmin.f32 %v3122, %v3123
          %v3125 = vrot.slane %v3124, 2
          %v3126 = vmin.f32 %v3124, %v3125
          %v3127 = vrot.slane %v3126, 1
          %v3128 = vmin.f32 %v3126, %v3127
          %v3129 = vsel %vm3121, %v3120, inf
          %v3130 = vrot.slane %v3129, 4
          %v3131 = vmin.f32 %v3129, %v3130
          %v3132 = vrot.slane %v3131, 2
          %v3133 = vmin.f32 %v3131, %v3132
          %v3134 = vrot.slane %v3133, 1
          %v3135 = vmin.f32 %v3133, %v3134
          %v3136 = vsub.f32 %v3128, %v3109
          %v3137 = vsub.f32 %v3135, %v3112
          %v3138 = vmax.f32 %v3136, 0.0
          %v3139 = vmax.f32 %v3137, 0.0
          %v3140 = vpack.c.bf16 %v3074, %v3073
          %v3141 = vld [vmem:[%s23] sm:$0xf]
          %v3142 = vld [vmem:[%s23 + $0x4] sm:$0xf]
          %v3143 = vld [vmem:[%s23 + $0x8] sm:$0xf]
          %v3144 = vld [vmem:[%s23 + $0xc] sm:$0xf]
          %v3145 = vld [vmem:[%s23 + $0x10] sm:$0xf]
          %v3146 = vld [vmem:[%s23 + $0x14] sm:$0xf]
          %v3147 = vld [vmem:[%s23 + $0x18] sm:$0xf]
          %v3148 = vld [vmem:[%s23 + $0x1c] sm:$0xf]
          %v3149 = vld [vmem:[%s24] sm:$0x1]
          %v3151 = vlaneseq
          %v3152 = vshrl.u32 %v3151, 7
          %v3153 = vsub.s32 0, %v3152
          %v3154 = vrot.slane %v3149, %v3153
          %v3164 = vunpack.c.l.b16 %v3141
          %v3165 = vunpack.c.l.b16 %v3142
          %v3166 = vunpack.c.l.b16 %v3143
          %v3167 = vunpack.c.l.b16 %v3144
          %v3168 = vunpack.c.l.b16 %v3145
          %v3169 = vunpack.c.l.b16 %v3146
          %v3170 = vunpack.c.l.b16 %v3147
          %v3171 = vunpack.c.l.b16 %v3148
          %v3172 = vpack.c.b16 %v3165, %v3164
          %v3173 = vpack.c.b16 %v3167, %v3166
          %v3174 = vpack.c.b16 %v3169, %v3168
          %v3175 = vpack.c.b16 %v3171, %v3170
          %v3181 = vsel %vm1438, %v3140, 0
          %3183 = vmatprep.subr.bf16.mxu0 0
          %3184 = vmatpush1.bf16.msra.mxu0 0
          %3185 = vmatprep.subr.bf16.mxu0 0
          %3186 = vmatpush1.bf16.msra.mxu0 0
          %3187 = vmatprep.subr.bf16.mxu0 0
          %3188 = vmatpush1.bf16.msra.mxu0 0
          %3189 = vmatprep.subr.bf16.mxu0 0
          %3190 = vmatpush1.bf16.msra.mxu0 0
          %3191 = vmatprep.subr.bf16.mxu0 0
          %3192 = vmatpush1.bf16.msra.mxu0 %v3175
          %3193 = vmatprep.subr.bf16.mxu0 0
          %3194 = vmatpush1.bf16.msra.mxu0 %v3174
          %3195 = vmatprep.subr.bf16.mxu0 0
          %3196 = vmatpush1.bf16.msra.mxu0 %v3173
          %3197 = vmatprep.subr.bf16.mxu0 0
          %3198 = vmatpush1.bf16.msra.mxu0 %v3172
          %3199 = vmatprep.subr.bf16.mxu0 0
          %3200 = vmatpush2.bf16.msra.mxu0 0
          %3201 = vmatprep.subr.bf16.mxu0 0
          %3202 = vmatpush2.bf16.msra.mxu0 0
          %3203 = vmatprep.subr.bf16.mxu0 0
          %3204 = vmatpush2.bf16.msra.mxu0 0
          %3205 = vmatprep.subr.bf16.mxu0 0
          %3206 = vmatpush2.bf16.msra.mxu0 0
          %3207 = vmatprep.subr.bf16.mxu0 0
          %3208 = vmatpush2.bf16.msra.mxu0 0
          %3209 = vmatprep.subr.bf16.mxu0 0
          %3210 = vmatpush2.bf16.msra.mxu0 0
          %3211 = vmatprep.subr.bf16.mxu0 0
          %3212 = vmatpush2.bf16.msra.mxu0 0
          %3213 = vmatprep.subr.bf16.mxu0 0
          %3214 = vmatpush2.bf16.msra.mxu0 0
          %3215 = vmatprep.mubr.bf16.mxu0 0
          %3216 = vmatmul.mubr.bf16.gmra.mxu0 %v3181
          %v3217 = vpop.f32.mrf.mxu0
          %v3218 = vadd.f32 %v3154, %v3217
          %v3219 = vpop.f32.mrf.mxu0
          %v3220 = vpop.f32.mrf.mxu0
          %v3221 = vadd.f32 %v3154, %v3220
          %v3222 = vpop.f32.mrf.mxu0
          %3223 = vdwg.mxu0
          %v3224 = vmul.f32 %v3119, %v3119
          %v3225 = vmul.f32 %v3120, %v3120
          %v3226 = vsel %vm2614, %v3224, 0.0
          %3227 = vadd.xlane.f32.xlu0 %v3226
          %v3228 = vpop.xlane.xlu0 %3227
          %v3229 = vsel %vm2614, %v3225, 0.0
          %3230 = vadd.xlane.f32.xlu0 %v3229
          %v3231 = vpop.xlane.xlu0 %3230
          %v3232 = vmax.f32 %v3228, 1e-24
          %v3233 = vmax.f32 %v3231, 1e-24
          %v3234 = vrsqrt.pop %v3232
          %v3235 = vrsqrt.pop %v3233
          %v3236 = vmul.f32 %v3119, %v3234
          %v3237 = vmul.f32 %v3120, %v3235
          %v3238 = vmul.f32 %v3218, %v3218
          %v3239 = vmul.f32 %v3221, %v3221
          %v3240 = vsel %vm2614, %v3238, 0.0
          %3241 = vadd.xlane.f32.xlu0 %v3240
          %v3242 = vpop.xlane.xlu0 %3241
          %v3243 = vsel %vm2614, %v3239, 0.0
          %3244 = vadd.xlane.f32.xlu0 %v3243
          %v3245 = vpop.xlane.xlu0 %3244
          %v3246 = vmax.f32 %v3242, 1e-24
          %v3247 = vmax.f32 %v3245, 1e-24
          %v3248 = vrsqrt.pop %v3246
          %v3249 = vrsqrt.pop %v3247
          %v3250 = vmul.f32 %v3218, %v3248
          %v3251 = vmul.f32 %v3221, %v3249
          %v3252 = vsub.f32 %v3236, %v3250
          %v3253 = vsub.f32 %v3237, %v3251
          %v3254 = vmul.f32 %v3252, %v3252
          %v3255 = vmul.f32 %v3253, %v3253
          %v3256 = vsel %vm2614, %v3254, 0.0
          %3257 = vadd.xlane.f32.xlu0 %v3256
          %v3258 = vpop.xlane.xlu0 %3257
          %v3259 = vsel %vm2614, %v3255, 0.0
          %3260 = vadd.xlane.f32.xlu0 %v3259
          %v3261 = vpop.xlane.xlu0 %3260
          %v3262 = vmax.f32 %v3258, 0.0001
          %v3263 = vmax.f32 %v3261, 0.0001
          %v3264 = vmin.f32 %v3262, 10000.0
          %v3265 = vmin.f32 %v3263, 10000.0
          %v3266 = vrsqrt.pop %v3264
          %v3267 = vmul.f32 %v3264, %v3266
          %vm3268 = vcmp.eq.f32.partialorder %v3264, inf
          %v3269 = vsel %vm3268, %v3264, %v3267
          %vm3270 = vcmp.eq.f32.partialorder %v3264, 0.0
          %v3271 = vand.u32 %v3264, 2147483648
          %v3272 = vsel %vm3270, %v3271, %v3269
          %v3273 = vrsqrt.pop %v3265
          %v3274 = vmul.f32 %v3265, %v3273
          %vm3275 = vcmp.eq.f32.partialorder %v3265, inf
          %v3276 = vsel %vm3275, %v3265, %v3274
          %vm3277 = vcmp.eq.f32.partialorder %v3265, 0.0
          %v3278 = vand.u32 %v3265, 2147483648
          %v3279 = vsel %vm3277, %v3278, %v3276
          %v3280 = vlaneseq
          %v3281 = vand.u32 %v3280, 127
          %vm3282 = vcmp.eq.s32.totalorder %v3281, 0
          %v3283 = vsel %vm3282, %v3109, 0.0
          %v3284 = vsel %vm3282, %v3112, 0.0
          %vm3285 = vcmp.eq.s32.totalorder %v3281, 1
          %v3286 = vsel %vm3285, %v3116, 0.0
          %v3287 = vsel %vm3285, %v3118, 0.0
          %v3288 = vadd.f32 %v3283, %v3286
          %v3289 = vadd.f32 %v3284, %v3287
          %vm3290 = vcmp.eq.s32.totalorder %v3281, 2
          %3292 = vset.pattern.permute.xlu0 0
          %3293 = vperm.xlu0 %3292, %v3138
          %v3294 = vpop.permute.xlu0 %3293
          %3297 = vset.pattern.permute.xlu0 0
          %3298 = vperm.xlu0 %3297, %v3139
          %v3299 = vpop.permute.xlu0 %3298
          %v3301 = vsel %vm3290, %v3294, 0.0
          %v3302 = vsel %vm3290, %v3299, 0.0
          %v3303 = vadd.f32 %v3288, %v3301
          %v3304 = vadd.f32 %v3289, %v3302
          %vm3305 = vcmp.eq.s32.totalorder %v3281, 3
          %v3306 = vsel %vm3305, %v3272, 0.0
          %v3307 = vsel %vm3305, %v3279, 0.0
          %v3308 = vadd.f32 %v3303, %v3306
          %v3309 = vadd.f32 %v3304, %v3307
          %3310 = vst [vmem:[%s1080] sm:$0xff] %v3308
          %3311 = vst [vmem:[%s1080 + $0x8] sm:$0xff] %v3309
        $region152: #{tpu_custom_call.1} parent=119 // pred_fallthru
          _
        %s3312 = sand.u32 %s670, 1
        %s3313 = scalar_lea.sflag [#allocation5], %s3312
        %s3314 = sand.u32 %s670, 1
        %s3315 = smul.addr %s3314, 16
        %s3316 = scalar_lea.vmem [#allocation14], %s3315
        %s3317 = sand.u32 %s696, 1
        %s3318 = scalar_lea.sflag [#allocation16], %s3317
        %s3319 = sand.u32 %s696, 1
        %s3320 = smul.addr %s3319, 16
        %s3321 = scalar_lea.vmem [#allocation15], %s3320
        // Predicated region
        $region153: #{tpu_custom_call.1} parent=119 // pred_check
          %p3322 = pneg %p680
        $region154: #{tpu_custom_call.1} parent=119 // pred_check_branch
          %3324 = sbr.rel (%p3322) target = $region156
        $region155: #{tpu_custom_call.1} parent=119 // pred_region
          %s3325 = smul.u32 2, %s54
          %s3327 = ssub.s32 256, 256
          %3328 = vsyncadd %s3313, %s3327
          %s3329 = smul.addr %s3325, 128
          %s3330 = scalar_lea.hbm %s25, %s3329
          %s3331 = sshll.u32 %s3316, 4
          %s3332 = int_to_ptr.vmem [resolvable:$true] %s3331
          %3337 = dma.vmem_to_hbm [thread:$0]  %s3332, 256, %s3330, %s3313, 128, 128, 8
        $region156: #{tpu_custom_call.1} parent=119 // pred_fallthru
          _
        // Predicated region
        $region157: #{tpu_custom_call.1} parent=119 // pred_check
          %p3338 = pneg %p706
        $region158: #{tpu_custom_call.1} parent=119 // pred_check_branch
          %3340 = sbr.rel (%p3338) target = $region160
        $region159: #{tpu_custom_call.1} parent=119 // pred_region
          %s3341 = smul.u32 2, %s54
          %s3343 = ssub.s32 256, 256
          %3344 = vsyncadd %s3318, %s3343
          %s3345 = smul.addr %s3341, 128
          %s3346 = scalar_lea.hbm %s26, %s3345
          %s3347 = sshll.u32 %s3321, 4
          %s3348 = int_to_ptr.vmem [resolvable:$true] %s3347
          %3353 = dma.vmem_to_hbm [thread:$0]  %s3348, 256, %s3346, %s3318, 128, 128, 8
        $region160: #{tpu_custom_call.1} parent=119 // pred_fallthru
          _
      $region120: #{tpu_custom_call.1} parent=5 // pred_fallthru
        _
      %p3354 = scmp.le.s32.totalorder 2, %s45
      // Predicated region
      $region161: #{tpu_custom_call.1} parent=5 // pred_check
        %p3355 = pneg %p3354
      $region162: #{tpu_custom_call.1} parent=5 // pred_check_branch
        %3357 = sbr.rel (%p3355) target = $region164
      $region163: #{tpu_custom_call.1} parent=5 // pred_region
        %s3358 = ssub.s32 %s45, 2
        // Predicated region
        $region165: #{tpu_custom_call.1} parent=163 // pred_check
          %p3359 = pneg %p686
        $region166: #{tpu_custom_call.1} parent=163 // pred_check_branch
          %3361 = sbr.rel (%p3359) target = $region168
        $region167: #{tpu_custom_call.1} parent=163 // pred_region
          %s3362 = sand.u32 %s671, 1
          %s3363 = scalar_lea.sflag [#allocation5], %s3362
          %s3364 = sand.u32 %s671, 1
          %s3365 = smul.addr %s3364, 16
          %s3366 = scalar_lea.vmem [#allocation14], %s3365
          %3367 = dma.done %s3363, 256
        $region168: #{tpu_custom_call.1} parent=163 // pred_fallthru
          _
        // Predicated region
        $region169: #{tpu_custom_call.1} parent=163 // pred_check
          %p3368 = pneg %p712
        $region170: #{tpu_custom_call.1} parent=163 // pred_check_branch
          %3370 = sbr.rel (%p3368) target = $region172
        $region171: #{tpu_custom_call.1} parent=163 // pred_region
          %s3371 = sand.u32 %s697, 1
          %s3372 = scalar_lea.sflag [#allocation16], %s3371
          %s3373 = sand.u32 %s697, 1
          %s3374 = smul.addr %s3373, 16
          %s3375 = scalar_lea.vmem [#allocation15], %s3374
          %3376 = dma.done %s3372, 256
        $region172: #{tpu_custom_call.1} parent=163 // pred_fallthru
          _
      $region164: #{tpu_custom_call.1} parent=5 // pred_fallthru
        _
    $region6: #{tpu_custom_call.1} parent=1 // loop_footer
      %s49 = sadd.s32 1, %s45
    $region7: #{tpu_custom_call.1} parent=1 // loop_footer_branch
      %44 = sbr.rel target = $region3
    $region8: #{tpu_custom_call.1} parent=1 // loop_exit
      _
    %3377 = vsyncpa [#allocation4], 1
    %s3378 = scalar_lea.sflag [#allocation4], 1
    %3379 = vsyncpa %s3378, 1
    %3380 = vsyncpa [#allocation7], 1
    %3381 = vsyncpa [#allocation10], 1
    %3382 = vsyncpa [#allocation13], 1
    %3383 = vsyncpa [#allocation5], 1
    %s3384 = scalar_lea.sflag [#allocation5], 1
    %3385 = vsyncpa %s3384, 1
    %3386 = vsyncpa [#allocation16], 1
    %s3387 = scalar_lea.sflag [#allocation16], 1
    %3388 = vsyncpa %s3387, 1

</llo_original>
